<compile_context>
chip_gen: v7x
topology: tpu7x:2x2x1
jax: 0.10.0
libtpu: 0.0.40
codegen_flags: <defaults>
</compile_context>

<pallas_src>
import functools

import jax
import jax.numpy as jnp
from jax.experimental import pallas as pl
from jax.experimental.pallas import tpu as pltpu


def _round_up(x, m):
    return ((x + m - 1) // m) * m


def _generator_kernel(x_ref, mask_ref, we_ref, be_ref, wb_ref, bb_ref,
                      wh_ref, bh_ref, o_ref, col_ref, act1_ref, act2_ref,
                      *, Wp, BASE, OUT):
    """Fused 3-layer conv generator; whole batch in one grid step.

    Layout: channel-major activations (C, lanes). Images are concatenated on
    the lane axis with a zero gap (>= Wp+1 lanes) between them, so a 3x3
    "same" conv over the whole batch is ONE im2col matmul:
        out(C_out, OUT) = W(C_out, 9*C_in) @ col(9*C_in, OUT)
    where col row-block t is the lane-shifted view src[:, BASE+d_t : +OUT].
    The zero halo/gap columns make the edge taps read zeros, as SAME padding
    requires.
    """
    mask = mask_ref[...]                         # (1, OUT): 1.0 on real pixels
    taps = [(kh - 1) * Wp + (kw - 1) for kh in range(3) for kw in range(3)]

    def conv(src_ref, w_ref, b_ref):
        c_in = src_ref.shape[0]
        # im2col: 9 lane-shifted copies -> one MXU matmul with deep K.
        for t, d in enumerate(taps):             # unrolled at trace time
            col_ref[t * c_in:(t + 1) * c_in, :] = (
                src_ref[:, BASE + d:BASE + d + OUT])
        return jnp.dot(w_ref[...], col_ref[0:9 * c_in, :],
                       preferred_element_type=jnp.float32) + b_ref[...]

    def repad(dst_ref, act):
        # Zero only the two small halo strips (never the whole buffer), then
        # store the masked interior; BASE and OUT are multiples of 128, so the
        # interior store is an unmasked, lane-dense vst.
        c, lanes = dst_ref.shape
        dst_ref[:, 0:BASE] = jnp.zeros((c, BASE), jnp.float32)
        dst_ref[:, BASE + OUT:] = jnp.zeros((c, lanes - BASE - OUT),
                                            jnp.float32)
        dst_ref[:, BASE:BASE + OUT] = act * mask

    # encoder conv (C_in_pad -> HID) + ReLU, stays in VMEM
    h = conv(x_ref, we_ref, be_ref)
    repad(act1_ref, jnp.maximum(h, 0.0))

    # body conv (HID -> HID) + ReLU, stays in VMEM
    h = conv(act1_ref, wb_ref, bb_ref)
    repad(act2_ref, jnp.maximum(h, 0.0))

    # fused heads (HID -> 16): rows 0:8 = bg(3)|rf(3)|pad(2) -> tanh,
    # rows 8:  = semantic logits (raw). Split is on the 8-sublane boundary.
    h = conv(act2_ref, wh_ref, bh_ref)
    o_ref[0:8, :] = jnp.tanh(h[0:8, :]) * mask
    o_ref[8:, :] = h[8:, :] * mask


def _generator_pallas(packed, x_buf, mask, *, Wp, BASE, OUT):
    C_IN, LEN_BUF = x_buf.shape
    HID = packed["w_body"].shape[0]
    C_HEAD = packed["w_head"].shape[0]

    kernel = functools.partial(_generator_kernel, Wp=Wp, BASE=BASE, OUT=OUT)
    full2 = lambda shape: pl.BlockSpec(tuple(shape), lambda i: (0, 0))

    flops = 2 * 9 * OUT * (C_IN * HID + HID * HID + HID * C_HEAD)
    bytes_acc = 4 * (x_buf.size + mask.size
                     + sum(int(v.size) for v in packed.values())
                     + C_HEAD * OUT)

    return pl.pallas_call(
        kernel,
        out_shape=jax.ShapeDtypeStruct((C_HEAD, OUT), jnp.float32),
        grid=(1,),   # whole (tiny) workload in ONE grid step
        in_specs=[
            full2((C_IN, LEN_BUF)),              # packed input, zero halos
            full2((1, OUT)),                     # real-pixel mask
            full2(packed["w_enc"].shape), full2(packed["b_enc"].shape),
            full2(packed["w_body"].shape), full2(packed["b_body"].shape),
            full2(packed["w_head"].shape), full2(packed["b_head"].shape),
        ],
        out_specs=full2((C_HEAD, OUT)),
        scratch_shapes=[
            pltpu.VMEM((9 * HID, OUT), jnp.float32),   # im2col buffer (reused)
            pltpu.VMEM((HID, LEN_BUF), jnp.float32),   # padded enc activation
            pltpu.VMEM((HID, LEN_BUF), jnp.float32),   # padded body activation
        ],
        compiler_params=pltpu.CompilerParams(
            dimension_semantics=("arbitrary",)),
        cost_estimate=pl.CostEstimate(flops=int(flops),
                                      transcendentals=int(8 * OUT),
                                      bytes_accessed=int(bytes_acc)),
    )(x_buf, mask, packed["w_enc"], packed["b_enc"],
      packed["w_body"], packed["b_body"], packed["w_head"], packed["b_head"])


def trainer_forward(packed, x_i, num_classes=8):
    """Trainer.forward: bg, rf, sem = generator(x_i). NCHW in, NCHW out."""
    # TODO(synk): self.eval()/self.train() toggles are no-ops here (this
    # synthetic generator has no dropout / batch-norm running statistics).
    N, C, H, W = x_i.shape
    C_IN_PAD = packed["w_enc"].shape[1] // 9       # encoder channels (padded)
    Wp = W + 2                                     # row stride (2 pad cols/row)
    P = H * Wp                                     # flattened pixels per image
    HALO = _round_up(Wp + 1, 128)                  # 128-aligned zero halo
    S_IMG = _round_up(P + Wp + 1, 128)             # per-image lane stride
    OUT = N * S_IMG                                # lane extent of conv output
    BASE = HALO                                    # interior origin in buffers
    LEN_BUF = BASE + OUT + HALO

    # Input in the kernel's channel-major flat layout (zeros in halos/gaps).
    x_p = jnp.pad(x_i, ((0, 0), (0, C_IN_PAD - C), (0, 0), (0, Wp - W)))
    x_p = jnp.pad(x_p.reshape(N, C_IN_PAD, P),
                  ((0, 0), (0, 0), (0, S_IMG - P)))
    x_cm = jnp.transpose(x_p, (1, 0, 2)).reshape(C_IN_PAD, OUT)
    x_buf = jnp.pad(x_cm, ((0, 0), (BASE, LEN_BUF - BASE - OUT)))

    # 1.0 on real pixel columns, 0.0 on row-pad / inter-image gap columns.
    j = jnp.arange(OUT, dtype=jnp.int32) % S_IMG
    mask = ((j < P) & (j % Wp < W)).astype(jnp.float32).reshape(1, OUT)

    out = _generator_pallas(packed, x_buf, mask, Wp=Wp, BASE=BASE, OUT=OUT)

    # (C_HEAD, N*S_IMG) channel-major -> NCHW, drop pads / gaps / dummy rows.
    out = out.reshape(-1, N, S_IMG)[:, :, :P].reshape(-1, N, H, Wp)[:, :, :, :W]
    out = jnp.transpose(out, (1, 0, 2, 3))
    bg, rf, sem = out[:, 0:3], out[:, 3:6], out[:, 8:8 + num_classes]
    return bg, rf, sem


def init_generator_params(key, c_in=3, hidden=32, num_classes=8):
    """Deterministic synthetic generator weights, HWIO layout (reference)."""
    ks = jax.random.split(key, 10)

    def w(k, ci, co):
        return (0.1 * jax.random.normal(k, (3, 3, ci, co))).astype(jnp.float32)

    def b(k, co):
        return (0.01 * jax.random.normal(k, (co,))).astype(jnp.float32)

    return {
        "enc_w": w(ks[0], c_in, hidden),    "enc_b": b(ks[1], hidden),
        "body_w": w(ks[2], hidden, hidden), "body_b": b(ks[3], hidden),
        "bg_w": w(ks[4], hidden, c_in),     "bg_b": b(ks[5], c_in),
        "rf_w": w(ks[6], hidden, c_in),     "rf_b": b(ks[7], c_in),
        "sem_w": w(ks[8], hidden, num_classes), "sem_b": b(ks[9], num_classes),
    }


def pack_generator_params(p, c_in_pad=8):
    """HWIO params -> kernel layout.

    Weights become (C_out, 9*C_in) matrices (column index = tap*C_in + c_in)
    for the im2col matmul; biases become (C_out, 1). Encoder input channels
    are zero-padded to `c_in_pad` (sublane-aligned im2col writes), and the
    three heads are fused along C_out as [bg(3) | rf(3) | pad(2) | sem(nc) |
    pad-to-8k] so tanh rows end exactly at the 8-sublane boundary.
    """
    def col(w_hwio):
        kh, kw, ci, co = w_hwio.shape
        return jnp.transpose(w_hwio.reshape(kh * kw, ci, co),
                             (2, 0, 1)).reshape(co, kh * kw * ci)

    ci = p["enc_w"].shape[2]
    hid = p["body_w"].shape[3]
    nc = p["sem_w"].shape[3]
    c_head = _round_up(8 + nc, 8)
    tail = c_head - 8 - nc

    enc_w = jnp.pad(p["enc_w"], ((0, 0), (0, 0), (0, c_in_pad - ci), (0, 0)))
    head_w = jnp.concatenate(
        [p["bg_w"], p["rf_w"], jnp.zeros((3, 3, hid, 2), jnp.float32),
         p["sem_w"], jnp.zeros((3, 3, hid, tail), jnp.float32)], axis=-1)
    head_b = jnp.concatenate(
        [p["bg_b"], p["rf_b"], jnp.zeros((2,), jnp.float32),
         p["sem_b"], jnp.zeros((tail,), jnp.float32)], axis=0)

    return {
        "w_enc": col(enc_w),        "b_enc": p["enc_b"].reshape(-1, 1),
        "w_body": col(p["body_w"]), "b_body": p["body_b"].reshape(-1, 1),
        "w_head": col(head_w),      "b_head": head_b.reshape(-1, 1),
    }


def _reference_forward(p, x):
    """Plain-XLA full-precision reference (correctness check only)."""
    def conv(x, w, b):
        y = jax.lax.conv_general_dilated(
            x, w, window_strides=(1, 1), padding="SAME",
            dimension_numbers=("NCHW", "HWIO", "NCHW"),
            precision=jax.lax.Precision.HIGHEST)
        return y + b.reshape(1, -1, 1, 1)

    h = jax.nn.relu(conv(x, p["enc_w"], p["enc_b"]))
    h = jax.nn.relu(conv(h, p["body_w"], p["body_b"]))
    return (jnp.tanh(conv(h, p["bg_w"], p["bg_b"])),
            jnp.tanh(conv(h, p["rf_w"], p["rf_b"])),
            conv(h, p["sem_w"], p["sem_b"]))


if __name__ == "__main__":
    key = jax.random.PRNGKey(0)
    k_param, k_x = jax.random.split(key)

    N, C, H, W = 2, 3, 16, 16
    NUM_CLASSES = 8
    params = init_generator_params(k_param, c_in=C, hidden=32,
                                   num_classes=NUM_CLASSES)
    packed = pack_generator_params(params)
    x_i = jax.random.normal(k_x, (N, C, H, W), dtype=jnp.float32)

    bg, rf, sem = jax.jit(trainer_forward)(packed, x_i)
    jax.block_until_ready((bg, rf, sem))

    assert bg.shape == (N, 3, H, W)
    assert rf.shape == (N, 3, H, W)
    assert sem.shape == (N, NUM_CLASSES, H, W)

    # Numerical check against a full-precision XLA implementation.
    rbg, rrf, rsem = _reference_forward(params, x_i)
    for got, ref in ((bg, rbg), (rf, rrf), (sem, rsem)):
        err = float(jnp.max(jnp.abs(got - ref)))
        assert err < 1e-3, err

    print("KERNEL_OK")
</pallas_src>

<mosaic_0001>
module attributes {stable_mosaic.version = 11 : i64} {
  func.func @_generator_kernel(%arg0: i32, %arg1: memref<8x1024xf32, #tpu.memory_space<vmem>>, %arg2: memref<1x768xf32, #tpu.memory_space<vmem>>, %arg3: memref<32x72xf32, #tpu.memory_space<vmem>>, %arg4: memref<32x1xf32, #tpu.memory_space<vmem>>, %arg5: memref<32x288xf32, #tpu.memory_space<vmem>>, %arg6: memref<32x1xf32, #tpu.memory_space<vmem>>, %arg7: memref<16x288xf32, #tpu.memory_space<vmem>>, %arg8: memref<16x1xf32, #tpu.memory_space<vmem>>, %arg9: memref<16x768xf32, #tpu.memory_space<vmem>>, %arg10: memref<288x768xf32, #tpu.memory_space<vmem>>, %arg11: memref<32x1024xf32, #tpu.memory_space<vmem>>, %arg12: memref<32x1024xf32, #tpu.memory_space<vmem>>) attributes {dimension_semantics = [#tpu.dimension_semantics<arbitrary>], iteration_bounds = array<i64: 1>, scalar_prefetch = 0 : i64, scratch_operands = 3 : i64, tpu.core_type = #tpu.core_type<tc>, window_params = [{pipeline_mode = #tpu.pipeline_mode<synchronous>, transform_indices = @transform_0, window_bounds = array<i64: 8, 1024>}, {pipeline_mode = #tpu.pipeline_mode<synchronous>, transform_indices = @transform_1, window_bounds = array<i64: 1, 768>}, {pipeline_mode = #tpu.pipeline_mode<synchronous>, transform_indices = @transform_2, window_bounds = array<i64: 32, 72>}, {pipeline_mode = #tpu.pipeline_mode<synchronous>, transform_indices = @transform_3, window_bounds = array<i64: 32, 1>}, {pipeline_mode = #tpu.pipeline_mode<synchronous>, transform_indices = @transform_4, window_bounds = array<i64: 32, 288>}, {pipeline_mode = #tpu.pipeline_mode<synchronous>, transform_indices = @transform_5, window_bounds = array<i64: 32, 1>}, {pipeline_mode = #tpu.pipeline_mode<synchronous>, transform_indices = @transform_6, window_bounds = array<i64: 16, 288>}, {pipeline_mode = #tpu.pipeline_mode<synchronous>, transform_indices = @transform_7, window_bounds = array<i64: 16, 1>}, {pipeline_mode = #tpu.pipeline_mode<synchronous>, transform_indices = @transform_8, window_bounds = array<i64: 16, 768>}]} {
    %c0 = arith.constant 0 : index
    %c0_0 = arith.constant 0 : index
    %0 = vector.load %arg2[%c0, %c0_0] : memref<1x768xf32, #tpu.memory_space<vmem>>, vector<1x768xf32>
    %c0_1 = arith.constant 0 : index
    %c109 = arith.constant 109 : index
    %1 = vector.load %arg1[%c0_1, %c109] : memref<8x1024xf32, #tpu.memory_space<vmem>>, vector<8x768xf32>
    %c0_2 = arith.constant 0 : index
    %c0_3 = arith.constant 0 : index
    %2 = vector.load %arg10[%c0_2, %c0_3] : memref<288x768xf32, #tpu.memory_space<vmem>>, vector<8x768xf32>
    tpu.vector_store %arg10[%c0_2, %c0_3], %1 {strides = array<i32>} : memref<288x768xf32, #tpu.memory_space<vmem>>, vector<8x768xf32>,
    %c0_4 = arith.constant 0 : index
    %c110 = arith.constant 110 : index
    %3 = vector.load %arg1[%c0_4, %c110] : memref<8x1024xf32, #tpu.memory_space<vmem>>, vector<8x768xf32>
    %c8 = arith.constant 8 : index
    %c0_5 = arith.constant 0 : index
    %4 = vector.load %arg10[%c8, %c0_5] : memref<288x768xf32, #tpu.memory_space<vmem>>, vector<8x768xf32>
    tpu.vector_store %arg10[%c8, %c0_5], %3 {strides = array<i32>} : memref<288x768xf32, #tpu.memory_space<vmem>>, vector<8x768xf32>,
    %c0_6 = arith.constant 0 : index
    %c111 = arith.constant 111 : index
    %5 = vector.load %arg1[%c0_6, %c111] : memref<8x1024xf32, #tpu.memory_space<vmem>>, vector<8x768xf32>
    %c16 = arith.constant 16 : index
    %c0_7 = arith.constant 0 : index
    %6 = vector.load %arg10[%c16, %c0_7] : memref<288x768xf32, #tpu.memory_space<vmem>>, vector<8x768xf32>
    tpu.vector_store %arg10[%c16, %c0_7], %5 {strides = array<i32>} : memref<288x768xf32, #tpu.memory_space<vmem>>, vector<8x768xf32>,
    %c0_8 = arith.constant 0 : index
    %c127 = arith.constant 127 : index
    %7 = vector.load %arg1[%c0_8, %c127] : memref<8x1024xf32, #tpu.memory_space<vmem>>, vector<8x768xf32>
    %c24 = arith.constant 24 : index
    %c0_9 = arith.constant 0 : index
    %8 = vector.load %arg10[%c24, %c0_9] : memref<288x768xf32, #tpu.memory_space<vmem>>, vector<8x768xf32>
    tpu.vector_store %arg10[%c24, %c0_9], %7 {strides = array<i32>} : memref<288x768xf32, #tpu.memory_space<vmem>>, vector<8x768xf32>,
    %c0_10 = arith.constant 0 : index
    %c128 = arith.constant 128 : index
    %9 = vector.load %arg1[%c0_10, %c128] : memref<8x1024xf32, #tpu.memory_space<vmem>>, vector<8x768xf32>
    %c32 = arith.constant 32 : index
    %c0_11 = arith.constant 0 : index
    %10 = vector.load %arg10[%c32, %c0_11] : memref<288x768xf32, #tpu.memory_space<vmem>>, vector<8x768xf32>
    tpu.vector_store %arg10[%c32, %c0_11], %9 {strides = array<i32>} : memref<288x768xf32, #tpu.memory_space<vmem>>, vector<8x768xf32>,
    %c0_12 = arith.constant 0 : index
    %c129 = arith.constant 129 : index
    %11 = vector.load %arg1[%c0_12, %c129] : memref<8x1024xf32, #tpu.memory_space<vmem>>, vector<8x768xf32>
    %c40 = arith.constant 40 : index
    %c0_13 = arith.constant 0 : index
    %12 = vector.load %arg10[%c40, %c0_13] : memref<288x768xf32, #tpu.memory_space<vmem>>, vector<8x768xf32>
    tpu.vector_store %arg10[%c40, %c0_13], %11 {strides = array<i32>} : memref<288x768xf32, #tpu.memory_space<vmem>>, vector<8x768xf32>,
    %c0_14 = arith.constant 0 : index
    %c145 = arith.constant 145 : index
    %13 = vector.load %arg1[%c0_14, %c145] : memref<8x1024xf32, #tpu.memory_space<vmem>>, vector<8x768xf32>
    %c48 = arith.constant 48 : index
    %c0_15 = arith.constant 0 : index
    %14 = vector.load %arg10[%c48, %c0_15] : memref<288x768xf32, #tpu.memory_space<vmem>>, vector<8x768xf32>
    tpu.vector_store %arg10[%c48, %c0_15], %13 {strides = array<i32>} : memref<288x768xf32, #tpu.memory_space<vmem>>, vector<8x768xf32>,
    %c0_16 = arith.constant 0 : index
    %c146 = arith.constant 146 : index
    %15 = vector.load %arg1[%c0_16, %c146] : memref<8x1024xf32, #tpu.memory_space<vmem>>, vector<8x768xf32>
    %c56 = arith.constant 56 : index
    %c0_17 = arith.constant 0 : index
    %16 = vector.load %arg10[%c56, %c0_17] : memref<288x768xf32, #tpu.memory_space<vmem>>, vector<8x768xf32>
    tpu.vector_store %arg10[%c56, %c0_17], %15 {strides = array<i32>} : memref<288x768xf32, #tpu.memory_space<vmem>>, vector<8x768xf32>,
    %c0_18 = arith.constant 0 : index
    %c147 = arith.constant 147 : index
    %17 = vector.load %arg1[%c0_18, %c147] : memref<8x1024xf32, #tpu.memory_space<vmem>>, vector<8x768xf32>
    %c64 = arith.constant 64 : index
    %c0_19 = arith.constant 0 : index
    %18 = vector.load %arg10[%c64, %c0_19] : memref<288x768xf32, #tpu.memory_space<vmem>>, vector<8x768xf32>
    tpu.vector_store %arg10[%c64, %c0_19], %17 {strides = array<i32>} : memref<288x768xf32, #tpu.memory_space<vmem>>, vector<8x768xf32>,
    %c0_20 = arith.constant 0 : index
    %c0_21 = arith.constant 0 : index
    %19 = vector.load %arg3[%c0_20, %c0_21] : memref<32x72xf32, #tpu.memory_space<vmem>>, vector<32x72xf32>
    %c0_22 = arith.constant 0 : index
    %c0_23 = arith.constant 0 : index
    %20 = vector.load %arg10[%c0_22, %c0_23] : memref<288x768xf32, #tpu.memory_space<vmem>>, vector<72x768xf32>
    %cst = arith.constant dense<0.000000e+00> : vector<32x768xf32>
    %21 = tpu.matmul %19, %20, %cst {dimension_numbers = #tpu.dot_dimension_numbers<[1], [0], [0], [1], [0, 0, 1, 1], [], []>} : vector<32x72xf32>, vector<72x768xf32>, vector<32x768xf32> -> vector<32x768xf32>
    %c0_24 = arith.constant 0 : index
    %c0_25 = arith.constant 0 : index
    %22 = vector.load %arg4[%c0_24, %c0_25] : memref<32x1xf32, #tpu.memory_space<vmem>>, vector<32x1xf32>
    %23 = vector.broadcast %22 : vector<32x1xf32> to vector<32x768xf32>
    %24 = arith.addf %21, %23 : vector<32x768xf32>
    %cst_26 = arith.constant 0.000000e+00 : f32
    %25 = vector.broadcast %cst_26 : f32 to vector<32x768xf32>
    %26 = arith.maximumf %24, %25 : vector<32x768xf32>
    %cst_27 = arith.constant 0.000000e+00 : f32
    %27 = vector.broadcast %cst_27 : f32 to vector<32x128xf32>
    %c0_28 = arith.constant 0 : index
    %c0_29 = arith.constant 0 : index
    %28 = vector.load %arg11[%c0_28, %c0_29] : memref<32x1024xf32, #tpu.memory_space<vmem>>, vector<32x128xf32>
    tpu.vector_store %arg11[%c0_28, %c0_29], %27 {strides = array<i32>} : memref<32x1024xf32, #tpu.memory_space<vmem>>, vector<32x128xf32>,
    %cst_30 = arith.constant 0.000000e+00 : f32
    %29 = vector.broadcast %cst_30 : f32 to vector<32x128xf32>
    %c0_31 = arith.constant 0 : index
    %c896 = arith.constant 896 : index
    %30 = vector.load %arg11[%c0_31, %c896] : memref<32x1024xf32, #tpu.memory_space<vmem>>, vector<32x128xf32>
    tpu.vector_store %arg11[%c0_31, %c896], %29 {strides = array<i32>} : memref<32x1024xf32, #tpu.memory_space<vmem>>, vector<32x128xf32>,
    %31 = vector.broadcast %0 : vector<1x768xf32> to vector<32x768xf32>
    %32 = arith.mulf %26, %31 : vector<32x768xf32>
    %c0_32 = arith.constant 0 : index
    %c128_33 = arith.constant 128 : index
    %33 = vector.load %arg11[%c0_32, %c128_33] : memref<32x1024xf32, #tpu.memory_space<vmem>>, vector<32x768xf32>
    tpu.vector_store %arg11[%c0_32, %c128_33], %32 {strides = array<i32>} : memref<32x1024xf32, #tpu.memory_space<vmem>>, vector<32x768xf32>,
    %c0_34 = arith.constant 0 : index
    %c109_35 = arith.constant 109 : index
    %34 = vector.load %arg11[%c0_34, %c109_35] : memref<32x1024xf32, #tpu.memory_space<vmem>>, vector<32x768xf32>
    %c0_36 = arith.constant 0 : index
    %c0_37 = arith.constant 0 : index
    %35 = vector.load %arg10[%c0_36, %c0_37] : memref<288x768xf32, #tpu.memory_space<vmem>>, vector<32x768xf32>
    tpu.vector_store %arg10[%c0_36, %c0_37], %34 {strides = array<i32>} : memref<288x768xf32, #tpu.memory_space<vmem>>, vector<32x768xf32>,
    %c0_38 = arith.constant 0 : index
    %c110_39 = arith.constant 110 : index
    %36 = vector.load %arg11[%c0_38, %c110_39] : memref<32x1024xf32, #tpu.memory_space<vmem>>, vector<32x768xf32>
    %c32_40 = arith.constant 32 : index
    %c0_41 = arith.constant 0 : index
    %37 = vector.load %arg10[%c32_40, %c0_41] : memref<288x768xf32, #tpu.memory_space<vmem>>, vector<32x768xf32>
    tpu.vector_store %arg10[%c32_40, %c0_41], %36 {strides = array<i32>} : memref<288x768xf32, #tpu.memory_space<vmem>>, vector<32x768xf32>,
    %c0_42 = arith.constant 0 : index
    %c111_43 = arith.constant 111 : index
    %38 = vector.load %arg11[%c0_42, %c111_43] : memref<32x1024xf32, #tpu.memory_space<vmem>>, vector<32x768xf32>
    %c64_44 = arith.constant 64 : index
    %c0_45 = arith.constant 0 : index
    %39 = vector.load %arg10[%c64_44, %c0_45] : memref<288x768xf32, #tpu.memory_space<vmem>>, vector<32x768xf32>
    tpu.vector_store %arg10[%c64_44, %c0_45], %38 {strides = array<i32>} : memref<288x768xf32, #tpu.memory_space<vmem>>, vector<32x768xf32>,
    %c0_46 = arith.constant 0 : index
    %c127_47 = arith.constant 127 : index
    %40 = vector.load %arg11[%c0_46, %c127_47] : memref<32x1024xf32, #tpu.memory_space<vmem>>, vector<32x768xf32>
    %c96 = arith.constant 96 : index
    %c0_48 = arith.constant 0 : index
    %41 = vector.load %arg10[%c96, %c0_48] : memref<288x768xf32, #tpu.memory_space<vmem>>, vector<32x768xf32>
    tpu.vector_store %arg10[%c96, %c0_48], %40 {strides = array<i32>} : memref<288x768xf32, #tpu.memory_space<vmem>>, vector<32x768xf32>,
    %c0_49 = arith.constant 0 : index
    %c128_50 = arith.constant 128 : index
    %42 = vector.load %arg11[%c0_49, %c128_50] : memref<32x1024xf32, #tpu.memory_space<vmem>>, vector<32x768xf32>
    %c128_51 = arith.constant 128 : index
    %c0_52 = arith.constant 0 : index
    %43 = vector.load %arg10[%c128_51, %c0_52] : memref<288x768xf32, #tpu.memory_space<vmem>>, vector<32x768xf32>
    tpu.vector_store %arg10[%c128_51, %c0_52], %42 {strides = array<i32>} : memref<288x768xf32, #tpu.memory_space<vmem>>, vector<32x768xf32>,
    %c0_53 = arith.constant 0 : index
    %c129_54 = arith.constant 129 : index
    %44 = vector.load %arg11[%c0_53, %c129_54] : memref<32x1024xf32, #tpu.memory_space<vmem>>, vector<32x768xf32>
    %c160 = arith.constant 160 : index
    %c0_55 = arith.constant 0 : index
    %45 = vector.load %arg10[%c160, %c0_55] : memref<288x768xf32, #tpu.memory_space<vmem>>, vector<32x768xf32>
    tpu.vector_store %arg10[%c160, %c0_55], %44 {strides = array<i32>} : memref<288x768xf32, #tpu.memory_space<vmem>>, vector<32x768xf32>,
    %c0_56 = arith.constant 0 : index
    %c145_57 = arith.constant 145 : index
    %46 = vector.load %arg11[%c0_56, %c145_57] : memref<32x1024xf32, #tpu.memory_space<vmem>>, vector<32x768xf32>
    %c192 = arith.constant 192 : index
    %c0_58 = arith.constant 0 : index
    %47 = vector.load %arg10[%c192, %c0_58] : memref<288x768xf32, #tpu.memory_space<vmem>>, vector<32x768xf32>
    tpu.vector_store %arg10[%c192, %c0_58], %46 {strides = array<i32>} : memref<288x768xf32, #tpu.memory_space<vmem>>, vector<32x768xf32>,
    %c0_59 = arith.constant 0 : index
    %c146_60 = arith.constant 146 : index
    %48 = vector.load %arg11[%c0_59, %c146_60] : memref<32x1024xf32, #tpu.memory_space<vmem>>, vector<32x768xf32>
    %c224 = arith.constant 224 : index
    %c0_61 = arith.constant 0 : index
    %49 = vector.load %arg10[%c224, %c0_61] : memref<288x768xf32, #tpu.memory_space<vmem>>, vector<32x768xf32>
    tpu.vector_store %arg10[%c224, %c0_61], %48 {strides = array<i32>} : memref<288x768xf32, #tpu.memory_space<vmem>>, vector<32x768xf32>,
    %c0_62 = arith.constant 0 : index
    %c147_63 = arith.constant 147 : index
    %50 = vector.load %arg11[%c0_62, %c147_63] : memref<32x1024xf32, #tpu.memory_space<vmem>>, vector<32x768xf32>
    %c256 = arith.constant 256 : index
    %c0_64 = arith.constant 0 : index
    %51 = vector.load %arg10[%c256, %c0_64] : memref<288x768xf32, #tpu.memory_space<vmem>>, vector<32x768xf32>
    tpu.vector_store %arg10[%c256, %c0_64], %50 {strides = array<i32>} : memref<288x768xf32, #tpu.memory_space<vmem>>, vector<32x768xf32>,
    %c0_65 = arith.constant 0 : index
    %c0_66 = arith.constant 0 : index
    %52 = vector.load %arg5[%c0_65, %c0_66] : memref<32x288xf32, #tpu.memory_space<vmem>>, vector<32x288xf32>
    %c0_67 = arith.constant 0 : index
    %c0_68 = arith.constant 0 : index
    %53 = vector.load %arg10[%c0_67, %c0_68] : memref<288x768xf32, #tpu.memory_space<vmem>>, vector<288x768xf32>
    %cst_69 = arith.constant dense<0.000000e+00> : vector<32x768xf32>
    %54 = tpu.matmul %52, %53, %cst_69 {dimension_numbers = #tpu.dot_dimension_numbers<[1], [0], [0], [1], [0, 0, 1, 1], [], []>} : vector<32x288xf32>, vector<288x768xf32>, vector<32x768xf32> -> vector<32x768xf32>
    %c0_70 = arith.constant 0 : index
    %c0_71 = arith.constant 0 : index
    %55 = vector.load %arg6[%c0_70, %c0_71] : memref<32x1xf32, #tpu.memory_space<vmem>>, vector<32x1xf32>
    %56 = vector.broadcast %55 : vector<32x1xf32> to vector<32x768xf32>
    %57 = arith.addf %54, %56 : vector<32x768xf32>
    %cst_72 = arith.constant 0.000000e+00 : f32
    %58 = vector.broadcast %cst_72 : f32 to vector<32x768xf32>
    %59 = arith.maximumf %57, %58 : vector<32x768xf32>
    %cst_73 = arith.constant 0.000000e+00 : f32
    %60 = vector.broadcast %cst_73 : f32 to vector<32x128xf32>
    %c0_74 = arith.constant 0 : index
    %c0_75 = arith.constant 0 : index
    %61 = vector.load %arg12[%c0_74, %c0_75] : memref<32x1024xf32, #tpu.memory_space<vmem>>, vector<32x128xf32>
    tpu.vector_store %arg12[%c0_74, %c0_75], %60 {strides = array<i32>} : memref<32x1024xf32, #tpu.memory_space<vmem>>, vector<32x128xf32>,
    %cst_76 = arith.constant 0.000000e+00 : f32
    %62 = vector.broadcast %cst_76 : f32 to vector<32x128xf32>
    %c0_77 = arith.constant 0 : index
    %c896_78 = arith.constant 896 : index
    %63 = vector.load %arg12[%c0_77, %c896_78] : memref<32x1024xf32, #tpu.memory_space<vmem>>, vector<32x128xf32>
    tpu.vector_store %arg12[%c0_77, %c896_78], %62 {strides = array<i32>} : memref<32x1024xf32, #tpu.memory_space<vmem>>, vector<32x128xf32>,
    %64 = vector.broadcast %0 : vector<1x768xf32> to vector<32x768xf32>
    %65 = arith.mulf %59, %64 : vector<32x768xf32>
    %c0_79 = arith.constant 0 : index
    %c128_80 = arith.constant 128 : index
    %66 = vector.load %arg12[%c0_79, %c128_80] : memref<32x1024xf32, #tpu.memory_space<vmem>>, vector<32x768xf32>
    tpu.vector_store %arg12[%c0_79, %c128_80], %65 {strides = array<i32>} : memref<32x1024xf32, #tpu.memory_space<vmem>>, vector<32x768xf32>,
    %c0_81 = arith.constant 0 : index
    %c109_82 = arith.constant 109 : index
    %67 = vector.load %arg12[%c0_81, %c109_82] : memref<32x1024xf32, #tpu.memory_space<vmem>>, vector<32x768xf32>
    %c0_83 = arith.constant 0 : index
    %c0_84 = arith.constant 0 : index
    %68 = vector.load %arg10[%c0_83, %c0_84] : memref<288x768xf32, #tpu.memory_space<vmem>>, vector<32x768xf32>
    tpu.vector_store %arg10[%c0_83, %c0_84], %67 {strides = array<i32>} : memref<288x768xf32, #tpu.memory_space<vmem>>, vector<32x768xf32>,
    %c0_85 = arith.constant 0 : index
    %c110_86 = arith.constant 110 : index
    %69 = vector.load %arg12[%c0_85, %c110_86] : memref<32x1024xf32, #tpu.memory_space<vmem>>, vector<32x768xf32>
    %c32_87 = arith.constant 32 : index
    %c0_88 = arith.constant 0 : index
    %70 = vector.load %arg10[%c32_87, %c0_88] : memref<288x768xf32, #tpu.memory_space<vmem>>, vector<32x768xf32>
    tpu.vector_store %arg10[%c32_87, %c0_88], %69 {strides = array<i32>} : memref<288x768xf32, #tpu.memory_space<vmem>>, vector<32x768xf32>,
    %c0_89 = arith.constant 0 : index
    %c111_90 = arith.constant 111 : index
    %71 = vector.load %arg12[%c0_89, %c111_90] : memref<32x1024xf32, #tpu.memory_space<vmem>>, vector<32x768xf32>
    %c64_91 = arith.constant 64 : index
    %c0_92 = arith.constant 0 : index
    %72 = vector.load %arg10[%c64_91, %c0_92] : memref<288x768xf32, #tpu.memory_space<vmem>>, vector<32x768xf32>
    tpu.vector_store %arg10[%c64_91, %c0_92], %71 {strides = array<i32>} : memref<288x768xf32, #tpu.memory_space<vmem>>, vector<32x768xf32>,
    %c0_93 = arith.constant 0 : index
    %c127_94 = arith.constant 127 : index
    %73 = vector.load %arg12[%c0_93, %c127_94] : memref<32x1024xf32, #tpu.memory_space<vmem>>, vector<32x768xf32>
    %c96_95 = arith.constant 96 : index
    %c0_96 = arith.constant 0 : index
    %74 = vector.load %arg10[%c96_95, %c0_96] : memref<288x768xf32, #tpu.memory_space<vmem>>, vector<32x768xf32>
    tpu.vector_store %arg10[%c96_95, %c0_96], %73 {strides = array<i32>} : memref<288x768xf32, #tpu.memory_space<vmem>>, vector<32x768xf32>,
    %c0_97 = arith.constant 0 : index
    %c128_98 = arith.constant 128 : index
    %75 = vector.load %arg12[%c0_97, %c128_98] : memref<32x1024xf32, #tpu.memory_space<vmem>>, vector<32x768xf32>
    %c128_99 = arith.constant 128 : index
    %c0_100 = arith.constant 0 : index
    %76 = vector.load %arg10[%c128_99, %c0_100] : memref<288x768xf32, #tpu.memory_space<vmem>>, vector<32x768xf32>
    tpu.vector_store %arg10[%c128_99, %c0_100], %75 {strides = array<i32>} : memref<288x768xf32, #tpu.memory_space<vmem>>, vector<32x768xf32>,
    %c0_101 = arith.constant 0 : index
    %c129_102 = arith.constant 129 : index
    %77 = vector.load %arg12[%c0_101, %c129_102] : memref<32x1024xf32, #tpu.memory_space<vmem>>, vector<32x768xf32>
    %c160_103 = arith.constant 160 : index
    %c0_104 = arith.constant 0 : index
    %78 = vector.load %arg10[%c160_103, %c0_104] : memref<288x768xf32, #tpu.memory_space<vmem>>, vector<32x768xf32>
    tpu.vector_store %arg10[%c160_103, %c0_104], %77 {strides = array<i32>} : memref<288x768xf32, #tpu.memory_space<vmem>>, vector<32x768xf32>,
    %c0_105 = arith.constant 0 : index
    %c145_106 = arith.constant 145 : index
    %79 = vector.load %arg12[%c0_105, %c145_106] : memref<32x1024xf32, #tpu.memory_space<vmem>>, vector<32x768xf32>
    %c192_107 = arith.constant 192 : index
    %c0_108 = arith.constant 0 : index
    %80 = vector.load %arg10[%c192_107, %c0_108] : memref<288x768xf32, #tpu.memory_space<vmem>>, vector<32x768xf32>
    tpu.vector_store %arg10[%c192_107, %c0_108], %79 {strides = array<i32>} : memref<288x768xf32, #tpu.memory_space<vmem>>, vector<32x768xf32>,
    %c0_109 = arith.constant 0 : index
    %c146_110 = arith.constant 146 : index
    %81 = vector.load %arg12[%c0_109, %c146_110] : memref<32x1024xf32, #tpu.memory_space<vmem>>, vector<32x768xf32>
    %c224_111 = arith.constant 224 : index
    %c0_112 = arith.constant 0 : index
    %82 = vector.load %arg10[%c224_111, %c0_112] : memref<288x768xf32, #tpu.memory_space<vmem>>, vector<32x768xf32>
    tpu.vector_store %arg10[%c224_111, %c0_112], %81 {strides = array<i32>} : memref<288x768xf32, #tpu.memory_space<vmem>>, vector<32x768xf32>,
    %c0_113 = arith.constant 0 : index
    %c147_114 = arith.constant 147 : index
    %83 = vector.load %arg12[%c0_113, %c147_114] : memref<32x1024xf32, #tpu.memory_space<vmem>>, vector<32x768xf32>
    %c256_115 = arith.constant 256 : index
    %c0_116 = arith.constant 0 : index
    %84 = vector.load %arg10[%c256_115, %c0_116] : memref<288x768xf32, #tpu.memory_space<vmem>>, vector<32x768xf32>
    tpu.vector_store %arg10[%c256_115, %c0_116], %83 {strides = array<i32>} : memref<288x768xf32, #tpu.memory_space<vmem>>, vector<32x768xf32>,
    %c0_117 = arith.constant 0 : index
    %c0_118 = arith.constant 0 : index
    %85 = vector.load %arg7[%c0_117, %c0_118] : memref<16x288xf32, #tpu.memory_space<vmem>>, vector<16x288xf32>
    %c0_119 = arith.constant 0 : index
    %c0_120 = arith.constant 0 : index
    %86 = vector.load %arg10[%c0_119, %c0_120] : memref<288x768xf32, #tpu.memory_space<vmem>>, vector<288x768xf32>
    %cst_121 = arith.constant dense<0.000000e+00> : vector<16x768xf32>
    %87 = tpu.matmul %85, %86, %cst_121 {dimension_numbers = #tpu.dot_dimension_numbers<[1], [0], [0], [1], [0, 0, 1, 1], [], []>} : vector<16x288xf32>, vector<288x768xf32>, vector<16x768xf32> -> vector<16x768xf32>
    %c0_122 = arith.constant 0 : index
    %c0_123 = arith.constant 0 : index
    %88 = vector.load %arg8[%c0_122, %c0_123] : memref<16x1xf32, #tpu.memory_space<vmem>>, vector<16x1xf32>
    %89 = vector.broadcast %88 : vector<16x1xf32> to vector<16x768xf32>
    %90 = arith.addf %87, %89 : vector<16x768xf32>
    %91 = vector.extract_strided_slice %90 {offsets = [0, 0], sizes = [8, 768], strides = [1, 1]} : vector<16x768xf32> to vector<8x768xf32>
    %92 = math.tanh %91 : vector<8x768xf32>
    %93 = vector.broadcast %0 : vector<1x768xf32> to vector<8x768xf32>
    %94 = arith.mulf %92, %93 : vector<8x768xf32>
    %c0_124 = arith.constant 0 : index
    %c0_125 = arith.constant 0 : index
    %95 = vector.load %arg9[%c0_124, %c0_125] : memref<16x768xf32, #tpu.memory_space<vmem>>, vector<8x768xf32>
    tpu.vector_store %arg9[%c0_124, %c0_125], %94 {strides = array<i32>} : memref<16x768xf32, #tpu.memory_space<vmem>>, vector<8x768xf32>,
    %96 = vector.extract_strided_slice %90 {offsets = [8, 0], sizes = [8, 768], strides = [1, 1]} : vector<16x768xf32> to vector<8x768xf32>
    %97 = vector.broadcast %0 : vector<1x768xf32> to vector<8x768xf32>
    %98 = arith.mulf %96, %97 : vector<8x768xf32>
    %c8_126 = arith.constant 8 : index
    %c0_127 = arith.constant 0 : index
    %99 = vector.load %arg9[%c8_126, %c0_127] : memref<16x768xf32, #tpu.memory_space<vmem>>, vector<8x768xf32>
    tpu.vector_store %arg9[%c8_126, %c0_127], %98 {strides = array<i32>} : memref<16x768xf32, #tpu.memory_space<vmem>>, vector<8x768xf32>,
    return
  }
  func.func @transform_0(%arg0: i32) -> (i32, i32) {
    %c0_i32 = arith.constant 0 : i32
    %c0_i32_0 = arith.constant 0 : i32
    %c0_i32_1 = arith.constant 0 : i32
    return %c0_i32, %c0_i32_0 : i32, i32
  }
  func.func @transform_1(%arg0: i32) -> (i32, i32) {
    %c0_i32 = arith.constant 0 : i32
    %c0_i32_0 = arith.constant 0 : i32
    %c0_i32_1 = arith.constant 0 : i32
    return %c0_i32, %c0_i32_0 : i32, i32
  }
  func.func @transform_2(%arg0: i32) -> (i32, i32) {
    %c0_i32 = arith.constant 0 : i32
    %c0_i32_0 = arith.constant 0 : i32
    %c0_i32_1 = arith.constant 0 : i32
    return %c0_i32, %c0_i32_0 : i32, i32
  }
  func.func @transform_3(%arg0: i32) -> (i32, i32) {
    %c0_i32 = arith.constant 0 : i32
    %c0_i32_0 = arith.constant 0 : i32
    %c0_i32_1 = arith.constant 0 : i32
    return %c0_i32, %c0_i32_0 : i32, i32
  }
  func.func @transform_4(%arg0: i32) -> (i32, i32) {
    %c0_i32 = arith.constant 0 : i32
    %c0_i32_0 = arith.constant 0 : i32
    %c0_i32_1 = arith.constant 0 : i32
    return %c0_i32, %c0_i32_0 : i32, i32
  }
  func.func @transform_5(%arg0: i32) -> (i32, i32) {
    %c0_i32 = arith.constant 0 : i32
    %c0_i32_0 = arith.constant 0 : i32
    %c0_i32_1 = arith.constant 0 : i32
    return %c0_i32, %c0_i32_0 : i32, i32
  }
  func.func @transform_6(%arg0: i32) -> (i32, i32) {
    %c0_i32 = arith.constant 0 : i32
    %c0_i32_0 = arith.constant 0 : i32
    %c0_i32_1 = arith.constant 0 : i32
    return %c0_i32, %c0_i32_0 : i32, i32
  }
  func.func @transform_7(%arg0: i32) -> (i32, i32) {
    %c0_i32 = arith.constant 0 : i32
    %c0_i32_0 = arith.constant 0 : i32
    %c0_i32_1 = arith.constant 0 : i32
    return %c0_i32, %c0_i32_0 : i32, i32
  }
  func.func @transform_8(%arg0: i32) -> (i32, i32) {
    %c0_i32 = arith.constant 0 : i32
    %c0_i32_0 = arith.constant 0 : i32
    %c0_i32_1 = arith.constant 0 : i32
    return %c0_i32, %c0_i32_0 : i32, i32
  }
}

</mosaic_0001>

<llo_original>
// kernel: trainer_forward.1
$region0: #{trainer_forward.1}
  #allocation0 [shape = 'u32[]', space=smem, size = 0x4, offset = 0x4, fixed_abs, tag = 'smem constant byte address 0x4 - core index']
  #allocation1 [shape = 'u32[144,128]{1,0:T(1,128)}', space=vmem, size = 0x12000, scoped, tag = 'internal scratch']
  #allocation2 [shape = 'f32[288,768]{1,0:T(8,128)}', space=vmem, size = 0xd8000, scoped, tag = 'scratch operand']
  #allocation3 [shape = 'f32[32,1024]{1,0:T(8,128)}', space=vmem, size = 0x20000, scoped, tag = 'scratch operand']
  #allocation4 [shape = 'f32[32,1024]{1,0:T(8,128)}', space=vmem, size = 0x20000, scoped, tag = 'scratch operand']
  %s0 = inlined_call_operand.vmem [shape: f32[8,1024], index: 0, kind: input, shape index: {}]
  %s1 = inlined_call_operand.vmem [shape: f32[1,768], index: 1, kind: input, shape index: {}]
  %s2 = inlined_call_operand.vmem [shape: f32[32,72], index: 2, kind: input, shape index: {}]
  %s3 = inlined_call_operand.vmem [shape: f32[32,1], index: 3, kind: input, shape index: {}]
  %s4 = inlined_call_operand.vmem [shape: f32[32,288], index: 4, kind: input, shape index: {}]
  %s5 = inlined_call_operand.vmem [shape: f32[32,1], index: 5, kind: input, shape index: {}]
  %s6 = inlined_call_operand.vmem [shape: f32[16,288], index: 6, kind: input, shape index: {}]
  %s7 = inlined_call_operand.vmem [shape: f32[16,1], index: 7, kind: input, shape index: {}]
  %s8 = inlined_call_operand.vmem [shape: f32[16,768], index: 8, kind: output, shape index: {}]
  %s9 = sld [smem:[#allocation0]]
  $region42: #{trainer_forward.1} parent=0
    _
  %s11 = ssub.s32 1, %s9
  %s12 = scalar_select 0, %s11, %s9
  // Predicated region
  $region2: #{trainer_forward.1} parent=0 // pred_check
    _
  $region3: #{trainer_forward.1} parent=0 // pred_check_branch
    %14 = sbr.rel (0) target = $region5
  $region4: #{trainer_forward.1} parent=0 // pred_region
    _
  $region5: #{trainer_forward.1} parent=0 // pred_fallthru
    _
  // Predicated region
  $region6: #{trainer_forward.1} parent=0 // pred_check
    _
  $region7: #{trainer_forward.1} parent=0 // pred_check_branch
    %16 = sbr.rel (0) target = $region9
  $region8: #{trainer_forward.1} parent=0 // pred_region
    _
  $region9: #{trainer_forward.1} parent=0 // pred_fallthru
    _
  // Predicated region
  $region10: #{trainer_forward.1} parent=0 // pred_check
    _
  $region11: #{trainer_forward.1} parent=0 // pred_check_branch
    %18 = sbr.rel (0) target = $region13
  $region12: #{trainer_forward.1} parent=0 // pred_region
    _
  $region13: #{trainer_forward.1} parent=0 // pred_fallthru
    _
  // Predicated region
  $region14: #{trainer_forward.1} parent=0 // pred_check
    _
  $region15: #{trainer_forward.1} parent=0 // pred_check_branch
    %20 = sbr.rel (0) target = $region17
  $region16: #{trainer_forward.1} parent=0 // pred_region
    _
  $region17: #{trainer_forward.1} parent=0 // pred_fallthru
    _
  // Predicated region
  $region18: #{trainer_forward.1} parent=0 // pred_check
    _
  $region19: #{trainer_forward.1} parent=0 // pred_check_branch
    %22 = sbr.rel (0) target = $region21
  $region20: #{trainer_forward.1} parent=0 // pred_region
    _
  $region21: #{trainer_forward.1} parent=0 // pred_fallthru
    _
  // Predicated region
  $region22: #{trainer_forward.1} parent=0 // pred_check
    _
  $region23: #{trainer_forward.1} parent=0 // pred_check_branch
    %24 = sbr.rel (0) target = $region25
  $region24: #{trainer_forward.1} parent=0 // pred_region
    _
  $region25: #{trainer_forward.1} parent=0 // pred_fallthru
    _
  // Predicated region
  $region26: #{trainer_forward.1} parent=0 // pred_check
    _
  $region27: #{trainer_forward.1} parent=0 // pred_check_branch
    %26 = sbr.rel (0) target = $region29
  $region28: #{trainer_forward.1} parent=0 // pred_region
    _
  $region29: #{trainer_forward.1} parent=0 // pred_fallthru
    _
  // Predicated region
  $region30: #{trainer_forward.1} parent=0 // pred_check
    _
  $region31: #{trainer_forward.1} parent=0 // pred_check_branch
    %28 = sbr.rel (0) target = $region33
  $region32: #{trainer_forward.1} parent=0 // pred_region
    _
  $region33: #{trainer_forward.1} parent=0 // pred_fallthru
    _
  %v29 = vld [vmem:[%s1] sm:$0x3f]
  %v30 = vld [vmem:[%s0] sm:$0xff]
  %v31 = vld [vmem:[%s0 + $0x8] sm:$0xff]
  %v32 = vld [vmem:[%s0 + $0x10] sm:$0xff]
  %v33 = vld [vmem:[%s0 + $0x18] sm:$0xff]
  %v34 = vld [vmem:[%s0 + $0x20] sm:$0xff]
  %v35 = vld [vmem:[%s0 + $0x28] sm:$0xff]
  %v36 = vld [vmem:[%s0 + $0x30] sm:$0xff]
  %44 = vrot.lane.b32.xlu0 %v30, 19
  %v45 = vpop.permute.xlu0 %44
  %46 = vrot.lane.b32.xlu0 %v31, 19
  %v47 = vpop.permute.xlu0 %46
  %48 = vrot.lane.b32.xlu0 %v32, 19
  %v49 = vpop.permute.xlu0 %48
  %50 = vrot.lane.b32.xlu0 %v33, 19
  %v51 = vpop.permute.xlu0 %50
  %52 = vrot.lane.b32.xlu0 %v34, 19
  %v53 = vpop.permute.xlu0 %52
  %54 = vrot.lane.b32.xlu0 %v35, 19
  %v55 = vpop.permute.xlu0 %54
  %56 = vrot.lane.b32.xlu0 %v36, 19
  %v57 = vpop.permute.xlu0 %56
  %vm58 = vcmask 154624
  %v59 = vsel %vm58, %v45, %v47
  %v60 = vsel %vm58, %v47, %v49
  %v61 = vsel %vm58, %v49, %v51
  %v62 = vsel %vm58, %v51, %v53
  %v63 = vsel %vm58, %v53, %v55
  %v64 = vsel %vm58, %v55, %v57
  %71 = vst [vmem:[#allocation2] sm:$0xff] %v59
  %72 = vst [vmem:[#allocation2 + $0x8] sm:$0xff] %v60
  %73 = vst [vmem:[#allocation2 + $0x10] sm:$0xff] %v61
  %74 = vst [vmem:[#allocation2 + $0x18] sm:$0xff] %v62
  %75 = vst [vmem:[#allocation2 + $0x20] sm:$0xff] %v63
  %76 = vst [vmem:[#allocation2 + $0x28] sm:$0xff] %v64
  %v77 = vld [vmem:[%s0] sm:$0xff]
  %v78 = vld [vmem:[%s0 + $0x8] sm:$0xff]
  %v79 = vld [vmem:[%s0 + $0x10] sm:$0xff]
  %v80 = vld [vmem:[%s0 + $0x18] sm:$0xff]
  %v81 = vld [vmem:[%s0 + $0x20] sm:$0xff]
  %v82 = vld [vmem:[%s0 + $0x28] sm:$0xff]
  %v83 = vld [vmem:[%s0 + $0x30] sm:$0xff]
  %91 = vrot.lane.b32.xlu0 %v77, 18
  %v92 = vpop.permute.xlu0 %91
  %93 = vrot.lane.b32.xlu0 %v78, 18
  %v94 = vpop.permute.xlu0 %93
  %95 = vrot.lane.b32.xlu0 %v79, 18
  %v96 = vpop.permute.xlu0 %95
  %97 = vrot.lane.b32.xlu0 %v80, 18
  %v98 = vpop.permute.xlu0 %97
  %99 = vrot.lane.b32.xlu0 %v81, 18
  %v100 = vpop.permute.xlu0 %99
  %101 = vrot.lane.b32.xlu0 %v82, 18
  %v102 = vpop.permute.xlu0 %101
  %103 = vrot.lane.b32.xlu0 %v83, 18
  %v104 = vpop.permute.xlu0 %103
  %vm105 = vcmask 146432
  %v106 = vsel %vm105, %v92, %v94
  %v107 = vsel %vm105, %v94, %v96
  %v108 = vsel %vm105, %v96, %v98
  %v109 = vsel %vm105, %v98, %v100
  %v110 = vsel %vm105, %v100, %v102
  %v111 = vsel %vm105, %v102, %v104
  %118 = vst [vmem:[#allocation2 + $0x30] sm:$0xff] %v106
  %119 = vst [vmem:[#allocation2 + $0x38] sm:$0xff] %v107
  %120 = vst [vmem:[#allocation2 + $0x40] sm:$0xff] %v108
  %121 = vst [vmem:[#allocation2 + $0x48] sm:$0xff] %v109
  %122 = vst [vmem:[#allocation2 + $0x50] sm:$0xff] %v110
  %123 = vst [vmem:[#allocation2 + $0x58] sm:$0xff] %v111
  %v124 = vld [vmem:[%s0] sm:$0xff]
  %v125 = vld [vmem:[%s0 + $0x8] sm:$0xff]
  %v126 = vld [vmem:[%s0 + $0x10] sm:$0xff]
  %v127 = vld [vmem:[%s0 + $0x18] sm:$0xff]
  %v128 = vld [vmem:[%s0 + $0x20] sm:$0xff]
  %v129 = vld [vmem:[%s0 + $0x28] sm:$0xff]
  %v130 = vld [vmem:[%s0 + $0x30] sm:$0xff]
  %138 = vrot.lane.b32.xlu0 %v124, 17
  %v139 = vpop.permute.xlu0 %138
  %140 = vrot.lane.b32.xlu0 %v125, 17
  %v141 = vpop.permute.xlu0 %140
  %142 = vrot.lane.b32.xlu0 %v126, 17
  %v143 = vpop.permute.xlu0 %142
  %144 = vrot.lane.b32.xlu0 %v127, 17
  %v145 = vpop.permute.xlu0 %144
  %146 = vrot.lane.b32.xlu0 %v128, 17
  %v147 = vpop.permute.xlu0 %146
  %148 = vrot.lane.b32.xlu0 %v129, 17
  %v149 = vpop.permute.xlu0 %148
  %150 = vrot.lane.b32.xlu0 %v130, 17
  %v151 = vpop.permute.xlu0 %150
  %vm152 = vcmask 138240
  %v153 = vsel %vm152, %v139, %v141
  %v154 = vsel %vm152, %v141, %v143
  %v155 = vsel %vm152, %v143, %v145
  %v156 = vsel %vm152, %v145, %v147
  %v157 = vsel %vm152, %v147, %v149
  %v158 = vsel %vm152, %v149, %v151
  %165 = vst [vmem:[#allocation2 + $0x60] sm:$0xff] %v153
  %166 = vst [vmem:[#allocation2 + $0x68] sm:$0xff] %v154
  %167 = vst [vmem:[#allocation2 + $0x70] sm:$0xff] %v155
  %168 = vst [vmem:[#allocation2 + $0x78] sm:$0xff] %v156
  %169 = vst [vmem:[#allocation2 + $0x80] sm:$0xff] %v157
  %170 = vst [vmem:[#allocation2 + $0x88] sm:$0xff] %v158
  %v171 = vld [vmem:[%s0] sm:$0xff]
  %v172 = vld [vmem:[%s0 + $0x8] sm:$0xff]
  %v173 = vld [vmem:[%s0 + $0x10] sm:$0xff]
  %v174 = vld [vmem:[%s0 + $0x18] sm:$0xff]
  %v175 = vld [vmem:[%s0 + $0x20] sm:$0xff]
  %v176 = vld [vmem:[%s0 + $0x28] sm:$0xff]
  %v177 = vld [vmem:[%s0 + $0x30] sm:$0xff]
  %185 = vrot.lane.b32.xlu0 %v171, 1
  %v186 = vpop.permute.xlu0 %185
  %187 = vrot.lane.b32.xlu0 %v172, 1
  %v188 = vpop.permute.xlu0 %187
  %189 = vrot.lane.b32.xlu0 %v173, 1
  %v190 = vpop.permute.xlu0 %189
  %191 = vrot.lane.b32.xlu0 %v174, 1
  %v192 = vpop.permute.xlu0 %191
  %193 = vrot.lane.b32.xlu0 %v175, 1
  %v194 = vpop.permute.xlu0 %193
  %195 = vrot.lane.b32.xlu0 %v176, 1
  %v196 = vpop.permute.xlu0 %195
  %197 = vrot.lane.b32.xlu0 %v177, 1
  %v198 = vpop.permute.xlu0 %197
  %vm199 = vcmask 7168
  %v200 = vsel %vm199, %v186, %v188
  %v201 = vsel %vm199, %v188, %v190
  %v202 = vsel %vm199, %v190, %v192
  %v203 = vsel %vm199, %v192, %v194
  %v204 = vsel %vm199, %v194, %v196
  %v205 = vsel %vm199, %v196, %v198
  %212 = vst [vmem:[#allocation2 + $0x90] sm:$0xff] %v200
  %213 = vst [vmem:[#allocation2 + $0x98] sm:$0xff] %v201
  %214 = vst [vmem:[#allocation2 + $0xa0] sm:$0xff] %v202
  %215 = vst [vmem:[#allocation2 + $0xa8] sm:$0xff] %v203
  %216 = vst [vmem:[#allocation2 + $0xb0] sm:$0xff] %v204
  %217 = vst [vmem:[#allocation2 + $0xb8] sm:$0xff] %v205
  %v218 = vld [vmem:[%s0 + $0x8] sm:$0xff]
  %v219 = vld [vmem:[%s0 + $0x10] sm:$0xff]
  %v220 = vld [vmem:[%s0 + $0x18] sm:$0xff]
  %v221 = vld [vmem:[%s0 + $0x20] sm:$0xff]
  %v222 = vld [vmem:[%s0 + $0x28] sm:$0xff]
  %v223 = vld [vmem:[%s0 + $0x30] sm:$0xff]
  %224 = vst [vmem:[#allocation2 + $0xc0] sm:$0xff] %v218
  %225 = vst [vmem:[#allocation2 + $0xc8] sm:$0xff] %v219
  %226 = vst [vmem:[#allocation2 + $0xd0] sm:$0xff] %v220
  %227 = vst [vmem:[#allocation2 + $0xd8] sm:$0xff] %v221
  %228 = vst [vmem:[#allocation2 + $0xe0] sm:$0xff] %v222
  %229 = vst [vmem:[#allocation2 + $0xe8] sm:$0xff] %v223
  %v230 = vld [vmem:[%s0 + $0x8] sm:$0xff]
  %v231 = vld [vmem:[%s0 + $0x10] sm:$0xff]
  %v232 = vld [vmem:[%s0 + $0x18] sm:$0xff]
  %v233 = vld [vmem:[%s0 + $0x20] sm:$0xff]
  %v234 = vld [vmem:[%s0 + $0x28] sm:$0xff]
  %v235 = vld [vmem:[%s0 + $0x30] sm:$0xff]
  %v236 = vld [vmem:[%s0 + $0x38] sm:$0xff]
  %244 = vrot.lane.b32.xlu0 %v230, 127
  %v245 = vpop.permute.xlu0 %244
  %246 = vrot.lane.b32.xlu0 %v231, 127
  %v247 = vpop.permute.xlu0 %246
  %248 = vrot.lane.b32.xlu0 %v232, 127
  %v249 = vpop.permute.xlu0 %248
  %250 = vrot.lane.b32.xlu0 %v233, 127
  %v251 = vpop.permute.xlu0 %250
  %252 = vrot.lane.b32.xlu0 %v234, 127
  %v253 = vpop.permute.xlu0 %252
  %254 = vrot.lane.b32.xlu0 %v235, 127
  %v255 = vpop.permute.xlu0 %254
  %256 = vrot.lane.b32.xlu0 %v236, 127
  %v257 = vpop.permute.xlu0 %256
  %vm258 = vcmask 1039360
  %v259 = vsel %vm258, %v245, %v247
  %v260 = vsel %vm258, %v247, %v249
  %v261 = vsel %vm258, %v249, %v251
  %v262 = vsel %vm258, %v251, %v253
  %v263 = vsel %vm258, %v253, %v255
  %v264 = vsel %vm258, %v255, %v257
  %271 = vst [vmem:[#allocation2 + $0xf0] sm:$0xff] %v259
  %272 = vst [vmem:[#allocation2 + $0xf8] sm:$0xff] %v260
  %273 = vst [vmem:[#allocation2 + $0x100] sm:$0xff] %v261
  %274 = vst [vmem:[#allocation2 + $0x108] sm:$0xff] %v262
  %275 = vst [vmem:[#allocation2 + $0x110] sm:$0xff] %v263
  %276 = vst [vmem:[#allocation2 + $0x118] sm:$0xff] %v264
  %v277 = vld [vmem:[%s0 + $0x8] sm:$0xff]
  %v278 = vld [vmem:[%s0 + $0x10] sm:$0xff]
  %v279 = vld [vmem:[%s0 + $0x18] sm:$0xff]
  %v280 = vld [vmem:[%s0 + $0x20] sm:$0xff]
  %v281 = vld [vmem:[%s0 + $0x28] sm:$0xff]
  %v282 = vld [vmem:[%s0 + $0x30] sm:$0xff]
  %v283 = vld [vmem:[%s0 + $0x38] sm:$0xff]
  %291 = vrot.lane.b32.xlu0 %v277, 111
  %v292 = vpop.permute.xlu0 %291
  %293 = vrot.lane.b32.xlu0 %v278, 111
  %v294 = vpop.permute.xlu0 %293
  %295 = vrot.lane.b32.xlu0 %v279, 111
  %v296 = vpop.permute.xlu0 %295
  %297 = vrot.lane.b32.xlu0 %v280, 111
  %v298 = vpop.permute.xlu0 %297
  %299 = vrot.lane.b32.xlu0 %v281, 111
  %v300 = vpop.permute.xlu0 %299
  %301 = vrot.lane.b32.xlu0 %v282, 111
  %v302 = vpop.permute.xlu0 %301
  %303 = vrot.lane.b32.xlu0 %v283, 111
  %v304 = vpop.permute.xlu0 %303
  %vm305 = vcmask 908288
  %v306 = vsel %vm305, %v292, %v294
  %v307 = vsel %vm305, %v294, %v296
  %v308 = vsel %vm305, %v296, %v298
  %v309 = vsel %vm305, %v298, %v300
  %v310 = vsel %vm305, %v300, %v302
  %v311 = vsel %vm305, %v302, %v304
  %318 = vst [vmem:[#allocation2 + $0x120] sm:$0xff] %v306
  %319 = vst [vmem:[#allocation2 + $0x128] sm:$0xff] %v307
  %320 = vst [vmem:[#allocation2 + $0x130] sm:$0xff] %v308
  %321 = vst [vmem:[#allocation2 + $0x138] sm:$0xff] %v309
  %322 = vst [vmem:[#allocation2 + $0x140] sm:$0xff] %v310
  %323 = vst [vmem:[#allocation2 + $0x148] sm:$0xff] %v311
  %v324 = vld [vmem:[%s0 + $0x8] sm:$0xff]
  %v325 = vld [vmem:[%s0 + $0x10] sm:$0xff]
  %v326 = vld [vmem:[%s0 + $0x18] sm:$0xff]
  %v327 = vld [vmem:[%s0 + $0x20] sm:$0xff]
  %v328 = vld [vmem:[%s0 + $0x28] sm:$0xff]
  %v329 = vld [vmem:[%s0 + $0x30] sm:$0xff]
  %v330 = vld [vmem:[%s0 + $0x38] sm:$0xff]
  %338 = vrot.lane.b32.xlu0 %v324, 110
  %v339 = vpop.permute.xlu0 %338
  %340 = vrot.lane.b32.xlu0 %v325, 110
  %v341 = vpop.permute.xlu0 %340
  %342 = vrot.lane.b32.xlu0 %v326, 110
  %v343 = vpop.permute.xlu0 %342
  %344 = vrot.lane.b32.xlu0 %v327, 110
  %v345 = vpop.permute.xlu0 %344
  %346 = vrot.lane.b32.xlu0 %v328, 110
  %v347 = vpop.permute.xlu0 %346
  %348 = vrot.lane.b32.xlu0 %v329, 110
  %v349 = vpop.permute.xlu0 %348
  %350 = vrot.lane.b32.xlu0 %v330, 110
  %v351 = vpop.permute.xlu0 %350
  %vm352 = vcmask 900096
  %v353 = vsel %vm352, %v339, %v341
  %v354 = vsel %vm352, %v341, %v343
  %v355 = vsel %vm352, %v343, %v345
  %v356 = vsel %vm352, %v345, %v347
  %v357 = vsel %vm352, %v347, %v349
  %v358 = vsel %vm352, %v349, %v351
  %365 = vst [vmem:[#allocation2 + $0x150] sm:$0xff] %v353
  %366 = vst [vmem:[#allocation2 + $0x158] sm:$0xff] %v354
  %367 = vst [vmem:[#allocation2 + $0x160] sm:$0xff] %v355
  %368 = vst [vmem:[#allocation2 + $0x168] sm:$0xff] %v356
  %369 = vst [vmem:[#allocation2 + $0x170] sm:$0xff] %v357
  %370 = vst [vmem:[#allocation2 + $0x178] sm:$0xff] %v358
  %v371 = vld [vmem:[%s0 + $0x8] sm:$0xff]
  %v372 = vld [vmem:[%s0 + $0x10] sm:$0xff]
  %v373 = vld [vmem:[%s0 + $0x18] sm:$0xff]
  %v374 = vld [vmem:[%s0 + $0x20] sm:$0xff]
  %v375 = vld [vmem:[%s0 + $0x28] sm:$0xff]
  %v376 = vld [vmem:[%s0 + $0x30] sm:$0xff]
  %v377 = vld [vmem:[%s0 + $0x38] sm:$0xff]
  %385 = vrot.lane.b32.xlu0 %v371, 109
  %v386 = vpop.permute.xlu0 %385
  %387 = vrot.lane.b32.xlu0 %v372, 109
  %v388 = vpop.permute.xlu0 %387
  %389 = vrot.lane.b32.xlu0 %v373, 109
  %v390 = vpop.permute.xlu0 %389
  %391 = vrot.lane.b32.xlu0 %v374, 109
  %v392 = vpop.permute.xlu0 %391
  %393 = vrot.lane.b32.xlu0 %v375, 109
  %v394 = vpop.permute.xlu0 %393
  %395 = vrot.lane.b32.xlu0 %v376, 109
  %v396 = vpop.permute.xlu0 %395
  %397 = vrot.lane.b32.xlu0 %v377, 109
  %v398 = vpop.permute.xlu0 %397
  %vm399 = vcmask 891904
  %v400 = vsel %vm399, %v386, %v388
  %v401 = vsel %vm399, %v388, %v390
  %v402 = vsel %vm399, %v390, %v392
  %v403 = vsel %vm399, %v392, %v394
  %v404 = vsel %vm399, %v394, %v396
  %v405 = vsel %vm399, %v396, %v398
  %412 = vst [vmem:[#allocation2 + $0x180] sm:$0xff] %v400
  %413 = vst [vmem:[#allocation2 + $0x188] sm:$0xff] %v401
  %414 = vst [vmem:[#allocation2 + $0x190] sm:$0xff] %v402
  %415 = vst [vmem:[#allocation2 + $0x198] sm:$0xff] %v403
  %416 = vst [vmem:[#allocation2 + $0x1a0] sm:$0xff] %v404
  %417 = vst [vmem:[#allocation2 + $0x1a8] sm:$0xff] %v405
  %v418 = vld [vmem:[%s2] sm:$0xff]
  %v419 = vld [vmem:[%s2 + $0x8] sm:$0xff]
  %v420 = vld [vmem:[%s2 + $0x10] sm:$0xff]
  %v421 = vld [vmem:[%s2 + $0x18] sm:$0xff]
  %v422 = vld [vmem:[#allocation2] sm:$0xff]
  %v423 = vld [vmem:[#allocation2 + $0x8] sm:$0xff]
  %v424 = vld [vmem:[#allocation2 + $0x10] sm:$0xff]
  %v425 = vld [vmem:[#allocation2 + $0x18] sm:$0xff]
  %v426 = vld [vmem:[#allocation2 + $0x20] sm:$0xff]
  %v427 = vld [vmem:[#allocation2 + $0x28] sm:$0xff]
  %v428 = vld [vmem:[#allocation2 + $0x30] sm:$0xff]
  %v429 = vld [vmem:[#allocation2 + $0x38] sm:$0xff]
  %v430 = vld [vmem:[#allocation2 + $0x40] sm:$0xff]
  %v431 = vld [vmem:[#allocation2 + $0x48] sm:$0xff]
  %v432 = vld [vmem:[#allocation2 + $0x50] sm:$0xff]
  %v433 = vld [vmem:[#allocation2 + $0x58] sm:$0xff]
  %v434 = vld [vmem:[#allocation2 + $0x60] sm:$0xff]
  %v435 = vld [vmem:[#allocation2 + $0x68] sm:$0xff]
  %v436 = vld [vmem:[#allocation2 + $0x70] sm:$0xff]
  %v437 = vld [vmem:[#allocation2 + $0x78] sm:$0xff]
  %v438 = vld [vmem:[#allocation2 + $0x80] sm:$0xff]
  %v439 = vld [vmem:[#allocation2 + $0x88] sm:$0xff]
  %v440 = vld [vmem:[#allocation2 + $0x90] sm:$0xff]
  %v441 = vld [vmem:[#allocation2 + $0x98] sm:$0xff]
  %v442 = vld [vmem:[#allocation2 + $0xa0] sm:$0xff]
  %v443 = vld [vmem:[#allocation2 + $0xa8] sm:$0xff]
  %v444 = vld [vmem:[#allocation2 + $0xb0] sm:$0xff]
  %v445 = vld [vmem:[#allocation2 + $0xb8] sm:$0xff]
  %v446 = vld [vmem:[#allocation2 + $0xc0] sm:$0xff]
  %v447 = vld [vmem:[#allocation2 + $0xc8] sm:$0xff]
  %v448 = vld [vmem:[#allocation2 + $0xd0] sm:$0xff]
  %v449 = vld [vmem:[#allocation2 + $0xd8] sm:$0xff]
  %v450 = vld [vmem:[#allocation2 + $0xe0] sm:$0xff]
  %v451 = vld [vmem:[#allocation2 + $0xe8] sm:$0xff]
  %v452 = vld [vmem:[#allocation2 + $0xf0] sm:$0xff]
  %v453 = vld [vmem:[#allocation2 + $0xf8] sm:$0xff]
  %v454 = vld [vmem:[#allocation2 + $0x100] sm:$0xff]
  %v455 = vld [vmem:[#allocation2 + $0x108] sm:$0xff]
  %v456 = vld [vmem:[#allocation2 + $0x110] sm:$0xff]
  %v457 = vld [vmem:[#allocation2 + $0x118] sm:$0xff]
  %v458 = vld [vmem:[#allocation2 + $0x120] sm:$0xff]
  %v459 = vld [vmem:[#allocation2 + $0x128] sm:$0xff]
  %v460 = vld [vmem:[#allocation2 + $0x130] sm:$0xff]
  %v461 = vld [vmem:[#allocation2 + $0x138] sm:$0xff]
  %v462 = vld [vmem:[#allocation2 + $0x140] sm:$0xff]
  %v463 = vld [vmem:[#allocation2 + $0x148] sm:$0xff]
  %v464 = vld [vmem:[#allocation2 + $0x150] sm:$0xff]
  %v465 = vld [vmem:[#allocation2 + $0x158] sm:$0xff]
  %v466 = vld [vmem:[#allocation2 + $0x160] sm:$0xff]
  %v467 = vld [vmem:[#allocation2 + $0x168] sm:$0xff]
  %v468 = vld [vmem:[#allocation2 + $0x170] sm:$0xff]
  %v469 = vld [vmem:[#allocation2 + $0x178] sm:$0xff]
  %v470 = vld [vmem:[#allocation2 + $0x180] sm:$0xff]
  %v471 = vld [vmem:[#allocation2 + $0x188] sm:$0xff]
  %v472 = vld [vmem:[#allocation2 + $0x190] sm:$0xff]
  %v473 = vld [vmem:[#allocation2 + $0x198] sm:$0xff]
  %v474 = vld [vmem:[#allocation2 + $0x1a0] sm:$0xff]
  %v475 = vld [vmem:[#allocation2 + $0x1a8] sm:$0xff]
  %v476 = vld [vmem:[%s3] sm:$0xff]
  %v477 = vld [vmem:[%s3 + $0x8] sm:$0xff]
  %v478 = vld [vmem:[%s3 + $0x10] sm:$0xff]
  %v479 = vld [vmem:[%s3 + $0x18] sm:$0xff]
  %481 = vset.pattern.permute.xlu0 0
  %482 = vperm.xlu0 %481, %v476
  %v483 = vpop.permute.xlu0 %482
  %486 = vset.pattern.permute.xlu0 0
  %487 = vperm.xlu0 %486, %v477
  %v488 = vpop.permute.xlu0 %487
  %491 = vset.pattern.permute.xlu0 0
  %492 = vperm.xlu0 %491, %v478
  %v493 = vpop.permute.xlu0 %492
  %496 = vset.pattern.permute.xlu0 0
  %497 = vperm.xlu0 %496, %v479
  %v498 = vpop.permute.xlu0 %497
  %vm500 = vcmask 588800
  %v502 = vsel %vm500, %v418, 0
  %v505 = vsel %vm500, %v419, 0
  %v508 = vsel %vm500, %v420, 0
  %v511 = vsel %vm500, %v421, 0
  %513 = vmatprep.subr.mxu0 %v423
  %514 = vmatpush1.msra.mxu0 %v422
  %515 = vmatprep.subr.mxu0 %v429
  %516 = vmatpush1.msra.mxu0 %v428
  %517 = vmatprep.subr.mxu0 %v435
  %518 = vmatpush1.msra.mxu0 %v434
  %519 = vmatprep.subr.mxu0 %v441
  %520 = vmatpush1.msra.mxu0 %v440
  %521 = vmatprep.subr.mxu0 %v447
  %522 = vmatpush1.msra.mxu0 %v446
  %523 = vmatprep.subr.mxu0 %v453
  %524 = vmatpush1.msra.mxu0 %v452
  %525 = vmatprep.subr.mxu0 %v459
  %526 = vmatpush1.msra.mxu0 %v458
  %527 = vmatprep.subr.mxu0 %v465
  %528 = vmatpush1.msra.mxu0 %v464
  %529 = vmatprep.subr.mxu0 %v471
  %530 = vmatpush1.msra.mxu0 %v470
  %531 = vmatprep.subr.mxu0 0.0
  %532 = vmatpush1.msra.mxu0 0.0
  %533 = vmatprep.subr.mxu0 0.0
  %534 = vmatpush1.msra.mxu0 0.0
  %535 = vmatprep.subr.mxu0 0.0
  %536 = vmatpush1.msra.mxu0 0.0
  %537 = vmatprep.subr.mxu0 0.0
  %538 = vmatpush1.msra.mxu0 0.0
  %539 = vmatprep.subr.mxu0 0.0
  %540 = vmatpush1.msra.mxu0 0.0
  %541 = vmatprep.subr.mxu0 0.0
  %542 = vmatpush1.msra.mxu0 0.0
  %543 = vmatprep.subr.mxu0 0.0
  %544 = vmatpush1.msra.mxu0 0.0
  %545 = vmatprep.subr.mxu0 0.0
  %546 = vmatpush1.msra.mxu0 0.0
  %547 = vmatprep.subr.mxu0 0.0
  %548 = vmatpush1.msra.mxu0 0.0
  %549 = vmatprep.subr.mxu0 0.0
  %550 = vmatpush1.msra.mxu0 0.0
  %551 = vmatprep.subr.mxu0 0.0
  %552 = vmatpush1.msra.mxu0 0.0
  %553 = vmatprep.subr.mxu0 0.0
  %554 = vmatpush1.msra.mxu0 0.0
  %555 = vmatprep.subr.mxu0 0.0
  %556 = vmatpush1.msra.mxu0 0.0
  %557 = vmatprep.subr.mxu0 0.0
  %558 = vmatpush1.msra.mxu0 0.0
  %559 = vmatprep.subr.mxu0 0.0
  %560 = vmatpush1.msra.mxu0 0.0
  %561 = vmatprep.subr.mxu0 0.0
  %562 = vmatpush1.msra.mxu0 0.0
  %563 = vmatprep.subr.mxu0 0.0
  %564 = vmatpush1.msra.mxu0 0.0
  %565 = vmatprep.subr.mxu0 0.0
  %566 = vmatpush1.msra.mxu0 0.0
  %567 = vmatprep.subr.mxu0 0.0
  %568 = vmatpush1.msra.mxu0 0.0
  %569 = vmatprep.subr.mxu0 0.0
  %570 = vmatpush1.msra.mxu0 0.0
  %571 = vmatprep.subr.mxu0 0.0
  %572 = vmatpush1.msra.mxu0 0.0
  %573 = vmatprep.subr.mxu0 0.0
  %574 = vmatpush1.msra.mxu0 0.0
  %575 = vmatprep.subr.mxu0 0.0
  %576 = vmatpush1.msra.mxu0 0.0
  %577 = vmatprep.mubr.f32.mxu0 0.0
  %578 = vmatmul.mubr.f32.gmra.mrb[0].mxu0 %v502
  %v579 = vpop.f32.mrb[0].mxu0
  %v580 = vadd.f32 %v483, %v579
  %v581 = vpop.f32.mrb[0].mxu0
  %v582 = vadd.f32 %v483, %v581
  %583 = vmatprep.mubr.f32.mxu0 0.0
  %584 = vmatmul.mubr.f32.gmra.mrb[0].mxu0 %v505
  %v585 = vpop.f32.mrb[0].mxu0
  %v586 = vadd.f32 %v488, %v585
  %v587 = vpop.f32.mrb[0].mxu0
  %v588 = vadd.f32 %v488, %v587
  %589 = vmatprep.mubr.f32.mxu0 0.0
  %590 = vmatmul.mubr.f32.gmra.mrb[0].mxu0 %v508
  %v591 = vpop.f32.mrb[0].mxu0
  %v592 = vadd.f32 %v493, %v591
  %v593 = vpop.f32.mrb[0].mxu0
  %v594 = vadd.f32 %v493, %v593
  %595 = vmatprep.mubr.f32.mxu0 0.0
  %596 = vmatmul.mubr.f32.gmra.mrb[0].mxu0 %v511
  %v597 = vpop.f32.mrb[0].mxu0
  %v598 = vadd.f32 %v498, %v597
  %v599 = vpop.f32.mrb[0].mxu0
  %v600 = vadd.f32 %v498, %v599
  %601 = vdwg.mxu0
  %602 = vmatprep.subr.mxu0 %v425
  %603 = vmatpush1.msra.mxu0 %v424
  %604 = vmatprep.subr.mxu0 %v431
  %605 = vmatpush1.msra.mxu0 %v430
  %606 = vmatprep.subr.mxu0 %v437
  %607 = vmatpush1.msra.mxu0 %v436
  %608 = vmatprep.subr.mxu0 %v443
  %609 = vmatpush1.msra.mxu0 %v442
  %610 = vmatprep.subr.mxu0 %v449
  %611 = vmatpush1.msra.mxu0 %v448
  %612 = vmatprep.subr.mxu0 %v455
  %613 = vmatpush1.msra.mxu0 %v454
  %614 = vmatprep.subr.mxu0 %v461
  %615 = vmatpush1.msra.mxu0 %v460
  %616 = vmatprep.subr.mxu0 %v467
  %617 = vmatpush1.msra.mxu0 %v466
  %618 = vmatprep.subr.mxu0 %v473
  %619 = vmatpush1.msra.mxu0 %v472
  %620 = vmatprep.subr.mxu0 0.0
  %621 = vmatpush1.msra.mxu0 0.0
  %622 = vmatprep.subr.mxu0 0.0
  %623 = vmatpush1.msra.mxu0 0.0
  %624 = vmatprep.subr.mxu0 0.0
  %625 = vmatpush1.msra.mxu0 0.0
  %626 = vmatprep.subr.mxu0 0.0
  %627 = vmatpush1.msra.mxu0 0.0
  %628 = vmatprep.subr.mxu0 0.0
  %629 = vmatpush1.msra.mxu0 0.0
  %630 = vmatprep.subr.mxu0 0.0
  %631 = vmatpush1.msra.mxu0 0.0
  %632 = vmatprep.subr.mxu0 0.0
  %633 = vmatpush1.msra.mxu0 0.0
  %634 = vmatprep.subr.mxu0 0.0
  %635 = vmatpush1.msra.mxu0 0.0
  %636 = vmatprep.subr.mxu0 0.0
  %637 = vmatpush1.msra.mxu0 0.0
  %638 = vmatprep.subr.mxu0 0.0
  %639 = vmatpush1.msra.mxu0 0.0
  %640 = vmatprep.subr.mxu0 0.0
  %641 = vmatpush1.msra.mxu0 0.0
  %642 = vmatprep.subr.mxu0 0.0
  %643 = vmatpush1.msra.mxu0 0.0
  %644 = vmatprep.subr.mxu0 0.0
  %645 = vmatpush1.msra.mxu0 0.0
  %646 = vmatprep.subr.mxu0 0.0
  %647 = vmatpush1.msra.mxu0 0.0
  %648 = vmatprep.subr.mxu0 0.0
  %649 = vmatpush1.msra.mxu0 0.0
  %650 = vmatprep.subr.mxu0 0.0
  %651 = vmatpush1.msra.mxu0 0.0
  %652 = vmatprep.subr.mxu0 0.0
  %653 = vmatpush1.msra.mxu0 0.0
  %654 = vmatprep.subr.mxu0 0.0
  %655 = vmatpush1.msra.mxu0 0.0
  %656 = vmatprep.subr.mxu0 0.0
  %657 = vmatpush1.msra.mxu0 0.0
  %658 = vmatprep.subr.mxu0 0.0
  %659 = vmatpush1.msra.mxu0 0.0
  %660 = vmatprep.subr.mxu0 0.0
  %661 = vmatpush1.msra.mxu0 0.0
  %662 = vmatprep.subr.mxu0 0.0
  %663 = vmatpush1.msra.mxu0 0.0
  %664 = vmatprep.subr.mxu0 0.0
  %665 = vmatpush1.msra.mxu0 0.0
  %666 = vmatprep.mubr.f32.mxu0 0.0
  %667 = vmatmul.mubr.f32.gmra.mrb[0].mxu0 %v502
  %v668 = vpop.f32.mrb[0].mxu0
  %v669 = vadd.f32 %v483, %v668
  %v670 = vpop.f32.mrb[0].mxu0
  %v671 = vadd.f32 %v483, %v670
  %672 = vmatprep.mubr.f32.mxu0 0.0
  %673 = vmatmul.mubr.f32.gmra.mrb[0].mxu0 %v505
  %v674 = vpop.f32.mrb[0].mxu0
  %v675 = vadd.f32 %v488, %v674
  %v676 = vpop.f32.mrb[0].mxu0
  %v677 = vadd.f32 %v488, %v676
  %678 = vmatprep.mubr.f32.mxu0 0.0
  %679 = vmatmul.mubr.f32.gmra.mrb[0].mxu0 %v508
  %v680 = vpop.f32.mrb[0].mxu0
  %v681 = vadd.f32 %v493, %v680
  %v682 = vpop.f32.mrb[0].mxu0
  %v683 = vadd.f32 %v493, %v682
  %684 = vmatprep.mubr.f32.mxu0 0.0
  %685 = vmatmul.mubr.f32.gmra.mrb[0].mxu0 %v511
  %v686 = vpop.f32.mrb[0].mxu0
  %v687 = vadd.f32 %v498, %v686
  %v688 = vpop.f32.mrb[0].mxu0
  %v689 = vadd.f32 %v498, %v688
  %690 = vdwg.mxu0
  %691 = vmatprep.subr.mxu0 %v427
  %692 = vmatpush1.msra.mxu0 %v426
  %693 = vmatprep.subr.mxu0 %v433
  %694 = vmatpush1.msra.mxu0 %v432
  %695 = vmatprep.subr.mxu0 %v439
  %696 = vmatpush1.msra.mxu0 %v438
  %697 = vmatprep.subr.mxu0 %v445
  %698 = vmatpush1.msra.mxu0 %v444
  %699 = vmatprep.subr.mxu0 %v451
  %700 = vmatpush1.msra.mxu0 %v450
  %701 = vmatprep.subr.mxu0 %v457
  %702 = vmatpush1.msra.mxu0 %v456
  %703 = vmatprep.subr.mxu0 %v463
  %704 = vmatpush1.msra.mxu0 %v462
  %705 = vmatprep.subr.mxu0 %v469
  %706 = vmatpush1.msra.mxu0 %v468
  %707 = vmatprep.subr.mxu0 %v475
  %708 = vmatpush1.msra.mxu0 %v474
  %709 = vmatprep.subr.mxu0 0.0
  %710 = vmatpush1.msra.mxu0 0.0
  %711 = vmatprep.subr.mxu0 0.0
  %712 = vmatpush1.msra.mxu0 0.0
  %713 = vmatprep.subr.mxu0 0.0
  %714 = vmatpush1.msra.mxu0 0.0
  %715 = vmatprep.subr.mxu0 0.0
  %716 = vmatpush1.msra.mxu0 0.0
  %717 = vmatprep.subr.mxu0 0.0
  %718 = vmatpush1.msra.mxu0 0.0
  %719 = vmatprep.subr.mxu0 0.0
  %720 = vmatpush1.msra.mxu0 0.0
  %721 = vmatprep.subr.mxu0 0.0
  %722 = vmatpush1.msra.mxu0 0.0
  %723 = vmatprep.subr.mxu0 0.0
  %724 = vmatpush1.msra.mxu0 0.0
  %725 = vmatprep.subr.mxu0 0.0
  %726 = vmatpush1.msra.mxu0 0.0
  %727 = vmatprep.subr.mxu0 0.0
  %728 = vmatpush1.msra.mxu0 0.0
  %729 = vmatprep.subr.mxu0 0.0
  %730 = vmatpush1.msra.mxu0 0.0
  %731 = vmatprep.subr.mxu0 0.0
  %732 = vmatpush1.msra.mxu0 0.0
  %733 = vmatprep.subr.mxu0 0.0
  %734 = vmatpush1.msra.mxu0 0.0
  %735 = vmatprep.subr.mxu0 0.0
  %736 = vmatpush1.msra.mxu0 0.0
  %737 = vmatprep.subr.mxu0 0.0
  %738 = vmatpush1.msra.mxu0 0.0
  %739 = vmatprep.subr.mxu0 0.0
  %740 = vmatpush1.msra.mxu0 0.0
  %741 = vmatprep.subr.mxu0 0.0
  %742 = vmatpush1.msra.mxu0 0.0
  %743 = vmatprep.subr.mxu0 0.0
  %744 = vmatpush1.msra.mxu0 0.0
  %745 = vmatprep.subr.mxu0 0.0
  %746 = vmatpush1.msra.mxu0 0.0
  %747 = vmatprep.subr.mxu0 0.0
  %748 = vmatpush1.msra.mxu0 0.0
  %749 = vmatprep.subr.mxu0 0.0
  %750 = vmatpush1.msra.mxu0 0.0
  %751 = vmatprep.subr.mxu0 0.0
  %752 = vmatpush1.msra.mxu0 0.0
  %753 = vmatprep.subr.mxu0 0.0
  %754 = vmatpush1.msra.mxu0 0.0
  %755 = vmatprep.mubr.f32.mxu0 0.0
  %756 = vmatmul.mubr.f32.gmra.mrb[0].mxu0 %v502
  %v757 = vpop.f32.mrb[0].mxu0
  %v758 = vadd.f32 %v483, %v757
  %v759 = vpop.f32.mrb[0].mxu0
  %v760 = vadd.f32 %v483, %v759
  %761 = vmatprep.mubr.f32.mxu0 0.0
  %762 = vmatmul.mubr.f32.gmra.mrb[0].mxu0 %v505
  %v763 = vpop.f32.mrb[0].mxu0
  %v764 = vadd.f32 %v488, %v763
  %v765 = vpop.f32.mrb[0].mxu0
  %v766 = vadd.f32 %v488, %v765
  %767 = vmatprep.mubr.f32.mxu0 0.0
  %768 = vmatmul.mubr.f32.gmra.mrb[0].mxu0 %v508
  %v769 = vpop.f32.mrb[0].mxu0
  %v770 = vadd.f32 %v493, %v769
  %v771 = vpop.f32.mrb[0].mxu0
  %v772 = vadd.f32 %v493, %v771
  %773 = vmatprep.mubr.f32.mxu0 0.0
  %774 = vmatmul.mubr.f32.gmra.mrb[0].mxu0 %v511
  %v775 = vpop.f32.mrb[0].mxu0
  %v776 = vadd.f32 %v498, %v775
  %v777 = vpop.f32.mrb[0].mxu0
  %v778 = vadd.f32 %v498, %v777
  %779 = vdwg.mxu0
  %v780 = vmax.f32 %v580, 0.0
  %v781 = vmax.f32 %v582, 0.0
  %v782 = vmax.f32 %v669, 0.0
  %v783 = vmax.f32 %v671, 0.0
  %v784 = vmax.f32 %v758, 0.0
  %v785 = vmax.f32 %v760, 0.0
  %v786 = vmax.f32 %v586, 0.0
  %v787 = vmax.f32 %v588, 0.0
  %v788 = vmax.f32 %v675, 0.0
  %v789 = vmax.f32 %v677, 0.0
  %v790 = vmax.f32 %v764, 0.0
  %v791 = vmax.f32 %v766, 0.0
  %v792 = vmax.f32 %v592, 0.0
  %v793 = vmax.f32 %v594, 0.0
  %v794 = vmax.f32 %v681, 0.0
  %v795 = vmax.f32 %v683, 0.0
  %v796 = vmax.f32 %v770, 0.0
  %v797 = vmax.f32 %v772, 0.0
  %v798 = vmax.f32 %v598, 0.0
  %v799 = vmax.f32 %v600, 0.0
  %v800 = vmax.f32 %v687, 0.0
  %v801 = vmax.f32 %v689, 0.0
  %v802 = vmax.f32 %v776, 0.0
  %v803 = vmax.f32 %v778, 0.0
  %804 = vst [vmem:[#allocation3] sm:$0xff] 0.0
  %805 = vst [vmem:[#allocation3 + $0x40] sm:$0xff] 0.0
  %806 = vst [vmem:[#allocation3 + $0x80] sm:$0xff] 0.0
  %807 = vst [vmem:[#allocation3 + $0xc0] sm:$0xff] 0.0
  %808 = vst [vmem:[#allocation3 + $0x38] sm:$0xff] 0.0
  %809 = vst [vmem:[#allocation3 + $0x78] sm:$0xff] 0.0
  %810 = vst [vmem:[#allocation3 + $0xb8] sm:$0xff] 0.0
  %811 = vst [vmem:[#allocation3 + $0xf8] sm:$0xff] 0.0
  %v813 = vlaneseq
  %v814 = vshrl.u32 %v813, 7
  %v815 = vsub.s32 0, %v814
  %v816 = vrot.slane %v29, %v815
  %v817 = vlaneseq
  %v818 = vshrl.u32 %v817, 7
  %v819 = vsub.s32 1, %v818
  %v820 = vrot.slane %v29, %v819
  %v821 = vlaneseq
  %v822 = vshrl.u32 %v821, 7
  %v823 = vsub.s32 2, %v822
  %v824 = vrot.slane %v29, %v823
  %v825 = vlaneseq
  %v826 = vshrl.u32 %v825, 7
  %v827 = vsub.s32 3, %v826
  %v828 = vrot.slane %v29, %v827
  %v829 = vlaneseq
  %v830 = vshrl.u32 %v829, 7
  %v831 = vsub.s32 4, %v830
  %v832 = vrot.slane %v29, %v831
  %v833 = vlaneseq
  %v834 = vshrl.u32 %v833, 7
  %v835 = vsub.s32 5, %v834
  %v836 = vrot.slane %v29, %v835
  %v843 = vmul.f32 %v780, %v816
  %v844 = vmul.f32 %v781, %v820
  %v845 = vmul.f32 %v782, %v824
  %v846 = vmul.f32 %v783, %v828
  %v847 = vmul.f32 %v784, %v832
  %v848 = vmul.f32 %v785, %v836
  %v849 = vmul.f32 %v786, %v816
  %v850 = vmul.f32 %v787, %v820
  %v851 = vmul.f32 %v788, %v824
  %v852 = vmul.f32 %v789, %v828
  %v853 = vmul.f32 %v790, %v832
  %v854 = vmul.f32 %v791, %v836
  %v855 = vmul.f32 %v792, %v816
  %v856 = vmul.f32 %v793, %v820
  %v857 = vmul.f32 %v794, %v824
  %v858 = vmul.f32 %v795, %v828
  %v859 = vmul.f32 %v796, %v832
  %v860 = vmul.f32 %v797, %v836
  %v861 = vmul.f32 %v798, %v816
  %v862 = vmul.f32 %v799, %v820
  %v863 = vmul.f32 %v800, %v824
  %v864 = vmul.f32 %v801, %v828
  %v865 = vmul.f32 %v802, %v832
  %v866 = vmul.f32 %v803, %v836
  %867 = vst [vmem:[#allocation3 + $0x8] sm:$0xff] %v843
  %868 = vst [vmem:[#allocation3 + $0x10] sm:$0xff] %v844
  %869 = vst [vmem:[#allocation3 + $0x18] sm:$0xff] %v845
  %870 = vst [vmem:[#allocation3 + $0x20] sm:$0xff] %v846
  %871 = vst [vmem:[#allocation3 + $0x28] sm:$0xff] %v847
  %872 = vst [vmem:[#allocation3 + $0x30] sm:$0xff] %v848
  %873 = vst [vmem:[#allocation3 + $0x48] sm:$0xff] %v849
  %874 = vst [vmem:[#allocation3 + $0x50] sm:$0xff] %v850
  %875 = vst [vmem:[#allocation3 + $0x58] sm:$0xff] %v851
  %876 = vst [vmem:[#allocation3 + $0x60] sm:$0xff] %v852
  %877 = vst [vmem:[#allocation3 + $0x68] sm:$0xff] %v853
  %878 = vst [vmem:[#allocation3 + $0x70] sm:$0xff] %v854
  %879 = vst [vmem:[#allocation3 + $0x88] sm:$0xff] %v855
  %880 = vst [vmem:[#allocation3 + $0x90] sm:$0xff] %v856
  %881 = vst [vmem:[#allocation3 + $0x98] sm:$0xff] %v857
  %882 = vst [vmem:[#allocation3 + $0xa0] sm:$0xff] %v858
  %883 = vst [vmem:[#allocation3 + $0xa8] sm:$0xff] %v859
  %884 = vst [vmem:[#allocation3 + $0xb0] sm:$0xff] %v860
  %885 = vst [vmem:[#allocation3 + $0xc8] sm:$0xff] %v861
  %886 = vst [vmem:[#allocation3 + $0xd0] sm:$0xff] %v862
  %887 = vst [vmem:[#allocation3 + $0xd8] sm:$0xff] %v863
  %888 = vst [vmem:[#allocation3 + $0xe0] sm:$0xff] %v864
  %889 = vst [vmem:[#allocation3 + $0xe8] sm:$0xff] %v865
  %890 = vst [vmem:[#allocation3 + $0xf0] sm:$0xff] %v866
  %v891 = vld [vmem:[#allocation3] sm:$0xff]
  %v892 = vld [vmem:[#allocation3 + $0x8] sm:$0xff]
  %v893 = vld [vmem:[#allocation3 + $0x10] sm:$0xff]
  %v894 = vld [vmem:[#allocation3 + $0x18] sm:$0xff]
  %v895 = vld [vmem:[#allocation3 + $0x20] sm:$0xff]
  %v896 = vld [vmem:[#allocation3 + $0x28] sm:$0xff]
  %v897 = vld [vmem:[#allocation3 + $0x30] sm:$0xff]
  %v898 = vld [vmem:[#allocation3 + $0x40] sm:$0xff]
  %v899 = vld [vmem:[#allocation3 + $0x48] sm:$0xff]
  %v900 = vld [vmem:[#allocation3 + $0x50] sm:$0xff]
  %v901 = vld [vmem:[#allocation3 + $0x58] sm:$0xff]
  %v902 = vld [vmem:[#allocation3 + $0x60] sm:$0xff]
  %v903 = vld [vmem:[#allocation3 + $0x68] sm:$0xff]
  %v904 = vld [vmem:[#allocation3 + $0x70] sm:$0xff]
  %v905 = vld [vmem:[#allocation3 + $0x80] sm:$0xff]
  %v906 = vld [vmem:[#allocation3 + $0x88] sm:$0xff]
  %v907 = vld [vmem:[#allocation3 + $0x90] sm:$0xff]
  %v908 = vld [vmem:[#allocation3 + $0x98] sm:$0xff]
  %v909 = vld [vmem:[#allocation3 + $0xa0] sm:$0xff]
  %v910 = vld [vmem:[#allocation3 + $0xa8] sm:$0xff]
  %v911 = vld [vmem:[#allocation3 + $0xb0] sm:$0xff]
  %v912 = vld [vmem:[#allocation3 + $0xc0] sm:$0xff]
  %v913 = vld [vmem:[#allocation3 + $0xc8] sm:$0xff]
  %v914 = vld [vmem:[#allocation3 + $0xd0] sm:$0xff]
  %v915 = vld [vmem:[#allocation3 + $0xd8] sm:$0xff]
  %v916 = vld [vmem:[#allocation3 + $0xe0] sm:$0xff]
  %v917 = vld [vmem:[#allocation3 + $0xe8] sm:$0xff]
  %v918 = vld [vmem:[#allocation3 + $0xf0] sm:$0xff]
  %947 = vrot.lane.b32.xlu0 %v891, 19
  %v948 = vpop.permute.xlu0 %947
  %949 = vrot.lane.b32.xlu0 %v892, 19
  %v950 = vpop.permute.xlu0 %949
  %951 = vrot.lane.b32.xlu0 %v893, 19
  %v952 = vpop.permute.xlu0 %951
  %953 = vrot.lane.b32.xlu0 %v894, 19
  %v954 = vpop.permute.xlu0 %953
  %955 = vrot.lane.b32.xlu0 %v895, 19
  %v956 = vpop.permute.xlu0 %955
  %957 = vrot.lane.b32.xlu0 %v896, 19
  %v958 = vpop.permute.xlu0 %957
  %959 = vrot.lane.b32.xlu0 %v897, 19
  %v960 = vpop.permute.xlu0 %959
  %961 = vrot.lane.b32.xlu0 %v898, 19
  %v962 = vpop.permute.xlu0 %961
  %963 = vrot.lane.b32.xlu0 %v899, 19
  %v964 = vpop.permute.xlu0 %963
  %965 = vrot.lane.b32.xlu0 %v900, 19
  %v966 = vpop.permute.xlu0 %965
  %967 = vrot.lane.b32.xlu0 %v901, 19
  %v968 = vpop.permute.xlu0 %967
  %969 = vrot.lane.b32.xlu0 %v902, 19
  %v970 = vpop.permute.xlu0 %969
  %971 = vrot.lane.b32.xlu0 %v903, 19
  %v972 = vpop.permute.xlu0 %971
  %973 = vrot.lane.b32.xlu0 %v904, 19
  %v974 = vpop.permute.xlu0 %973
  %975 = vrot.lane.b32.xlu0 %v905, 19
  %v976 = vpop.permute.xlu0 %975
  %977 = vrot.lane.b32.xlu0 %v906, 19
  %v978 = vpop.permute.xlu0 %977
  %979 = vrot.lane.b32.xlu0 %v907, 19
  %v980 = vpop.permute.xlu0 %979
  %981 = vrot.lane.b32.xlu0 %v908, 19
  %v982 = vpop.permute.xlu0 %981
  %983 = vrot.lane.b32.xlu0 %v909, 19
  %v984 = vpop.permute.xlu0 %983
  %985 = vrot.lane.b32.xlu0 %v910, 19
  %v986 = vpop.permute.xlu0 %985
  %987 = vrot.lane.b32.xlu0 %v911, 19
  %v988 = vpop.permute.xlu0 %987
  %989 = vrot.lane.b32.xlu0 %v912, 19
  %v990 = vpop.permute.xlu0 %989
  %991 = vrot.lane.b32.xlu0 %v913, 19
  %v992 = vpop.permute.xlu0 %991
  %993 = vrot.lane.b32.xlu0 %v914, 19
  %v994 = vpop.permute.xlu0 %993
  %995 = vrot.lane.b32.xlu0 %v915, 19
  %v996 = vpop.permute.xlu0 %995
  %997 = vrot.lane.b32.xlu0 %v916, 19
  %v998 = vpop.permute.xlu0 %997
  %999 = vrot.lane.b32.xlu0 %v917, 19
  %v1000 = vpop.permute.xlu0 %999
  %1001 = vrot.lane.b32.xlu0 %v918, 19
  %v1002 = vpop.permute.xlu0 %1001
  %v1003 = vsel %vm58, %v948, %v950
  %v1004 = vsel %vm58, %v950, %v952
  %v1005 = vsel %vm58, %v952, %v954
  %v1006 = vsel %vm58, %v954, %v956
  %v1007 = vsel %vm58, %v956, %v958
  %v1008 = vsel %vm58, %v958, %v960
  %v1009 = vsel %vm58, %v962, %v964
  %v1010 = vsel %vm58, %v964, %v966
  %v1011 = vsel %vm58, %v966, %v968
  %v1012 = vsel %vm58, %v968, %v970
  %v1013 = vsel %vm58, %v970, %v972
  %v1014 = vsel %vm58, %v972, %v974
  %v1015 = vsel %vm58, %v976, %v978
  %v1016 = vsel %vm58, %v978, %v980
  %v1017 = vsel %vm58, %v980, %v982
  %v1018 = vsel %vm58, %v982, %v984
  %v1019 = vsel %vm58, %v984, %v986
  %v1020 = vsel %vm58, %v986, %v988
  %v1021 = vsel %vm58, %v990, %v992
  %v1022 = vsel %vm58, %v992, %v994
  %v1023 = vsel %vm58, %v994, %v996
  %v1024 = vsel %vm58, %v996, %v998
  %v1025 = vsel %vm58, %v998, %v1000
  %v1026 = vsel %vm58, %v1000, %v1002
  %1051 = vst [vmem:[#allocation2] sm:$0xff] %v1003
  %1052 = vst [vmem:[#allocation2 + $0x8] sm:$0xff] %v1004
  %1053 = vst [vmem:[#allocation2 + $0x10] sm:$0xff] %v1005
  %1054 = vst [vmem:[#allocation2 + $0x18] sm:$0xff] %v1006
  %1055 = vst [vmem:[#allocation2 + $0x20] sm:$0xff] %v1007
  %1056 = vst [vmem:[#allocation2 + $0x28] sm:$0xff] %v1008
  %1057 = vst [vmem:[#allocation2 + $0x30] sm:$0xff] %v1009
  %1058 = vst [vmem:[#allocation2 + $0x38] sm:$0xff] %v1010
  %1059 = vst [vmem:[#allocation2 + $0x40] sm:$0xff] %v1011
  %1060 = vst [vmem:[#allocation2 + $0x48] sm:$0xff] %v1012
  %1061 = vst [vmem:[#allocation2 + $0x50] sm:$0xff] %v1013
  %1062 = vst [vmem:[#allocation2 + $0x58] sm:$0xff] %v1014
  %1063 = vst [vmem:[#allocation2 + $0x60] sm:$0xff] %v1015
  %1064 = vst [vmem:[#allocation2 + $0x68] sm:$0xff] %v1016
  %1065 = vst [vmem:[#allocation2 + $0x70] sm:$0xff] %v1017
  %1066 = vst [vmem:[#allocation2 + $0x78] sm:$0xff] %v1018
  %1067 = vst [vmem:[#allocation2 + $0x80] sm:$0xff] %v1019
  %1068 = vst [vmem:[#allocation2 + $0x88] sm:$0xff] %v1020
  %1069 = vst [vmem:[#allocation2 + $0x90] sm:$0xff] %v1021
  %1070 = vst [vmem:[#allocation2 + $0x98] sm:$0xff] %v1022
  %1071 = vst [vmem:[#allocation2 + $0xa0] sm:$0xff] %v1023
  %1072 = vst [vmem:[#allocation2 + $0xa8] sm:$0xff] %v1024
  %1073 = vst [vmem:[#allocation2 + $0xb0] sm:$0xff] %v1025
  %1074 = vst [vmem:[#allocation2 + $0xb8] sm:$0xff] %v1026
  %v1075 = vld [vmem:[#allocation3] sm:$0xff]
  %v1076 = vld [vmem:[#allocation3 + $0x8] sm:$0xff]
  %v1077 = vld [vmem:[#allocation3 + $0x10] sm:$0xff]
  %v1078 = vld [vmem:[#allocation3 + $0x18] sm:$0xff]
  %v1079 = vld [vmem:[#allocation3 + $0x20] sm:$0xff]
  %v1080 = vld [vmem:[#allocation3 + $0x28] sm:$0xff]
  %v1081 = vld [vmem:[#allocation3 + $0x30] sm:$0xff]
  %v1082 = vld [vmem:[#allocation3 + $0x40] sm:$0xff]
  %v1083 = vld [vmem:[#allocation3 + $0x48] sm:$0xff]
  %v1084 = vld [vmem:[#allocation3 + $0x50] sm:$0xff]
  %v1085 = vld [vmem:[#allocation3 + $0x58] sm:$0xff]
  %v1086 = vld [vmem:[#allocation3 + $0x60] sm:$0xff]
  %v1087 = vld [vmem:[#allocation3 + $0x68] sm:$0xff]
  %v1088 = vld [vmem:[#allocation3 + $0x70] sm:$0xff]
  %v1089 = vld [vmem:[#allocation3 + $0x80] sm:$0xff]
  %v1090 = vld [vmem:[#allocation3 + $0x88] sm:$0xff]
  %v1091 = vld [vmem:[#allocation3 + $0x90] sm:$0xff]
  %v1092 = vld [vmem:[#allocation3 + $0x98] sm:$0xff]
  %v1093 = vld [vmem:[#allocation3 + $0xa0] sm:$0xff]
  %v1094 = vld [vmem:[#allocation3 + $0xa8] sm:$0xff]
  %v1095 = vld [vmem:[#allocation3 + $0xb0] sm:$0xff]
  %v1096 = vld [vmem:[#allocation3 + $0xc0] sm:$0xff]
  %v1097 = vld [vmem:[#allocation3 + $0xc8] sm:$0xff]
  %v1098 = vld [vmem:[#allocation3 + $0xd0] sm:$0xff]
  %v1099 = vld [vmem:[#allocation3 + $0xd8] sm:$0xff]
  %v1100 = vld [vmem:[#allocation3 + $0xe0] sm:$0xff]
  %v1101 = vld [vmem:[#allocation3 + $0xe8] sm:$0xff]
  %v1102 = vld [vmem:[#allocation3 + $0xf0] sm:$0xff]
  %1131 = vrot.lane.b32.xlu0 %v1075, 18
  %v1132 = vpop.permute.xlu0 %1131
  %1133 = vrot.lane.b32.xlu0 %v1076, 18
  %v1134 = vpop.permute.xlu0 %1133
  %1135 = vrot.lane.b32.xlu0 %v1077, 18
  %v1136 = vpop.permute.xlu0 %1135
  %1137 = vrot.lane.b32.xlu0 %v1078, 18
  %v1138 = vpop.permute.xlu0 %1137
  %1139 = vrot.lane.b32.xlu0 %v1079, 18
  %v1140 = vpop.permute.xlu0 %1139
  %1141 = vrot.lane.b32.xlu0 %v1080, 18
  %v1142 = vpop.permute.xlu0 %1141
  %1143 = vrot.lane.b32.xlu0 %v1081, 18
  %v1144 = vpop.permute.xlu0 %1143
  %1145 = vrot.lane.b32.xlu0 %v1082, 18
  %v1146 = vpop.permute.xlu0 %1145
  %1147 = vrot.lane.b32.xlu0 %v1083, 18
  %v1148 = vpop.permute.xlu0 %1147
  %1149 = vrot.lane.b32.xlu0 %v1084, 18
  %v1150 = vpop.permute.xlu0 %1149
  %1151 = vrot.lane.b32.xlu0 %v1085, 18
  %v1152 = vpop.permute.xlu0 %1151
  %1153 = vrot.lane.b32.xlu0 %v1086, 18
  %v1154 = vpop.permute.xlu0 %1153
  %1155 = vrot.lane.b32.xlu0 %v1087, 18
  %v1156 = vpop.permute.xlu0 %1155
  %1157 = vrot.lane.b32.xlu0 %v1088, 18
  %v1158 = vpop.permute.xlu0 %1157
  %1159 = vrot.lane.b32.xlu0 %v1089, 18
  %v1160 = vpop.permute.xlu0 %1159
  %1161 = vrot.lane.b32.xlu0 %v1090, 18
  %v1162 = vpop.permute.xlu0 %1161
  %1163 = vrot.lane.b32.xlu0 %v1091, 18
  %v1164 = vpop.permute.xlu0 %1163
  %1165 = vrot.lane.b32.xlu0 %v1092, 18
  %v1166 = vpop.permute.xlu0 %1165
  %1167 = vrot.lane.b32.xlu0 %v1093, 18
  %v1168 = vpop.permute.xlu0 %1167
  %1169 = vrot.lane.b32.xlu0 %v1094, 18
  %v1170 = vpop.permute.xlu0 %1169
  %1171 = vrot.lane.b32.xlu0 %v1095, 18
  %v1172 = vpop.permute.xlu0 %1171
  %1173 = vrot.lane.b32.xlu0 %v1096, 18
  %v1174 = vpop.permute.xlu0 %1173
  %1175 = vrot.lane.b32.xlu0 %v1097, 18
  %v1176 = vpop.permute.xlu0 %1175
  %1177 = vrot.lane.b32.xlu0 %v1098, 18
  %v1178 = vpop.permute.xlu0 %1177
  %1179 = vrot.lane.b32.xlu0 %v1099, 18
  %v1180 = vpop.permute.xlu0 %1179
  %1181 = vrot.lane.b32.xlu0 %v1100, 18
  %v1182 = vpop.permute.xlu0 %1181
  %1183 = vrot.lane.b32.xlu0 %v1101, 18
  %v1184 = vpop.permute.xlu0 %1183
  %1185 = vrot.lane.b32.xlu0 %v1102, 18
  %v1186 = vpop.permute.xlu0 %1185
  %v1187 = vsel %vm105, %v1132, %v1134
  %v1188 = vsel %vm105, %v1134, %v1136
  %v1189 = vsel %vm105, %v1136, %v1138
  %v1190 = vsel %vm105, %v1138, %v1140
  %v1191 = vsel %vm105, %v1140, %v1142
  %v1192 = vsel %vm105, %v1142, %v1144
  %v1193 = vsel %vm105, %v1146, %v1148
  %v1194 = vsel %vm105, %v1148, %v1150
  %v1195 = vsel %vm105, %v1150, %v1152
  %v1196 = vsel %vm105, %v1152, %v1154
  %v1197 = vsel %vm105, %v1154, %v1156
  %v1198 = vsel %vm105, %v1156, %v1158
  %v1199 = vsel %vm105, %v1160, %v1162
  %v1200 = vsel %vm105, %v1162, %v1164
  %v1201 = vsel %vm105, %v1164, %v1166
  %v1202 = vsel %vm105, %v1166, %v1168
  %v1203 = vsel %vm105, %v1168, %v1170
  %v1204 = vsel %vm105, %v1170, %v1172
  %v1205 = vsel %vm105, %v1174, %v1176
  %v1206 = vsel %vm105, %v1176, %v1178
  %v1207 = vsel %vm105, %v1178, %v1180
  %v1208 = vsel %vm105, %v1180, %v1182
  %v1209 = vsel %vm105, %v1182, %v1184
  %v1210 = vsel %vm105, %v1184, %v1186
  %1235 = vst [vmem:[#allocation2 + $0xc0] sm:$0xff] %v1187
  %1236 = vst [vmem:[#allocation2 + $0xc8] sm:$0xff] %v1188
  %1237 = vst [vmem:[#allocation2 + $0xd0] sm:$0xff] %v1189
  %1238 = vst [vmem:[#allocation2 + $0xd8] sm:$0xff] %v1190
  %1239 = vst [vmem:[#allocation2 + $0xe0] sm:$0xff] %v1191
  %1240 = vst [vmem:[#allocation2 + $0xe8] sm:$0xff] %v1192
  %1241 = vst [vmem:[#allocation2 + $0xf0] sm:$0xff] %v1193
  %1242 = vst [vmem:[#allocation2 + $0xf8] sm:$0xff] %v1194
  %1243 = vst [vmem:[#allocation2 + $0x100] sm:$0xff] %v1195
  %1244 = vst [vmem:[#allocation2 + $0x108] sm:$0xff] %v1196
  %1245 = vst [vmem:[#allocation2 + $0x110] sm:$0xff] %v1197
  %1246 = vst [vmem:[#allocation2 + $0x118] sm:$0xff] %v1198
  %1247 = vst [vmem:[#allocation2 + $0x120] sm:$0xff] %v1199
  %1248 = vst [vmem:[#allocation2 + $0x128] sm:$0xff] %v1200
  %1249 = vst [vmem:[#allocation2 + $0x130] sm:$0xff] %v1201
  %1250 = vst [vmem:[#allocation2 + $0x138] sm:$0xff] %v1202
  %1251 = vst [vmem:[#allocation2 + $0x140] sm:$0xff] %v1203
  %1252 = vst [vmem:[#allocation2 + $0x148] sm:$0xff] %v1204
  %1253 = vst [vmem:[#allocation2 + $0x150] sm:$0xff] %v1205
  %1254 = vst [vmem:[#allocation2 + $0x158] sm:$0xff] %v1206
  %1255 = vst [vmem:[#allocation2 + $0x160] sm:$0xff] %v1207
  %1256 = vst [vmem:[#allocation2 + $0x168] sm:$0xff] %v1208
  %1257 = vst [vmem:[#allocation2 + $0x170] sm:$0xff] %v1209
  %1258 = vst [vmem:[#allocation2 + $0x178] sm:$0xff] %v1210
  %v1259 = vld [vmem:[#allocation3] sm:$0xff]
  %v1260 = vld [vmem:[#allocation3 + $0x8] sm:$0xff]
  %v1261 = vld [vmem:[#allocation3 + $0x10] sm:$0xff]
  %v1262 = vld [vmem:[#allocation3 + $0x18] sm:$0xff]
  %v1263 = vld [vmem:[#allocation3 + $0x20] sm:$0xff]
  %v1264 = vld [vmem:[#allocation3 + $0x28] sm:$0xff]
  %v1265 = vld [vmem:[#allocation3 + $0x30] sm:$0xff]
  %v1266 = vld [vmem:[#allocation3 + $0x40] sm:$0xff]
  %v1267 = vld [vmem:[#allocation3 + $0x48] sm:$0xff]
  %v1268 = vld [vmem:[#allocation3 + $0x50] sm:$0xff]
  %v1269 = vld [vmem:[#allocation3 + $0x58] sm:$0xff]
  %v1270 = vld [vmem:[#allocation3 + $0x60] sm:$0xff]
  %v1271 = vld [vmem:[#allocation3 + $0x68] sm:$0xff]
  %v1272 = vld [vmem:[#allocation3 + $0x70] sm:$0xff]
  %v1273 = vld [vmem:[#allocation3 + $0x80] sm:$0xff]
  %v1274 = vld [vmem:[#allocation3 + $0x88] sm:$0xff]
  %v1275 = vld [vmem:[#allocation3 + $0x90] sm:$0xff]
  %v1276 = vld [vmem:[#allocation3 + $0x98] sm:$0xff]
  %v1277 = vld [vmem:[#allocation3 + $0xa0] sm:$0xff]
  %v1278 = vld [vmem:[#allocation3 + $0xa8] sm:$0xff]
  %v1279 = vld [vmem:[#allocation3 + $0xb0] sm:$0xff]
  %v1280 = vld [vmem:[#allocation3 + $0xc0] sm:$0xff]
  %v1281 = vld [vmem:[#allocation3 + $0xc8] sm:$0xff]
  %v1282 = vld [vmem:[#allocation3 + $0xd0] sm:$0xff]
  %v1283 = vld [vmem:[#allocation3 + $0xd8] sm:$0xff]
  %v1284 = vld [vmem:[#allocation3 + $0xe0] sm:$0xff]
  %v1285 = vld [vmem:[#allocation3 + $0xe8] sm:$0xff]
  %v1286 = vld [vmem:[#allocation3 + $0xf0] sm:$0xff]
  %1315 = vrot.lane.b32.xlu0 %v1259, 17
  %v1316 = vpop.permute.xlu0 %1315
  %1317 = vrot.lane.b32.xlu0 %v1260, 17
  %v1318 = vpop.permute.xlu0 %1317
  %1319 = vrot.lane.b32.xlu0 %v1261, 17
  %v1320 = vpop.permute.xlu0 %1319
  %1321 = vrot.lane.b32.xlu0 %v1262, 17
  %v1322 = vpop.permute.xlu0 %1321
  %1323 = vrot.lane.b32.xlu0 %v1263, 17
  %v1324 = vpop.permute.xlu0 %1323
  %1325 = vrot.lane.b32.xlu0 %v1264, 17
  %v1326 = vpop.permute.xlu0 %1325
  %1327 = vrot.lane.b32.xlu0 %v1265, 17
  %v1328 = vpop.permute.xlu0 %1327
  %1329 = vrot.lane.b32.xlu0 %v1266, 17
  %v1330 = vpop.permute.xlu0 %1329
  %1331 = vrot.lane.b32.xlu0 %v1267, 17
  %v1332 = vpop.permute.xlu0 %1331
  %1333 = vrot.lane.b32.xlu0 %v1268, 17
  %v1334 = vpop.permute.xlu0 %1333
  %1335 = vrot.lane.b32.xlu0 %v1269, 17
  %v1336 = vpop.permute.xlu0 %1335
  %1337 = vrot.lane.b32.xlu0 %v1270, 17
  %v1338 = vpop.permute.xlu0 %1337
  %1339 = vrot.lane.b32.xlu0 %v1271, 17
  %v1340 = vpop.permute.xlu0 %1339
  %1341 = vrot.lane.b32.xlu0 %v1272, 17
  %v1342 = vpop.permute.xlu0 %1341
  %1343 = vrot.lane.b32.xlu0 %v1273, 17
  %v1344 = vpop.permute.xlu0 %1343
  %1345 = vrot.lane.b32.xlu0 %v1274, 17
  %v1346 = vpop.permute.xlu0 %1345
  %1347 = vrot.lane.b32.xlu0 %v1275, 17
  %v1348 = vpop.permute.xlu0 %1347
  %1349 = vrot.lane.b32.xlu0 %v1276, 17
  %v1350 = vpop.permute.xlu0 %1349
  %1351 = vrot.lane.b32.xlu0 %v1277, 17
  %v1352 = vpop.permute.xlu0 %1351
  %1353 = vrot.lane.b32.xlu0 %v1278, 17
  %v1354 = vpop.permute.xlu0 %1353
  %1355 = vrot.lane.b32.xlu0 %v1279, 17
  %v1356 = vpop.permute.xlu0 %1355
  %1357 = vrot.lane.b32.xlu0 %v1280, 17
  %v1358 = vpop.permute.xlu0 %1357
  %1359 = vrot.lane.b32.xlu0 %v1281, 17
  %v1360 = vpop.permute.xlu0 %1359
  %1361 = vrot.lane.b32.xlu0 %v1282, 17
  %v1362 = vpop.permute.xlu0 %1361
  %1363 = vrot.lane.b32.xlu0 %v1283, 17
  %v1364 = vpop.permute.xlu0 %1363
  %1365 = vrot.lane.b32.xlu0 %v1284, 17
  %v1366 = vpop.permute.xlu0 %1365
  %1367 = vrot.lane.b32.xlu0 %v1285, 17
  %v1368 = vpop.permute.xlu0 %1367
  %1369 = vrot.lane.b32.xlu0 %v1286, 17
  %v1370 = vpop.permute.xlu0 %1369
  %v1371 = vsel %vm152, %v1316, %v1318
  %v1372 = vsel %vm152, %v1318, %v1320
  %v1373 = vsel %vm152, %v1320, %v1322
  %v1374 = vsel %vm152, %v1322, %v1324
  %v1375 = vsel %vm152, %v1324, %v1326
  %v1376 = vsel %vm152, %v1326, %v1328
  %v1377 = vsel %vm152, %v1330, %v1332
  %v1378 = vsel %vm152, %v1332, %v1334
  %v1379 = vsel %vm152, %v1334, %v1336
  %v1380 = vsel %vm152, %v1336, %v1338
  %v1381 = vsel %vm152, %v1338, %v1340
  %v1382 = vsel %vm152, %v1340, %v1342
  %v1383 = vsel %vm152, %v1344, %v1346
  %v1384 = vsel %vm152, %v1346, %v1348
  %v1385 = vsel %vm152, %v1348, %v1350
  %v1386 = vsel %vm152, %v1350, %v1352
  %v1387 = vsel %vm152, %v1352, %v1354
  %v1388 = vsel %vm152, %v1354, %v1356
  %v1389 = vsel %vm152, %v1358, %v1360
  %v1390 = vsel %vm152, %v1360, %v1362
  %v1391 = vsel %vm152, %v1362, %v1364
  %v1392 = vsel %vm152, %v1364, %v1366
  %v1393 = vsel %vm152, %v1366, %v1368
  %v1394 = vsel %vm152, %v1368, %v1370
  %1419 = vst [vmem:[#allocation2 + $0x180] sm:$0xff] %v1371
  %1420 = vst [vmem:[#allocation2 + $0x188] sm:$0xff] %v1372
  %1421 = vst [vmem:[#allocation2 + $0x190] sm:$0xff] %v1373
  %1422 = vst [vmem:[#allocation2 + $0x198] sm:$0xff] %v1374
  %1423 = vst [vmem:[#allocation2 + $0x1a0] sm:$0xff] %v1375
  %1424 = vst [vmem:[#allocation2 + $0x1a8] sm:$0xff] %v1376
  %1425 = vst [vmem:[#allocation2 + $0x1b0] sm:$0xff] %v1377
  %1426 = vst [vmem:[#allocation2 + $0x1b8] sm:$0xff] %v1378
  %1427 = vst [vmem:[#allocation2 + $0x1c0] sm:$0xff] %v1379
  %1428 = vst [vmem:[#allocation2 + $0x1c8] sm:$0xff] %v1380
  %1429 = vst [vmem:[#allocation2 + $0x1d0] sm:$0xff] %v1381
  %1430 = vst [vmem:[#allocation2 + $0x1d8] sm:$0xff] %v1382
  %1431 = vst [vmem:[#allocation2 + $0x1e0] sm:$0xff] %v1383
  %1432 = vst [vmem:[#allocation2 + $0x1e8] sm:$0xff] %v1384
  %1433 = vst [vmem:[#allocation2 + $0x1f0] sm:$0xff] %v1385
  %1434 = vst [vmem:[#allocation2 + $0x1f8] sm:$0xff] %v1386
  %1435 = vst [vmem:[#allocation2 + $0x200] sm:$0xff] %v1387
  %1436 = vst [vmem:[#allocation2 + $0x208] sm:$0xff] %v1388
  %1437 = vst [vmem:[#allocation2 + $0x210] sm:$0xff] %v1389
  %1438 = vst [vmem:[#allocation2 + $0x218] sm:$0xff] %v1390
  %1439 = vst [vmem:[#allocation2 + $0x220] sm:$0xff] %v1391
  %1440 = vst [vmem:[#allocation2 + $0x228] sm:$0xff] %v1392
  %1441 = vst [vmem:[#allocation2 + $0x230] sm:$0xff] %v1393
  %1442 = vst [vmem:[#allocation2 + $0x238] sm:$0xff] %v1394
  %v1443 = vld [vmem:[#allocation3] sm:$0xff]
  %v1444 = vld [vmem:[#allocation3 + $0x8] sm:$0xff]
  %v1445 = vld [vmem:[#allocation3 + $0x10] sm:$0xff]
  %v1446 = vld [vmem:[#allocation3 + $0x18] sm:$0xff]
  %v1447 = vld [vmem:[#allocation3 + $0x20] sm:$0xff]
  %v1448 = vld [vmem:[#allocation3 + $0x28] sm:$0xff]
  %v1449 = vld [vmem:[#allocation3 + $0x30] sm:$0xff]
  %v1450 = vld [vmem:[#allocation3 + $0x40] sm:$0xff]
  %v1451 = vld [vmem:[#allocation3 + $0x48] sm:$0xff]
  %v1452 = vld [vmem:[#allocation3 + $0x50] sm:$0xff]
  %v1453 = vld [vmem:[#allocation3 + $0x58] sm:$0xff]
  %v1454 = vld [vmem:[#allocation3 + $0x60] sm:$0xff]
  %v1455 = vld [vmem:[#allocation3 + $0x68] sm:$0xff]
  %v1456 = vld [vmem:[#allocation3 + $0x70] sm:$0xff]
  %v1457 = vld [vmem:[#allocation3 + $0x80] sm:$0xff]
  %v1458 = vld [vmem:[#allocation3 + $0x88] sm:$0xff]
  %v1459 = vld [vmem:[#allocation3 + $0x90] sm:$0xff]
  %v1460 = vld [vmem:[#allocation3 + $0x98] sm:$0xff]
  %v1461 = vld [vmem:[#allocation3 + $0xa0] sm:$0xff]
  %v1462 = vld [vmem:[#allocation3 + $0xa8] sm:$0xff]
  %v1463 = vld [vmem:[#allocation3 + $0xb0] sm:$0xff]
  %v1464 = vld [vmem:[#allocation3 + $0xc0] sm:$0xff]
  %v1465 = vld [vmem:[#allocation3 + $0xc8] sm:$0xff]
  %v1466 = vld [vmem:[#allocation3 + $0xd0] sm:$0xff]
  %v1467 = vld [vmem:[#allocation3 + $0xd8] sm:$0xff]
  %v1468 = vld [vmem:[#allocation3 + $0xe0] sm:$0xff]
  %v1469 = vld [vmem:[#allocation3 + $0xe8] sm:$0xff]
  %v1470 = vld [vmem:[#allocation3 + $0xf0] sm:$0xff]
  %1499 = vrot.lane.b32.xlu0 %v1443, 1
  %v1500 = vpop.permute.xlu0 %1499
  %1501 = vrot.lane.b32.xlu0 %v1444, 1
  %v1502 = vpop.permute.xlu0 %1501
  %1503 = vrot.lane.b32.xlu0 %v1445, 1
  %v1504 = vpop.permute.xlu0 %1503
  %1505 = vrot.lane.b32.xlu0 %v1446, 1
  %v1506 = vpop.permute.xlu0 %1505
  %1507 = vrot.lane.b32.xlu0 %v1447, 1
  %v1508 = vpop.permute.xlu0 %1507
  %1509 = vrot.lane.b32.xlu0 %v1448, 1
  %v1510 = vpop.permute.xlu0 %1509
  %1511 = vrot.lane.b32.xlu0 %v1449, 1
  %v1512 = vpop.permute.xlu0 %1511
  %1513 = vrot.lane.b32.xlu0 %v1450, 1
  %v1514 = vpop.permute.xlu0 %1513
  %1515 = vrot.lane.b32.xlu0 %v1451, 1
  %v1516 = vpop.permute.xlu0 %1515
  %1517 = vrot.lane.b32.xlu0 %v1452, 1
  %v1518 = vpop.permute.xlu0 %1517
  %1519 = vrot.lane.b32.xlu0 %v1453, 1
  %v1520 = vpop.permute.xlu0 %1519
  %1521 = vrot.lane.b32.xlu0 %v1454, 1
  %v1522 = vpop.permute.xlu0 %1521
  %1523 = vrot.lane.b32.xlu0 %v1455, 1
  %v1524 = vpop.permute.xlu0 %1523
  %1525 = vrot.lane.b32.xlu0 %v1456, 1
  %v1526 = vpop.permute.xlu0 %1525
  %1527 = vrot.lane.b32.xlu0 %v1457, 1
  %v1528 = vpop.permute.xlu0 %1527
  %1529 = vrot.lane.b32.xlu0 %v1458, 1
  %v1530 = vpop.permute.xlu0 %1529
  %1531 = vrot.lane.b32.xlu0 %v1459, 1
  %v1532 = vpop.permute.xlu0 %1531
  %1533 = vrot.lane.b32.xlu0 %v1460, 1
  %v1534 = vpop.permute.xlu0 %1533
  %1535 = vrot.lane.b32.xlu0 %v1461, 1
  %v1536 = vpop.permute.xlu0 %1535
  %1537 = vrot.lane.b32.xlu0 %v1462, 1
  %v1538 = vpop.permute.xlu0 %1537
  %1539 = vrot.lane.b32.xlu0 %v1463, 1
  %v1540 = vpop.permute.xlu0 %1539
  %1541 = vrot.lane.b32.xlu0 %v1464, 1
  %v1542 = vpop.permute.xlu0 %1541
  %1543 = vrot.lane.b32.xlu0 %v1465, 1
  %v1544 = vpop.permute.xlu0 %1543
  %1545 = vrot.lane.b32.xlu0 %v1466, 1
  %v1546 = vpop.permute.xlu0 %1545
  %1547 = vrot.lane.b32.xlu0 %v1467, 1
  %v1548 = vpop.permute.xlu0 %1547
  %1549 = vrot.lane.b32.xlu0 %v1468, 1
  %v1550 = vpop.permute.xlu0 %1549
  %1551 = vrot.lane.b32.xlu0 %v1469, 1
  %v1552 = vpop.permute.xlu0 %1551
  %1553 = vrot.lane.b32.xlu0 %v1470, 1
  %v1554 = vpop.permute.xlu0 %1553
  %v1555 = vsel %vm199, %v1500, %v1502
  %v1556 = vsel %vm199, %v1502, %v1504
  %v1557 = vsel %vm199, %v1504, %v1506
  %v1558 = vsel %vm199, %v1506, %v1508
  %v1559 = vsel %vm199, %v1508, %v1510
  %v1560 = vsel %vm199, %v1510, %v1512
  %v1561 = vsel %vm199, %v1514, %v1516
  %v1562 = vsel %vm199, %v1516, %v1518
  %v1563 = vsel %vm199, %v1518, %v1520
  %v1564 = vsel %vm199, %v1520, %v1522
  %v1565 = vsel %vm199, %v1522, %v1524
  %v1566 = vsel %vm199, %v1524, %v1526
  %v1567 = vsel %vm199, %v1528, %v1530
  %v1568 = vsel %vm199, %v1530, %v1532
  %v1569 = vsel %vm199, %v1532, %v1534
  %v1570 = vsel %vm199, %v1534, %v1536
  %v1571 = vsel %vm199, %v1536, %v1538
  %v1572 = vsel %vm199, %v1538, %v1540
  %v1573 = vsel %vm199, %v1542, %v1544
  %v1574 = vsel %vm199, %v1544, %v1546
  %v1575 = vsel %vm199, %v1546, %v1548
  %v1576 = vsel %vm199, %v1548, %v1550
  %v1577 = vsel %vm199, %v1550, %v1552
  %v1578 = vsel %vm199, %v1552, %v1554
  %1603 = vst [vmem:[#allocation2 + $0x240] sm:$0xff] %v1555
  %1604 = vst [vmem:[#allocation2 + $0x248] sm:$0xff] %v1556
  %1605 = vst [vmem:[#allocation2 + $0x250] sm:$0xff] %v1557
  %1606 = vst [vmem:[#allocation2 + $0x258] sm:$0xff] %v1558
  %1607 = vst [vmem:[#allocation2 + $0x260] sm:$0xff] %v1559
  %1608 = vst [vmem:[#allocation2 + $0x268] sm:$0xff] %v1560
  %1609 = vst [vmem:[#allocation2 + $0x270] sm:$0xff] %v1561
  %1610 = vst [vmem:[#allocation2 + $0x278] sm:$0xff] %v1562
  %1611 = vst [vmem:[#allocation2 + $0x280] sm:$0xff] %v1563
  %1612 = vst [vmem:[#allocation2 + $0x288] sm:$0xff] %v1564
  %1613 = vst [vmem:[#allocation2 + $0x290] sm:$0xff] %v1565
  %1614 = vst [vmem:[#allocation2 + $0x298] sm:$0xff] %v1566
  %1615 = vst [vmem:[#allocation2 + $0x2a0] sm:$0xff] %v1567
  %1616 = vst [vmem:[#allocation2 + $0x2a8] sm:$0xff] %v1568
  %1617 = vst [vmem:[#allocation2 + $0x2b0] sm:$0xff] %v1569
  %1618 = vst [vmem:[#allocation2 + $0x2b8] sm:$0xff] %v1570
  %1619 = vst [vmem:[#allocation2 + $0x2c0] sm:$0xff] %v1571
  %1620 = vst [vmem:[#allocation2 + $0x2c8] sm:$0xff] %v1572
  %1621 = vst [vmem:[#allocation2 + $0x2d0] sm:$0xff] %v1573
  %1622 = vst [vmem:[#allocation2 + $0x2d8] sm:$0xff] %v1574
  %1623 = vst [vmem:[#allocation2 + $0x2e0] sm:$0xff] %v1575
  %1624 = vst [vmem:[#allocation2 + $0x2e8] sm:$0xff] %v1576
  %1625 = vst [vmem:[#allocation2 + $0x2f0] sm:$0xff] %v1577
  %1626 = vst [vmem:[#allocation2 + $0x2f8] sm:$0xff] %v1578
  %v1627 = vld [vmem:[#allocation3 + $0x8] sm:$0xff]
  %v1628 = vld [vmem:[#allocation3 + $0x10] sm:$0xff]
  %v1629 = vld [vmem:[#allocation3 + $0x18] sm:$0xff]
  %v1630 = vld [vmem:[#allocation3 + $0x20] sm:$0xff]
  %v1631 = vld [vmem:[#allocation3 + $0x28] sm:$0xff]
  %v1632 = vld [vmem:[#allocation3 + $0x30] sm:$0xff]
  %v1633 = vld [vmem:[#allocation3 + $0x48] sm:$0xff]
  %v1634 = vld [vmem:[#allocation3 + $0x50] sm:$0xff]
  %v1635 = vld [vmem:[#allocation3 + $0x58] sm:$0xff]
  %v1636 = vld [vmem:[#allocation3 + $0x60] sm:$0xff]
  %v1637 = vld [vmem:[#allocation3 + $0x68] sm:$0xff]
  %v1638 = vld [vmem:[#allocation3 + $0x70] sm:$0xff]
  %v1639 = vld [vmem:[#allocation3 + $0x88] sm:$0xff]
  %v1640 = vld [vmem:[#allocation3 + $0x90] sm:$0xff]
  %v1641 = vld [vmem:[#allocation3 + $0x98] sm:$0xff]
  %v1642 = vld [vmem:[#allocation3 + $0xa0] sm:$0xff]
  %v1643 = vld [vmem:[#allocation3 + $0xa8] sm:$0xff]
  %v1644 = vld [vmem:[#allocation3 + $0xb0] sm:$0xff]
  %v1645 = vld [vmem:[#allocation3 + $0xc8] sm:$0xff]
  %v1646 = vld [vmem:[#allocation3 + $0xd0] sm:$0xff]
  %v1647 = vld [vmem:[#allocation3 + $0xd8] sm:$0xff]
  %v1648 = vld [vmem:[#allocation3 + $0xe0] sm:$0xff]
  %v1649 = vld [vmem:[#allocation3 + $0xe8] sm:$0xff]
  %v1650 = vld [vmem:[#allocation3 + $0xf0] sm:$0xff]
  %1651 = vst [vmem:[#allocation2 + $0x300] sm:$0xff] %v1627
  %1652 = vst [vmem:[#allocation2 + $0x308] sm:$0xff] %v1628
  %1653 = vst [vmem:[#allocation2 + $0x310] sm:$0xff] %v1629
  %1654 = vst [vmem:[#allocation2 + $0x318] sm:$0xff] %v1630
  %1655 = vst [vmem:[#allocation2 + $0x320] sm:$0xff] %v1631
  %1656 = vst [vmem:[#allocation2 + $0x328] sm:$0xff] %v1632
  %1657 = vst [vmem:[#allocation2 + $0x330] sm:$0xff] %v1633
  %1658 = vst [vmem:[#allocation2 + $0x338] sm:$0xff] %v1634
  %1659 = vst [vmem:[#allocation2 + $0x340] sm:$0xff] %v1635
  %1660 = vst [vmem:[#allocation2 + $0x348] sm:$0xff] %v1636
  %1661 = vst [vmem:[#allocation2 + $0x350] sm:$0xff] %v1637
  %1662 = vst [vmem:[#allocation2 + $0x358] sm:$0xff] %v1638
  %1663 = vst [vmem:[#allocation2 + $0x360] sm:$0xff] %v1639
  %1664 = vst [vmem:[#allocation2 + $0x368] sm:$0xff] %v1640
  %1665 = vst [vmem:[#allocation2 + $0x370] sm:$0xff] %v1641
  %1666 = vst [vmem:[#allocation2 + $0x378] sm:$0xff] %v1642
  %1667 = vst [vmem:[#allocation2 + $0x380] sm:$0xff] %v1643
  %1668 = vst [vmem:[#allocation2 + $0x388] sm:$0xff] %v1644
  %1669 = vst [vmem:[#allocation2 + $0x390] sm:$0xff] %v1645
  %1670 = vst [vmem:[#allocation2 + $0x398] sm:$0xff] %v1646
  %1671 = vst [vmem:[#allocation2 + $0x3a0] sm:$0xff] %v1647
  %1672 = vst [vmem:[#allocation2 + $0x3a8] sm:$0xff] %v1648
  %1673 = vst [vmem:[#allocation2 + $0x3b0] sm:$0xff] %v1649
  %1674 = vst [vmem:[#allocation2 + $0x3b8] sm:$0xff] %v1650
  %v1675 = vld [vmem:[#allocation3 + $0x8] sm:$0xff]
  %v1676 = vld [vmem:[#allocation3 + $0x10] sm:$0xff]
  %v1677 = vld [vmem:[#allocation3 + $0x18] sm:$0xff]
  %v1678 = vld [vmem:[#allocation3 + $0x20] sm:$0xff]
  %v1679 = vld [vmem:[#allocation3 + $0x28] sm:$0xff]
  %v1680 = vld [vmem:[#allocation3 + $0x30] sm:$0xff]
  %v1681 = vld [vmem:[#allocation3 + $0x38] sm:$0xff]
  %v1682 = vld [vmem:[#allocation3 + $0x48] sm:$0xff]
  %v1683 = vld [vmem:[#allocation3 + $0x50] sm:$0xff]
  %v1684 = vld [vmem:[#allocation3 + $0x58] sm:$0xff]
  %v1685 = vld [vmem:[#allocation3 + $0x60] sm:$0xff]
  %v1686 = vld [vmem:[#allocation3 + $0x68] sm:$0xff]
  %v1687 = vld [vmem:[#allocation3 + $0x70] sm:$0xff]
  %v1688 = vld [vmem:[#allocation3 + $0x78] sm:$0xff]
  %v1689 = vld [vmem:[#allocation3 + $0x88] sm:$0xff]
  %v1690 = vld [vmem:[#allocation3 + $0x90] sm:$0xff]
  %v1691 = vld [vmem:[#allocation3 + $0x98] sm:$0xff]
  %v1692 = vld [vmem:[#allocation3 + $0xa0] sm:$0xff]
  %v1693 = vld [vmem:[#allocation3 + $0xa8] sm:$0xff]
  %v1694 = vld [vmem:[#allocation3 + $0xb0] sm:$0xff]
  %v1695 = vld [vmem:[#allocation3 + $0xb8] sm:$0xff]
  %v1696 = vld [vmem:[#allocation3 + $0xc8] sm:$0xff]
  %v1697 = vld [vmem:[#allocation3 + $0xd0] sm:$0xff]
  %v1698 = vld [vmem:[#allocation3 + $0xd8] sm:$0xff]
  %v1699 = vld [vmem:[#allocation3 + $0xe0] sm:$0xff]
  %v1700 = vld [vmem:[#allocation3 + $0xe8] sm:$0xff]
  %v1701 = vld [vmem:[#allocation3 + $0xf0] sm:$0xff]
  %v1702 = vld [vmem:[#allocation3 + $0xf8] sm:$0xff]
  %1731 = vrot.lane.b32.xlu0 %v1675, 127
  %v1732 = vpop.permute.xlu0 %1731
  %1733 = vrot.lane.b32.xlu0 %v1676, 127
  %v1734 = vpop.permute.xlu0 %1733
  %1735 = vrot.lane.b32.xlu0 %v1677, 127
  %v1736 = vpop.permute.xlu0 %1735
  %1737 = vrot.lane.b32.xlu0 %v1678, 127
  %v1738 = vpop.permute.xlu0 %1737
  %1739 = vrot.lane.b32.xlu0 %v1679, 127
  %v1740 = vpop.permute.xlu0 %1739
  %1741 = vrot.lane.b32.xlu0 %v1680, 127
  %v1742 = vpop.permute.xlu0 %1741
  %1743 = vrot.lane.b32.xlu0 %v1681, 127
  %v1744 = vpop.permute.xlu0 %1743
  %1745 = vrot.lane.b32.xlu0 %v1682, 127
  %v1746 = vpop.permute.xlu0 %1745
  %1747 = vrot.lane.b32.xlu0 %v1683, 127
  %v1748 = vpop.permute.xlu0 %1747
  %1749 = vrot.lane.b32.xlu0 %v1684, 127
  %v1750 = vpop.permute.xlu0 %1749
  %1751 = vrot.lane.b32.xlu0 %v1685, 127
  %v1752 = vpop.permute.xlu0 %1751
  %1753 = vrot.lane.b32.xlu0 %v1686, 127
  %v1754 = vpop.permute.xlu0 %1753
  %1755 = vrot.lane.b32.xlu0 %v1687, 127
  %v1756 = vpop.permute.xlu0 %1755
  %1757 = vrot.lane.b32.xlu0 %v1688, 127
  %v1758 = vpop.permute.xlu0 %1757
  %1759 = vrot.lane.b32.xlu0 %v1689, 127
  %v1760 = vpop.permute.xlu0 %1759
  %1761 = vrot.lane.b32.xlu0 %v1690, 127
  %v1762 = vpop.permute.xlu0 %1761
  %1763 = vrot.lane.b32.xlu0 %v1691, 127
  %v1764 = vpop.permute.xlu0 %1763
  %1765 = vrot.lane.b32.xlu0 %v1692, 127
  %v1766 = vpop.permute.xlu0 %1765
  %1767 = vrot.lane.b32.xlu0 %v1693, 127
  %v1768 = vpop.permute.xlu0 %1767
  %1769 = vrot.lane.b32.xlu0 %v1694, 127
  %v1770 = vpop.permute.xlu0 %1769
  %1771 = vrot.lane.b32.xlu0 %v1695, 127
  %v1772 = vpop.permute.xlu0 %1771
  %1773 = vrot.lane.b32.xlu0 %v1696, 127
  %v1774 = vpop.permute.xlu0 %1773
  %1775 = vrot.lane.b32.xlu0 %v1697, 127
  %v1776 = vpop.permute.xlu0 %1775
  %1777 = vrot.lane.b32.xlu0 %v1698, 127
  %v1778 = vpop.permute.xlu0 %1777
  %1779 = vrot.lane.b32.xlu0 %v1699, 127
  %v1780 = vpop.permute.xlu0 %1779
  %1781 = vrot.lane.b32.xlu0 %v1700, 127
  %v1782 = vpop.permute.xlu0 %1781
  %1783 = vrot.lane.b32.xlu0 %v1701, 127
  %v1784 = vpop.permute.xlu0 %1783
  %1785 = vrot.lane.b32.xlu0 %v1702, 127
  %v1786 = vpop.permute.xlu0 %1785
  %v1787 = vsel %vm258, %v1732, %v1734
  %v1788 = vsel %vm258, %v1734, %v1736
  %v1789 = vsel %vm258, %v1736, %v1738
  %v1790 = vsel %vm258, %v1738, %v1740
  %v1791 = vsel %vm258, %v1740, %v1742
  %v1792 = vsel %vm258, %v1742, %v1744
  %v1793 = vsel %vm258, %v1746, %v1748
  %v1794 = vsel %vm258, %v1748, %v1750
  %v1795 = vsel %vm258, %v1750, %v1752
  %v1796 = vsel %vm258, %v1752, %v1754
  %v1797 = vsel %vm258, %v1754, %v1756
  %v1798 = vsel %vm258, %v1756, %v1758
  %v1799 = vsel %vm258, %v1760, %v1762
  %v1800 = vsel %vm258, %v1762, %v1764
  %v1801 = vsel %vm258, %v1764, %v1766
  %v1802 = vsel %vm258, %v1766, %v1768
  %v1803 = vsel %vm258, %v1768, %v1770
  %v1804 = vsel %vm258, %v1770, %v1772
  %v1805 = vsel %vm258, %v1774, %v1776
  %v1806 = vsel %vm258, %v1776, %v1778
  %v1807 = vsel %vm258, %v1778, %v1780
  %v1808 = vsel %vm258, %v1780, %v1782
  %v1809 = vsel %vm258, %v1782, %v1784
  %v1810 = vsel %vm258, %v1784, %v1786
  %1835 = vst [vmem:[#allocation2 + $0x3c0] sm:$0xff] %v1787
  %1836 = vst [vmem:[#allocation2 + $0x3c8] sm:$0xff] %v1788
  %1837 = vst [vmem:[#allocation2 + $0x3d0] sm:$0xff] %v1789
  %1838 = vst [vmem:[#allocation2 + $0x3d8] sm:$0xff] %v1790
  %1839 = vst [vmem:[#allocation2 + $0x3e0] sm:$0xff] %v1791
  %1840 = vst [vmem:[#allocation2 + $0x3e8] sm:$0xff] %v1792
  %1841 = vst [vmem:[#allocation2 + $0x3f0] sm:$0xff] %v1793
  %1842 = vst [vmem:[#allocation2 + $0x3f8] sm:$0xff] %v1794
  %1843 = vst [vmem:[#allocation2 + $0x400] sm:$0xff] %v1795
  %1844 = vst [vmem:[#allocation2 + $0x408] sm:$0xff] %v1796
  %1845 = vst [vmem:[#allocation2 + $0x410] sm:$0xff] %v1797
  %1846 = vst [vmem:[#allocation2 + $0x418] sm:$0xff] %v1798
  %1847 = vst [vmem:[#allocation2 + $0x420] sm:$0xff] %v1799
  %1848 = vst [vmem:[#allocation2 + $0x428] sm:$0xff] %v1800
  %1849 = vst [vmem:[#allocation2 + $0x430] sm:$0xff] %v1801
  %1850 = vst [vmem:[#allocation2 + $0x438] sm:$0xff] %v1802
  %1851 = vst [vmem:[#allocation2 + $0x440] sm:$0xff] %v1803
  %1852 = vst [vmem:[#allocation2 + $0x448] sm:$0xff] %v1804
  %1853 = vst [vmem:[#allocation2 + $0x450] sm:$0xff] %v1805
  %1854 = vst [vmem:[#allocation2 + $0x458] sm:$0xff] %v1806
  %1855 = vst [vmem:[#allocation2 + $0x460] sm:$0xff] %v1807
  %1856 = vst [vmem:[#allocation2 + $0x468] sm:$0xff] %v1808
  %1857 = vst [vmem:[#allocation2 + $0x470] sm:$0xff] %v1809
  %1858 = vst [vmem:[#allocation2 + $0x478] sm:$0xff] %v1810
  %v1859 = vld [vmem:[#allocation3 + $0x8] sm:$0xff]
  %v1860 = vld [vmem:[#allocation3 + $0x10] sm:$0xff]
  %v1861 = vld [vmem:[#allocation3 + $0x18] sm:$0xff]
  %v1862 = vld [vmem:[#allocation3 + $0x20] sm:$0xff]
  %v1863 = vld [vmem:[#allocation3 + $0x28] sm:$0xff]
  %v1864 = vld [vmem:[#allocation3 + $0x30] sm:$0xff]
  %v1865 = vld [vmem:[#allocation3 + $0x38] sm:$0xff]
  %v1866 = vld [vmem:[#allocation3 + $0x48] sm:$0xff]
  %v1867 = vld [vmem:[#allocation3 + $0x50] sm:$0xff]
  %v1868 = vld [vmem:[#allocation3 + $0x58] sm:$0xff]
  %v1869 = vld [vmem:[#allocation3 + $0x60] sm:$0xff]
  %v1870 = vld [vmem:[#allocation3 + $0x68] sm:$0xff]
  %v1871 = vld [vmem:[#allocation3 + $0x70] sm:$0xff]
  %v1872 = vld [vmem:[#allocation3 + $0x78] sm:$0xff]
  %v1873 = vld [vmem:[#allocation3 + $0x88] sm:$0xff]
  %v1874 = vld [vmem:[#allocation3 + $0x90] sm:$0xff]
  %v1875 = vld [vmem:[#allocation3 + $0x98] sm:$0xff]
  %v1876 = vld [vmem:[#allocation3 + $0xa0] sm:$0xff]
  %v1877 = vld [vmem:[#allocation3 + $0xa8] sm:$0xff]
  %v1878 = vld [vmem:[#allocation3 + $0xb0] sm:$0xff]
  %v1879 = vld [vmem:[#allocation3 + $0xb8] sm:$0xff]
  %v1880 = vld [vmem:[#allocation3 + $0xc8] sm:$0xff]
  %v1881 = vld [vmem:[#allocation3 + $0xd0] sm:$0xff]
  %v1882 = vld [vmem:[#allocation3 + $0xd8] sm:$0xff]
  %v1883 = vld [vmem:[#allocation3 + $0xe0] sm:$0xff]
  %v1884 = vld [vmem:[#allocation3 + $0xe8] sm:$0xff]
  %v1885 = vld [vmem:[#allocation3 + $0xf0] sm:$0xff]
  %v1886 = vld [vmem:[#allocation3 + $0xf8] sm:$0xff]
  %1915 = vrot.lane.b32.xlu0 %v1859, 111
  %v1916 = vpop.permute.xlu0 %1915
  %1917 = vrot.lane.b32.xlu0 %v1860, 111
  %v1918 = vpop.permute.xlu0 %1917
  %1919 = vrot.lane.b32.xlu0 %v1861, 111
  %v1920 = vpop.permute.xlu0 %1919
  %1921 = vrot.lane.b32.xlu0 %v1862, 111
  %v1922 = vpop.permute.xlu0 %1921
  %1923 = vrot.lane.b32.xlu0 %v1863, 111
  %v1924 = vpop.permute.xlu0 %1923
  %1925 = vrot.lane.b32.xlu0 %v1864, 111
  %v1926 = vpop.permute.xlu0 %1925
  %1927 = vrot.lane.b32.xlu0 %v1865, 111
  %v1928 = vpop.permute.xlu0 %1927
  %1929 = vrot.lane.b32.xlu0 %v1866, 111
  %v1930 = vpop.permute.xlu0 %1929
  %1931 = vrot.lane.b32.xlu0 %v1867, 111
  %v1932 = vpop.permute.xlu0 %1931
  %1933 = vrot.lane.b32.xlu0 %v1868, 111
  %v1934 = vpop.permute.xlu0 %1933
  %1935 = vrot.lane.b32.xlu0 %v1869, 111
  %v1936 = vpop.permute.xlu0 %1935
  %1937 = vrot.lane.b32.xlu0 %v1870, 111
  %v1938 = vpop.permute.xlu0 %1937
  %1939 = vrot.lane.b32.xlu0 %v1871, 111
  %v1940 = vpop.permute.xlu0 %1939
  %1941 = vrot.lane.b32.xlu0 %v1872, 111
  %v1942 = vpop.permute.xlu0 %1941
  %1943 = vrot.lane.b32.xlu0 %v1873, 111
  %v1944 = vpop.permute.xlu0 %1943
  %1945 = vrot.lane.b32.xlu0 %v1874, 111
  %v1946 = vpop.permute.xlu0 %1945
  %1947 = vrot.lane.b32.xlu0 %v1875, 111
  %v1948 = vpop.permute.xlu0 %1947
  %1949 = vrot.lane.b32.xlu0 %v1876, 111
  %v1950 = vpop.permute.xlu0 %1949
  %1951 = vrot.lane.b32.xlu0 %v1877, 111
  %v1952 = vpop.permute.xlu0 %1951
  %1953 = vrot.lane.b32.xlu0 %v1878, 111
  %v1954 = vpop.permute.xlu0 %1953
  %1955 = vrot.lane.b32.xlu0 %v1879, 111
  %v1956 = vpop.permute.xlu0 %1955
  %1957 = vrot.lane.b32.xlu0 %v1880, 111
  %v1958 = vpop.permute.xlu0 %1957
  %1959 = vrot.lane.b32.xlu0 %v1881, 111
  %v1960 = vpop.permute.xlu0 %1959
  %1961 = vrot.lane.b32.xlu0 %v1882, 111
  %v1962 = vpop.permute.xlu0 %1961
  %1963 = vrot.lane.b32.xlu0 %v1883, 111
  %v1964 = vpop.permute.xlu0 %1963
  %1965 = vrot.lane.b32.xlu0 %v1884, 111
  %v1966 = vpop.permute.xlu0 %1965
  %1967 = vrot.lane.b32.xlu0 %v1885, 111
  %v1968 = vpop.permute.xlu0 %1967
  %1969 = vrot.lane.b32.xlu0 %v1886, 111
  %v1970 = vpop.permute.xlu0 %1969
  %v1971 = vsel %vm305, %v1916, %v1918
  %v1972 = vsel %vm305, %v1918, %v1920
  %v1973 = vsel %vm305, %v1920, %v1922
  %v1974 = vsel %vm305, %v1922, %v1924
  %v1975 = vsel %vm305, %v1924, %v1926
  %v1976 = vsel %vm305, %v1926, %v1928
  %v1977 = vsel %vm305, %v1930, %v1932
  %v1978 = vsel %vm305, %v1932, %v1934
  %v1979 = vsel %vm305, %v1934, %v1936
  %v1980 = vsel %vm305, %v1936, %v1938
  %v1981 = vsel %vm305, %v1938, %v1940
  %v1982 = vsel %vm305, %v1940, %v1942
  %v1983 = vsel %vm305, %v1944, %v1946
  %v1984 = vsel %vm305, %v1946, %v1948
  %v1985 = vsel %vm305, %v1948, %v1950
  %v1986 = vsel %vm305, %v1950, %v1952
  %v1987 = vsel %vm305, %v1952, %v1954
  %v1988 = vsel %vm305, %v1954, %v1956
  %v1989 = vsel %vm305, %v1958, %v1960
  %v1990 = vsel %vm305, %v1960, %v1962
  %v1991 = vsel %vm305, %v1962, %v1964
  %v1992 = vsel %vm305, %v1964, %v1966
  %v1993 = vsel %vm305, %v1966, %v1968
  %v1994 = vsel %vm305, %v1968, %v1970
  %2019 = vst [vmem:[#allocation2 + $0x480] sm:$0xff] %v1971
  %2020 = vst [vmem:[#allocation2 + $0x488] sm:$0xff] %v1972
  %2021 = vst [vmem:[#allocation2 + $0x490] sm:$0xff] %v1973
  %2022 = vst [vmem:[#allocation2 + $0x498] sm:$0xff] %v1974
  %2023 = vst [vmem:[#allocation2 + $0x4a0] sm:$0xff] %v1975
  %2024 = vst [vmem:[#allocation2 + $0x4a8] sm:$0xff] %v1976
  %2025 = vst [vmem:[#allocation2 + $0x4b0] sm:$0xff] %v1977
  %2026 = vst [vmem:[#allocation2 + $0x4b8] sm:$0xff] %v1978
  %2027 = vst [vmem:[#allocation2 + $0x4c0] sm:$0xff] %v1979
  %2028 = vst [vmem:[#allocation2 + $0x4c8] sm:$0xff] %v1980
  %2029 = vst [vmem:[#allocation2 + $0x4d0] sm:$0xff] %v1981
  %2030 = vst [vmem:[#allocation2 + $0x4d8] sm:$0xff] %v1982
  %2031 = vst [vmem:[#allocation2 + $0x4e0] sm:$0xff] %v1983
  %2032 = vst [vmem:[#allocation2 + $0x4e8] sm:$0xff] %v1984
  %2033 = vst [vmem:[#allocation2 + $0x4f0] sm:$0xff] %v1985
  %2034 = vst [vmem:[#allocation2 + $0x4f8] sm:$0xff] %v1986
  %2035 = vst [vmem:[#allocation2 + $0x500] sm:$0xff] %v1987
  %2036 = vst [vmem:[#allocation2 + $0x508] sm:$0xff] %v1988
  %2037 = vst [vmem:[#allocation2 + $0x510] sm:$0xff] %v1989
  %2038 = vst [vmem:[#allocation2 + $0x518] sm:$0xff] %v1990
  %2039 = vst [vmem:[#allocation2 + $0x520] sm:$0xff] %v1991
  %2040 = vst [vmem:[#allocation2 + $0x528] sm:$0xff] %v1992
  %2041 = vst [vmem:[#allocation2 + $0x530] sm:$0xff] %v1993
  %2042 = vst [vmem:[#allocation2 + $0x538] sm:$0xff] %v1994
  %v2043 = vld [vmem:[#allocation3 + $0x8] sm:$0xff]
  %v2044 = vld [vmem:[#allocation3 + $0x10] sm:$0xff]
  %v2045 = vld [vmem:[#allocation3 + $0x18] sm:$0xff]
  %v2046 = vld [vmem:[#allocation3 + $0x20] sm:$0xff]
  %v2047 = vld [vmem:[#allocation3 + $0x28] sm:$0xff]
  %v2048 = vld [vmem:[#allocation3 + $0x30] sm:$0xff]
  %v2049 = vld [vmem:[#allocation3 + $0x38] sm:$0xff]
  %v2050 = vld [vmem:[#allocation3 + $0x48] sm:$0xff]
  %v2051 = vld [vmem:[#allocation3 + $0x50] sm:$0xff]
  %v2052 = vld [vmem:[#allocation3 + $0x58] sm:$0xff]
  %v2053 = vld [vmem:[#allocation3 + $0x60] sm:$0xff]
  %v2054 = vld [vmem:[#allocation3 + $0x68] sm:$0xff]
  %v2055 = vld [vmem:[#allocation3 + $0x70] sm:$0xff]
  %v2056 = vld [vmem:[#allocation3 + $0x78] sm:$0xff]
  %v2057 = vld [vmem:[#allocation3 + $0x88] sm:$0xff]
  %v2058 = vld [vmem:[#allocation3 + $0x90] sm:$0xff]
  %v2059 = vld [vmem:[#allocation3 + $0x98] sm:$0xff]
  %v2060 = vld [vmem:[#allocation3 + $0xa0] sm:$0xff]
  %v2061 = vld [vmem:[#allocation3 + $0xa8] sm:$0xff]
  %v2062 = vld [vmem:[#allocation3 + $0xb0] sm:$0xff]
  %v2063 = vld [vmem:[#allocation3 + $0xb8] sm:$0xff]
  %v2064 = vld [vmem:[#allocation3 + $0xc8] sm:$0xff]
  %v2065 = vld [vmem:[#allocation3 + $0xd0] sm:$0xff]
  %v2066 = vld [vmem:[#allocation3 + $0xd8] sm:$0xff]
  %v2067 = vld [vmem:[#allocation3 + $0xe0] sm:$0xff]
  %v2068 = vld [vmem:[#allocation3 + $0xe8] sm:$0xff]
  %v2069 = vld [vmem:[#allocation3 + $0xf0] sm:$0xff]
  %v2070 = vld [vmem:[#allocation3 + $0xf8] sm:$0xff]
  %2099 = vrot.lane.b32.xlu0 %v2043, 110
  %v2100 = vpop.permute.xlu0 %2099
  %2101 = vrot.lane.b32.xlu0 %v2044, 110
  %v2102 = vpop.permute.xlu0 %2101
  %2103 = vrot.lane.b32.xlu0 %v2045, 110
  %v2104 = vpop.permute.xlu0 %2103
  %2105 = vrot.lane.b32.xlu0 %v2046, 110
  %v2106 = vpop.permute.xlu0 %2105
  %2107 = vrot.lane.b32.xlu0 %v2047, 110
  %v2108 = vpop.permute.xlu0 %2107
  %2109 = vrot.lane.b32.xlu0 %v2048, 110
  %v2110 = vpop.permute.xlu0 %2109
  %2111 = vrot.lane.b32.xlu0 %v2049, 110
  %v2112 = vpop.permute.xlu0 %2111
  %2113 = vrot.lane.b32.xlu0 %v2050, 110
  %v2114 = vpop.permute.xlu0 %2113
  %2115 = vrot.lane.b32.xlu0 %v2051, 110
  %v2116 = vpop.permute.xlu0 %2115
  %2117 = vrot.lane.b32.xlu0 %v2052, 110
  %v2118 = vpop.permute.xlu0 %2117
  %2119 = vrot.lane.b32.xlu0 %v2053, 110
  %v2120 = vpop.permute.xlu0 %2119
  %2121 = vrot.lane.b32.xlu0 %v2054, 110
  %v2122 = vpop.permute.xlu0 %2121
  %2123 = vrot.lane.b32.xlu0 %v2055, 110
  %v2124 = vpop.permute.xlu0 %2123
  %2125 = vrot.lane.b32.xlu0 %v2056, 110
  %v2126 = vpop.permute.xlu0 %2125
  %2127 = vrot.lane.b32.xlu0 %v2057, 110
  %v2128 = vpop.permute.xlu0 %2127
  %2129 = vrot.lane.b32.xlu0 %v2058, 110
  %v2130 = vpop.permute.xlu0 %2129
  %2131 = vrot.lane.b32.xlu0 %v2059, 110
  %v2132 = vpop.permute.xlu0 %2131
  %2133 = vrot.lane.b32.xlu0 %v2060, 110
  %v2134 = vpop.permute.xlu0 %2133
  %2135 = vrot.lane.b32.xlu0 %v2061, 110
  %v2136 = vpop.permute.xlu0 %2135
  %2137 = vrot.lane.b32.xlu0 %v2062, 110
  %v2138 = vpop.permute.xlu0 %2137
  %2139 = vrot.lane.b32.xlu0 %v2063, 110
  %v2140 = vpop.permute.xlu0 %2139
  %2141 = vrot.lane.b32.xlu0 %v2064, 110
  %v2142 = vpop.permute.xlu0 %2141
  %2143 = vrot.lane.b32.xlu0 %v2065, 110
  %v2144 = vpop.permute.xlu0 %2143
  %2145 = vrot.lane.b32.xlu0 %v2066, 110
  %v2146 = vpop.permute.xlu0 %2145
  %2147 = vrot.lane.b32.xlu0 %v2067, 110
  %v2148 = vpop.permute.xlu0 %2147
  %2149 = vrot.lane.b32.xlu0 %v2068, 110
  %v2150 = vpop.permute.xlu0 %2149
  %2151 = vrot.lane.b32.xlu0 %v2069, 110
  %v2152 = vpop.permute.xlu0 %2151
  %2153 = vrot.lane.b32.xlu0 %v2070, 110
  %v2154 = vpop.permute.xlu0 %2153
  %v2155 = vsel %vm352, %v2100, %v2102
  %v2156 = vsel %vm352, %v2102, %v2104
  %v2157 = vsel %vm352, %v2104, %v2106
  %v2158 = vsel %vm352, %v2106, %v2108
  %v2159 = vsel %vm352, %v2108, %v2110
  %v2160 = vsel %vm352, %v2110, %v2112
  %v2161 = vsel %vm352, %v2114, %v2116
  %v2162 = vsel %vm352, %v2116, %v2118
  %v2163 = vsel %vm352, %v2118, %v2120
  %v2164 = vsel %vm352, %v2120, %v2122
  %v2165 = vsel %vm352, %v2122, %v2124
  %v2166 = vsel %vm352, %v2124, %v2126
  %v2167 = vsel %vm352, %v2128, %v2130
  %v2168 = vsel %vm352, %v2130, %v2132
  %v2169 = vsel %vm352, %v2132, %v2134
  %v2170 = vsel %vm352, %v2134, %v2136
  %v2171 = vsel %vm352, %v2136, %v2138
  %v2172 = vsel %vm352, %v2138, %v2140
  %v2173 = vsel %vm352, %v2142, %v2144
  %v2174 = vsel %vm352, %v2144, %v2146
  %v2175 = vsel %vm352, %v2146, %v2148
  %v2176 = vsel %vm352, %v2148, %v2150
  %v2177 = vsel %vm352, %v2150, %v2152
  %v2178 = vsel %vm352, %v2152, %v2154
  %2203 = vst [vmem:[#allocation2 + $0x540] sm:$0xff] %v2155
  %2204 = vst [vmem:[#allocation2 + $0x548] sm:$0xff] %v2156
  %2205 = vst [vmem:[#allocation2 + $0x550] sm:$0xff] %v2157
  %2206 = vst [vmem:[#allocation2 + $0x558] sm:$0xff] %v2158
  %2207 = vst [vmem:[#allocation2 + $0x560] sm:$0xff] %v2159
  %2208 = vst [vmem:[#allocation2 + $0x568] sm:$0xff] %v2160
  %2209 = vst [vmem:[#allocation2 + $0x570] sm:$0xff] %v2161
  %2210 = vst [vmem:[#allocation2 + $0x578] sm:$0xff] %v2162
  %2211 = vst [vmem:[#allocation2 + $0x580] sm:$0xff] %v2163
  %2212 = vst [vmem:[#allocation2 + $0x588] sm:$0xff] %v2164
  %2213 = vst [vmem:[#allocation2 + $0x590] sm:$0xff] %v2165
  %2214 = vst [vmem:[#allocation2 + $0x598] sm:$0xff] %v2166
  %2215 = vst [vmem:[#allocation2 + $0x5a0] sm:$0xff] %v2167
  %2216 = vst [vmem:[#allocation2 + $0x5a8] sm:$0xff] %v2168
  %2217 = vst [vmem:[#allocation2 + $0x5b0] sm:$0xff] %v2169
  %2218 = vst [vmem:[#allocation2 + $0x5b8] sm:$0xff] %v2170
  %2219 = vst [vmem:[#allocation2 + $0x5c0] sm:$0xff] %v2171
  %2220 = vst [vmem:[#allocation2 + $0x5c8] sm:$0xff] %v2172
  %2221 = vst [vmem:[#allocation2 + $0x5d0] sm:$0xff] %v2173
  %2222 = vst [vmem:[#allocation2 + $0x5d8] sm:$0xff] %v2174
  %2223 = vst [vmem:[#allocation2 + $0x5e0] sm:$0xff] %v2175
  %2224 = vst [vmem:[#allocation2 + $0x5e8] sm:$0xff] %v2176
  %2225 = vst [vmem:[#allocation2 + $0x5f0] sm:$0xff] %v2177
  %2226 = vst [vmem:[#allocation2 + $0x5f8] sm:$0xff] %v2178
  %v2227 = vld [vmem:[#allocation3 + $0x8] sm:$0xff]
  %v2228 = vld [vmem:[#allocation3 + $0x10] sm:$0xff]
  %v2229 = vld [vmem:[#allocation3 + $0x18] sm:$0xff]
  %v2230 = vld [vmem:[#allocation3 + $0x20] sm:$0xff]
  %v2231 = vld [vmem:[#allocation3 + $0x28] sm:$0xff]
  %v2232 = vld [vmem:[#allocation3 + $0x30] sm:$0xff]
  %v2233 = vld [vmem:[#allocation3 + $0x38] sm:$0xff]
  %v2234 = vld [vmem:[#allocation3 + $0x48] sm:$0xff]
  %v2235 = vld [vmem:[#allocation3 + $0x50] sm:$0xff]
  %v2236 = vld [vmem:[#allocation3 + $0x58] sm:$0xff]
  %v2237 = vld [vmem:[#allocation3 + $0x60] sm:$0xff]
  %v2238 = vld [vmem:[#allocation3 + $0x68] sm:$0xff]
  %v2239 = vld [vmem:[#allocation3 + $0x70] sm:$0xff]
  %v2240 = vld [vmem:[#allocation3 + $0x78] sm:$0xff]
  %v2241 = vld [vmem:[#allocation3 + $0x88] sm:$0xff]
  %v2242 = vld [vmem:[#allocation3 + $0x90] sm:$0xff]
  %v2243 = vld [vmem:[#allocation3 + $0x98] sm:$0xff]
  %v2244 = vld [vmem:[#allocation3 + $0xa0] sm:$0xff]
  %v2245 = vld [vmem:[#allocation3 + $0xa8] sm:$0xff]
  %v2246 = vld [vmem:[#allocation3 + $0xb0] sm:$0xff]
  %v2247 = vld [vmem:[#allocation3 + $0xb8] sm:$0xff]
  %v2248 = vld [vmem:[#allocation3 + $0xc8] sm:$0xff]
  %v2249 = vld [vmem:[#allocation3 + $0xd0] sm:$0xff]
  %v2250 = vld [vmem:[#allocation3 + $0xd8] sm:$0xff]
  %v2251 = vld [vmem:[#allocation3 + $0xe0] sm:$0xff]
  %v2252 = vld [vmem:[#allocation3 + $0xe8] sm:$0xff]
  %v2253 = vld [vmem:[#allocation3 + $0xf0] sm:$0xff]
  %v2254 = vld [vmem:[#allocation3 + $0xf8] sm:$0xff]
  %2283 = vrot.lane.b32.xlu0 %v2227, 109
  %v2284 = vpop.permute.xlu0 %2283
  %2285 = vrot.lane.b32.xlu0 %v2228, 109
  %v2286 = vpop.permute.xlu0 %2285
  %2287 = vrot.lane.b32.xlu0 %v2229, 109
  %v2288 = vpop.permute.xlu0 %2287
  %2289 = vrot.lane.b32.xlu0 %v2230, 109
  %v2290 = vpop.permute.xlu0 %2289
  %2291 = vrot.lane.b32.xlu0 %v2231, 109
  %v2292 = vpop.permute.xlu0 %2291
  %2293 = vrot.lane.b32.xlu0 %v2232, 109
  %v2294 = vpop.permute.xlu0 %2293
  %2295 = vrot.lane.b32.xlu0 %v2233, 109
  %v2296 = vpop.permute.xlu0 %2295
  %2297 = vrot.lane.b32.xlu0 %v2234, 109
  %v2298 = vpop.permute.xlu0 %2297
  %2299 = vrot.lane.b32.xlu0 %v2235, 109
  %v2300 = vpop.permute.xlu0 %2299
  %2301 = vrot.lane.b32.xlu0 %v2236, 109
  %v2302 = vpop.permute.xlu0 %2301
  %2303 = vrot.lane.b32.xlu0 %v2237, 109
  %v2304 = vpop.permute.xlu0 %2303
  %2305 = vrot.lane.b32.xlu0 %v2238, 109
  %v2306 = vpop.permute.xlu0 %2305
  %2307 = vrot.lane.b32.xlu0 %v2239, 109
  %v2308 = vpop.permute.xlu0 %2307
  %2309 = vrot.lane.b32.xlu0 %v2240, 109
  %v2310 = vpop.permute.xlu0 %2309
  %2311 = vrot.lane.b32.xlu0 %v2241, 109
  %v2312 = vpop.permute.xlu0 %2311
  %2313 = vrot.lane.b32.xlu0 %v2242, 109
  %v2314 = vpop.permute.xlu0 %2313
  %2315 = vrot.lane.b32.xlu0 %v2243, 109
  %v2316 = vpop.permute.xlu0 %2315
  %2317 = vrot.lane.b32.xlu0 %v2244, 109
  %v2318 = vpop.permute.xlu0 %2317
  %2319 = vrot.lane.b32.xlu0 %v2245, 109
  %v2320 = vpop.permute.xlu0 %2319
  %2321 = vrot.lane.b32.xlu0 %v2246, 109
  %v2322 = vpop.permute.xlu0 %2321
  %2323 = vrot.lane.b32.xlu0 %v2247, 109
  %v2324 = vpop.permute.xlu0 %2323
  %2325 = vrot.lane.b32.xlu0 %v2248, 109
  %v2326 = vpop.permute.xlu0 %2325
  %2327 = vrot.lane.b32.xlu0 %v2249, 109
  %v2328 = vpop.permute.xlu0 %2327
  %2329 = vrot.lane.b32.xlu0 %v2250, 109
  %v2330 = vpop.permute.xlu0 %2329
  %2331 = vrot.lane.b32.xlu0 %v2251, 109
  %v2332 = vpop.permute.xlu0 %2331
  %2333 = vrot.lane.b32.xlu0 %v2252, 109
  %v2334 = vpop.permute.xlu0 %2333
  %2335 = vrot.lane.b32.xlu0 %v2253, 109
  %v2336 = vpop.permute.xlu0 %2335
  %2337 = vrot.lane.b32.xlu0 %v2254, 109
  %v2338 = vpop.permute.xlu0 %2337
  %v2339 = vsel %vm399, %v2284, %v2286
  %v2340 = vsel %vm399, %v2286, %v2288
  %v2341 = vsel %vm399, %v2288, %v2290
  %v2342 = vsel %vm399, %v2290, %v2292
  %v2343 = vsel %vm399, %v2292, %v2294
  %v2344 = vsel %vm399, %v2294, %v2296
  %v2345 = vsel %vm399, %v2298, %v2300
  %v2346 = vsel %vm399, %v2300, %v2302
  %v2347 = vsel %vm399, %v2302, %v2304
  %v2348 = vsel %vm399, %v2304, %v2306
  %v2349 = vsel %vm399, %v2306, %v2308
  %v2350 = vsel %vm399, %v2308, %v2310
  %v2351 = vsel %vm399, %v2312, %v2314
  %v2352 = vsel %vm399, %v2314, %v2316
  %v2353 = vsel %vm399, %v2316, %v2318
  %v2354 = vsel %vm399, %v2318, %v2320
  %v2355 = vsel %vm399, %v2320, %v2322
  %v2356 = vsel %vm399, %v2322, %v2324
  %v2357 = vsel %vm399, %v2326, %v2328
  %v2358 = vsel %vm399, %v2328, %v2330
  %v2359 = vsel %vm399, %v2330, %v2332
  %v2360 = vsel %vm399, %v2332, %v2334
  %v2361 = vsel %vm399, %v2334, %v2336
  %v2362 = vsel %vm399, %v2336, %v2338
  %2387 = vst [vmem:[#allocation2 + $0x600] sm:$0xff] %v2339
  %2388 = vst [vmem:[#allocation2 + $0x608] sm:$0xff] %v2340
  %2389 = vst [vmem:[#allocation2 + $0x610] sm:$0xff] %v2341
  %2390 = vst [vmem:[#allocation2 + $0x618] sm:$0xff] %v2342
  %2391 = vst [vmem:[#allocation2 + $0x620] sm:$0xff] %v2343
  %2392 = vst [vmem:[#allocation2 + $0x628] sm:$0xff] %v2344
  %2393 = vst [vmem:[#allocation2 + $0x630] sm:$0xff] %v2345
  %2394 = vst [vmem:[#allocation2 + $0x638] sm:$0xff] %v2346
  %2395 = vst [vmem:[#allocation2 + $0x640] sm:$0xff] %v2347
  %2396 = vst [vmem:[#allocation2 + $0x648] sm:$0xff] %v2348
  %2397 = vst [vmem:[#allocation2 + $0x650] sm:$0xff] %v2349
  %2398 = vst [vmem:[#allocation2 + $0x658] sm:$0xff] %v2350
  %2399 = vst [vmem:[#allocation2 + $0x660] sm:$0xff] %v2351
  %2400 = vst [vmem:[#allocation2 + $0x668] sm:$0xff] %v2352
  %2401 = vst [vmem:[#allocation2 + $0x670] sm:$0xff] %v2353
  %2402 = vst [vmem:[#allocation2 + $0x678] sm:$0xff] %v2354
  %2403 = vst [vmem:[#allocation2 + $0x680] sm:$0xff] %v2355
  %2404 = vst [vmem:[#allocation2 + $0x688] sm:$0xff] %v2356
  %2405 = vst [vmem:[#allocation2 + $0x690] sm:$0xff] %v2357
  %2406 = vst [vmem:[#allocation2 + $0x698] sm:$0xff] %v2358
  %2407 = vst [vmem:[#allocation2 + $0x6a0] sm:$0xff] %v2359
  %2408 = vst [vmem:[#allocation2 + $0x6a8] sm:$0xff] %v2360
  %2409 = vst [vmem:[#allocation2 + $0x6b0] sm:$0xff] %v2361
  %2410 = vst [vmem:[#allocation2 + $0x6b8] sm:$0xff] %v2362
  %v2411 = vld [vmem:[%s4] sm:$0xff]
  %v2412 = vld [vmem:[%s4 + $0x8] sm:$0xff]
  %v2413 = vld [vmem:[%s4 + $0x10] sm:$0xff]
  %v2414 = vld [vmem:[%s4 + $0x18] sm:$0xff]
  %v2415 = vld [vmem:[%s4 + $0x20] sm:$0xff]
  %v2416 = vld [vmem:[%s4 + $0x28] sm:$0xff]
  %v2417 = vld [vmem:[%s4 + $0x30] sm:$0xff]
  %v2418 = vld [vmem:[%s4 + $0x38] sm:$0xff]
  %v2419 = vld [vmem:[%s4 + $0x40] sm:$0xff]
  %v2420 = vld [vmem:[%s4 + $0x48] sm:$0xff]
  %v2421 = vld [vmem:[%s4 + $0x50] sm:$0xff]
  %v2422 = vld [vmem:[%s4 + $0x58] sm:$0xff]
  %v2423 = vld [vmem:[#allocation2] sm:$0xff]
  %v2424 = vld [vmem:[#allocation2 + $0x8] sm:$0xff]
  %v2425 = vld [vmem:[#allocation2 + $0x10] sm:$0xff]
  %v2426 = vld [vmem:[#allocation2 + $0x18] sm:$0xff]
  %v2427 = vld [vmem:[#allocation2 + $0x20] sm:$0xff]
  %v2428 = vld [vmem:[#allocation2 + $0x28] sm:$0xff]
  %v2429 = vld [vmem:[#allocation2 + $0x30] sm:$0xff]
  %v2430 = vld [vmem:[#allocation2 + $0x38] sm:$0xff]
  %v2431 = vld [vmem:[#allocation2 + $0x40] sm:$0xff]
  %v2432 = vld [vmem:[#allocation2 + $0x48] sm:$0xff]
  %v2433 = vld [vmem:[#allocation2 + $0x50] sm:$0xff]
  %v2434 = vld [vmem:[#allocation2 + $0x58] sm:$0xff]
  %v2435 = vld [vmem:[#allocation2 + $0x60] sm:$0xff]
  %v2436 = vld [vmem:[#allocation2 + $0x68] sm:$0xff]
  %v2437 = vld [vmem:[#allocation2 + $0x70] sm:$0xff]
  %v2438 = vld [vmem:[#allocation2 + $0x78] sm:$0xff]
  %v2439 = vld [vmem:[#allocation2 + $0x80] sm:$0xff]
  %v2440 = vld [vmem:[#allocation2 + $0x88] sm:$0xff]
  %v2441 = vld [vmem:[#allocation2 + $0x90] sm:$0xff]
  %v2442 = vld [vmem:[#allocation2 + $0x98] sm:$0xff]
  %v2443 = vld [vmem:[#allocation2 + $0xa0] sm:$0xff]
  %v2444 = vld [vmem:[#allocation2 + $0xa8] sm:$0xff]
  %v2445 = vld [vmem:[#allocation2 + $0xb0] sm:$0xff]
  %v2446 = vld [vmem:[#allocation2 + $0xb8] sm:$0xff]
  %v2447 = vld [vmem:[#allocation2 + $0xc0] sm:$0xff]
  %v2448 = vld [vmem:[#allocation2 + $0xc8] sm:$0xff]
  %v2449 = vld [vmem:[#allocation2 + $0xd0] sm:$0xff]
  %v2450 = vld [vmem:[#allocation2 + $0xd8] sm:$0xff]
  %v2451 = vld [vmem:[#allocation2 + $0xe0] sm:$0xff]
  %v2452 = vld [vmem:[#allocation2 + $0xe8] sm:$0xff]
  %v2453 = vld [vmem:[#allocation2 + $0xf0] sm:$0xff]
  %v2454 = vld [vmem:[#allocation2 + $0xf8] sm:$0xff]
  %v2455 = vld [vmem:[#allocation2 + $0x100] sm:$0xff]
  %v2456 = vld [vmem:[#allocation2 + $0x108] sm:$0xff]
  %v2457 = vld [vmem:[#allocation2 + $0x110] sm:$0xff]
  %v2458 = vld [vmem:[#allocation2 + $0x118] sm:$0xff]
  %v2459 = vld [vmem:[#allocation2 + $0x120] sm:$0xff]
  %v2460 = vld [vmem:[#allocation2 + $0x128] sm:$0xff]
  %v2461 = vld [vmem:[#allocation2 + $0x130] sm:$0xff]
  %v2462 = vld [vmem:[#allocation2 + $0x138] sm:$0xff]
  %v2463 = vld [vmem:[#allocation2 + $0x140] sm:$0xff]
  %v2464 = vld [vmem:[#allocation2 + $0x148] sm:$0xff]
  %v2465 = vld [vmem:[#allocation2 + $0x150] sm:$0xff]
  %v2466 = vld [vmem:[#allocation2 + $0x158] sm:$0xff]
  %v2467 = vld [vmem:[#allocation2 + $0x160] sm:$0xff]
  %v2468 = vld [vmem:[#allocation2 + $0x168] sm:$0xff]
  %v2469 = vld [vmem:[#allocation2 + $0x170] sm:$0xff]
  %v2470 = vld [vmem:[#allocation2 + $0x178] sm:$0xff]
  %v2471 = vld [vmem:[#allocation2 + $0x180] sm:$0xff]
  %v2472 = vld [vmem:[#allocation2 + $0x188] sm:$0xff]
  %v2473 = vld [vmem:[#allocation2 + $0x190] sm:$0xff]
  %v2474 = vld [vmem:[#allocation2 + $0x198] sm:$0xff]
  %v2475 = vld [vmem:[#allocation2 + $0x1a0] sm:$0xff]
  %v2476 = vld [vmem:[#allocation2 + $0x1a8] sm:$0xff]
  %v2477 = vld [vmem:[#allocation2 + $0x1b0] sm:$0xff]
  %v2478 = vld [vmem:[#allocation2 + $0x1b8] sm:$0xff]
  %v2479 = vld [vmem:[#allocation2 + $0x1c0] sm:$0xff]
  %v2480 = vld [vmem:[#allocation2 + $0x1c8] sm:$0xff]
  %v2481 = vld [vmem:[#allocation2 + $0x1d0] sm:$0xff]
  %v2482 = vld [vmem:[#allocation2 + $0x1d8] sm:$0xff]
  %v2483 = vld [vmem:[#allocation2 + $0x1e0] sm:$0xff]
  %v2484 = vld [vmem:[#allocation2 + $0x1e8] sm:$0xff]
  %v2485 = vld [vmem:[#allocation2 + $0x1f0] sm:$0xff]
  %v2486 = vld [vmem:[#allocation2 + $0x1f8] sm:$0xff]
  %v2487 = vld [vmem:[#allocation2 + $0x200] sm:$0xff]
  %v2488 = vld [vmem:[#allocation2 + $0x208] sm:$0xff]
  %v2489 = vld [vmem:[#allocation2 + $0x210] sm:$0xff]
  %v2490 = vld [vmem:[#allocation2 + $0x218] sm:$0xff]
  %v2491 = vld [vmem:[#allocation2 + $0x220] sm:$0xff]
  %v2492 = vld [vmem:[#allocation2 + $0x228] sm:$0xff]
  %v2493 = vld [vmem:[#allocation2 + $0x230] sm:$0xff]
  %v2494 = vld [vmem:[#allocation2 + $0x238] sm:$0xff]
  %v2495 = vld [vmem:[#allocation2 + $0x240] sm:$0xff]
  %v2496 = vld [vmem:[#allocation2 + $0x248] sm:$0xff]
  %v2497 = vld [vmem:[#allocation2 + $0x250] sm:$0xff]
  %v2498 = vld [vmem:[#allocation2 + $0x258] sm:$0xff]
  %v2499 = vld [vmem:[#allocation2 + $0x260] sm:$0xff]
  %v2500 = vld [vmem:[#allocation2 + $0x268] sm:$0xff]
  %v2501 = vld [vmem:[#allocation2 + $0x270] sm:$0xff]
  %v2502 = vld [vmem:[#allocation2 + $0x278] sm:$0xff]
  %v2503 = vld [vmem:[#allocation2 + $0x280] sm:$0xff]
  %v2504 = vld [vmem:[#allocation2 + $0x288] sm:$0xff]
  %v2505 = vld [vmem:[#allocation2 + $0x290] sm:$0xff]
  %v2506 = vld [vmem:[#allocation2 + $0x298] sm:$0xff]
  %v2507 = vld [vmem:[#allocation2 + $0x2a0] sm:$0xff]
  %v2508 = vld [vmem:[#allocation2 + $0x2a8] sm:$0xff]
  %v2509 = vld [vmem:[#allocation2 + $0x2b0] sm:$0xff]
  %v2510 = vld [vmem:[#allocation2 + $0x2b8] sm:$0xff]
  %v2511 = vld [vmem:[#allocation2 + $0x2c0] sm:$0xff]
  %v2512 = vld [vmem:[#allocation2 + $0x2c8] sm:$0xff]
  %v2513 = vld [vmem:[#allocation2 + $0x2d0] sm:$0xff]
  %v2514 = vld [vmem:[#allocation2 + $0x2d8] sm:$0xff]
  %v2515 = vld [vmem:[#allocation2 + $0x2e0] sm:$0xff]
  %v2516 = vld [vmem:[#allocation2 + $0x2e8] sm:$0xff]
  %v2517 = vld [vmem:[#allocation2 + $0x2f0] sm:$0xff]
  %v2518 = vld [vmem:[#allocation2 + $0x2f8] sm:$0xff]
  %v2519 = vld [vmem:[#allocation2 + $0x300] sm:$0xff]
  %v2520 = vld [vmem:[#allocation2 + $0x308] sm:$0xff]
  %v2521 = vld [vmem:[#allocation2 + $0x310] sm:$0xff]
  %v2522 = vld [vmem:[#allocation2 + $0x318] sm:$0xff]
  %v2523 = vld [vmem:[#allocation2 + $0x320] sm:$0xff]
  %v2524 = vld [vmem:[#allocation2 + $0x328] sm:$0xff]
  %v2525 = vld [vmem:[#allocation2 + $0x330] sm:$0xff]
  %v2526 = vld [vmem:[#allocation2 + $0x338] sm:$0xff]
  %v2527 = vld [vmem:[#allocation2 + $0x340] sm:$0xff]
  %v2528 = vld [vmem:[#allocation2 + $0x348] sm:$0xff]
  %v2529 = vld [vmem:[#allocation2 + $0x350] sm:$0xff]
  %v2530 = vld [vmem:[#allocation2 + $0x358] sm:$0xff]
  %v2531 = vld [vmem:[#allocation2 + $0x360] sm:$0xff]
  %v2532 = vld [vmem:[#allocation2 + $0x368] sm:$0xff]
  %v2533 = vld [vmem:[#allocation2 + $0x370] sm:$0xff]
  %v2534 = vld [vmem:[#allocation2 + $0x378] sm:$0xff]
  %v2535 = vld [vmem:[#allocation2 + $0x380] sm:$0xff]
  %v2536 = vld [vmem:[#allocation2 + $0x388] sm:$0xff]
  %v2537 = vld [vmem:[#allocation2 + $0x390] sm:$0xff]
  %v2538 = vld [vmem:[#allocation2 + $0x398] sm:$0xff]
  %v2539 = vld [vmem:[#allocation2 + $0x3a0] sm:$0xff]
  %v2540 = vld [vmem:[#allocation2 + $0x3a8] sm:$0xff]
  %v2541 = vld [vmem:[#allocation2 + $0x3b0] sm:$0xff]
  %v2542 = vld [vmem:[#allocation2 + $0x3b8] sm:$0xff]
  %v2543 = vld [vmem:[#allocation2 + $0x3c0] sm:$0xff]
  %v2544 = vld [vmem:[#allocation2 + $0x3c8] sm:$0xff]
  %v2545 = vld [vmem:[#allocation2 + $0x3d0] sm:$0xff]
  %v2546 = vld [vmem:[#allocation2 + $0x3d8] sm:$0xff]
  %v2547 = vld [vmem:[#allocation2 + $0x3e0] sm:$0xff]
  %v2548 = vld [vmem:[#allocation2 + $0x3e8] sm:$0xff]
  %v2549 = vld [vmem:[#allocation2 + $0x3f0] sm:$0xff]
  %v2550 = vld [vmem:[#allocation2 + $0x3f8] sm:$0xff]
  %v2551 = vld [vmem:[#allocation2 + $0x400] sm:$0xff]
  %v2552 = vld [vmem:[#allocation2 + $0x408] sm:$0xff]
  %v2553 = vld [vmem:[#allocation2 + $0x410] sm:$0xff]
  %v2554 = vld [vmem:[#allocation2 + $0x418] sm:$0xff]
  %v2555 = vld [vmem:[#allocation2 + $0x420] sm:$0xff]
  %v2556 = vld [vmem:[#allocation2 + $0x428] sm:$0xff]
  %v2557 = vld [vmem:[#allocation2 + $0x430] sm:$0xff]
  %v2558 = vld [vmem:[#allocation2 + $0x438] sm:$0xff]
  %v2559 = vld [vmem:[#allocation2 + $0x440] sm:$0xff]
  %v2560 = vld [vmem:[#allocation2 + $0x448] sm:$0xff]
  %v2561 = vld [vmem:[#allocation2 + $0x450] sm:$0xff]
  %v2562 = vld [vmem:[#allocation2 + $0x458] sm:$0xff]
  %v2563 = vld [vmem:[#allocation2 + $0x460] sm:$0xff]
  %v2564 = vld [vmem:[#allocation2 + $0x468] sm:$0xff]
  %v2565 = vld [vmem:[#allocation2 + $0x470] sm:$0xff]
  %v2566 = vld [vmem:[#allocation2 + $0x478] sm:$0xff]
  %v2567 = vld [vmem:[#allocation2 + $0x480] sm:$0xff]
  %v2568 = vld [vmem:[#allocation2 + $0x488] sm:$0xff]
  %v2569 = vld [vmem:[#allocation2 + $0x490] sm:$0xff]
  %v2570 = vld [vmem:[#allocation2 + $0x498] sm:$0xff]
  %v2571 = vld [vmem:[#allocation2 + $0x4a0] sm:$0xff]
  %v2572 = vld [vmem:[#allocation2 + $0x4a8] sm:$0xff]
  %v2573 = vld [vmem:[#allocation2 + $0x4b0] sm:$0xff]
  %v2574 = vld [vmem:[#allocation2 + $0x4b8] sm:$0xff]
  %v2575 = vld [vmem:[#allocation2 + $0x4c0] sm:$0xff]
  %v2576 = vld [vmem:[#allocation2 + $0x4c8] sm:$0xff]
  %v2577 = vld [vmem:[#allocation2 + $0x4d0] sm:$0xff]
  %v2578 = vld [vmem:[#allocation2 + $0x4d8] sm:$0xff]
  %v2579 = vld [vmem:[#allocation2 + $0x4e0] sm:$0xff]
  %v2580 = vld [vmem:[#allocation2 + $0x4e8] sm:$0xff]
  %v2581 = vld [vmem:[#allocation2 + $0x4f0] sm:$0xff]
  %v2582 = vld [vmem:[#allocation2 + $0x4f8] sm:$0xff]
  %v2583 = vld [vmem:[#allocation2 + $0x500] sm:$0xff]
  %v2584 = vld [vmem:[#allocation2 + $0x508] sm:$0xff]
  %v2585 = vld [vmem:[#allocation2 + $0x510] sm:$0xff]
  %v2586 = vld [vmem:[#allocation2 + $0x518] sm:$0xff]
  %v2587 = vld [vmem:[#allocation2 + $0x520] sm:$0xff]
  %v2588 = vld [vmem:[#allocation2 + $0x528] sm:$0xff]
  %v2589 = vld [vmem:[#allocation2 + $0x530] sm:$0xff]
  %v2590 = vld [vmem:[#allocation2 + $0x538] sm:$0xff]
  %v2591 = vld [vmem:[#allocation2 + $0x540] sm:$0xff]
  %v2592 = vld [vmem:[#allocation2 + $0x548] sm:$0xff]
  %v2593 = vld [vmem:[#allocation2 + $0x550] sm:$0xff]
  %v2594 = vld [vmem:[#allocation2 + $0x558] sm:$0xff]
  %v2595 = vld [vmem:[#allocation2 + $0x560] sm:$0xff]
  %v2596 = vld [vmem:[#allocation2 + $0x568] sm:$0xff]
  %v2597 = vld [vmem:[#allocation2 + $0x570] sm:$0xff]
  %v2598 = vld [vmem:[#allocation2 + $0x578] sm:$0xff]
  %v2599 = vld [vmem:[#allocation2 + $0x580] sm:$0xff]
  %v2600 = vld [vmem:[#allocation2 + $0x588] sm:$0xff]
  %v2601 = vld [vmem:[#allocation2 + $0x590] sm:$0xff]
  %v2602 = vld [vmem:[#allocation2 + $0x598] sm:$0xff]
  %v2603 = vld [vmem:[#allocation2 + $0x5a0] sm:$0xff]
  %v2604 = vld [vmem:[#allocation2 + $0x5a8] sm:$0xff]
  %v2605 = vld [vmem:[#allocation2 + $0x5b0] sm:$0xff]
  %v2606 = vld [vmem:[#allocation2 + $0x5b8] sm:$0xff]
  %v2607 = vld [vmem:[#allocation2 + $0x5c0] sm:$0xff]
  %v2608 = vld [vmem:[#allocation2 + $0x5c8] sm:$0xff]
  %v2609 = vld [vmem:[#allocation2 + $0x5d0] sm:$0xff]
  %v2610 = vld [vmem:[#allocation2 + $0x5d8] sm:$0xff]
  %v2611 = vld [vmem:[#allocation2 + $0x5e0] sm:$0xff]
  %v2612 = vld [vmem:[#allocation2 + $0x5e8] sm:$0xff]
  %v2613 = vld [vmem:[#allocation2 + $0x5f0] sm:$0xff]
  %v2614 = vld [vmem:[#allocation2 + $0x5f8] sm:$0xff]
  %v2615 = vld [vmem:[#allocation2 + $0x600] sm:$0xff]
  %v2616 = vld [vmem:[#allocation2 + $0x608] sm:$0xff]
  %v2617 = vld [vmem:[#allocation2 + $0x610] sm:$0xff]
  %v2618 = vld [vmem:[#allocation2 + $0x618] sm:$0xff]
  %v2619 = vld [vmem:[#allocation2 + $0x620] sm:$0xff]
  %v2620 = vld [vmem:[#allocation2 + $0x628] sm:$0xff]
  %v2621 = vld [vmem:[#allocation2 + $0x630] sm:$0xff]
  %v2622 = vld [vmem:[#allocation2 + $0x638] sm:$0xff]
  %v2623 = vld [vmem:[#allocation2 + $0x640] sm:$0xff]
  %v2624 = vld [vmem:[#allocation2 + $0x648] sm:$0xff]
  %v2625 = vld [vmem:[#allocation2 + $0x650] sm:$0xff]
  %v2626 = vld [vmem:[#allocation2 + $0x658] sm:$0xff]
  %v2627 = vld [vmem:[#allocation2 + $0x660] sm:$0xff]
  %v2628 = vld [vmem:[#allocation2 + $0x668] sm:$0xff]
  %v2629 = vld [vmem:[#allocation2 + $0x670] sm:$0xff]
  %v2630 = vld [vmem:[#allocation2 + $0x678] sm:$0xff]
  %v2631 = vld [vmem:[#allocation2 + $0x680] sm:$0xff]
  %v2632 = vld [vmem:[#allocation2 + $0x688] sm:$0xff]
  %v2633 = vld [vmem:[#allocation2 + $0x690] sm:$0xff]
  %v2634 = vld [vmem:[#allocation2 + $0x698] sm:$0xff]
  %v2635 = vld [vmem:[#allocation2 + $0x6a0] sm:$0xff]
  %v2636 = vld [vmem:[#allocation2 + $0x6a8] sm:$0xff]
  %v2637 = vld [vmem:[#allocation2 + $0x6b0] sm:$0xff]
  %v2638 = vld [vmem:[#allocation2 + $0x6b8] sm:$0xff]
  %v2639 = vld [vmem:[%s5] sm:$0xff]
  %v2640 = vld [vmem:[%s5 + $0x8] sm:$0xff]
  %v2641 = vld [vmem:[%s5 + $0x10] sm:$0xff]
  %v2642 = vld [vmem:[%s5 + $0x18] sm:$0xff]
  %2644 = vset.pattern.permute.xlu0 0
  %2645 = vperm.xlu0 %2644, %v2639
  %v2646 = vpop.permute.xlu0 %2645
  %2649 = vset.pattern.permute.xlu0 0
  %2650 = vperm.xlu0 %2649, %v2640
  %v2651 = vpop.permute.xlu0 %2650
  %2654 = vset.pattern.permute.xlu0 0
  %2655 = vperm.xlu0 %2654, %v2641
  %v2656 = vpop.permute.xlu0 %2655
  %2659 = vset.pattern.permute.xlu0 0
  %2660 = vperm.xlu0 %2659, %v2642
  %v2661 = vpop.permute.xlu0 %2660
  %vm2663 = vcmask 261120
  %v2665 = vsel %vm2663, %v2413, 0
  %v2668 = vsel %vm2663, %v2416, 0
  %v2671 = vsel %vm2663, %v2419, 0
  %v2674 = vsel %vm2663, %v2422, 0
  %2676 = vmatprep.subr.mxu0 %v2424
  %2677 = vmatpush1.msra.mxu0 %v2423
  %2678 = vmatprep.subr.mxu0 %v2430
  %2679 = vmatpush1.msra.mxu0 %v2429
  %2680 = vmatprep.subr.mxu0 %v2436
  %2681 = vmatpush1.msra.mxu0 %v2435
  %2682 = vmatprep.subr.mxu0 %v2442
  %2683 = vmatpush1.msra.mxu0 %v2441
  %2684 = vmatprep.subr.mxu0 %v2448
  %2685 = vmatpush1.msra.mxu0 %v2447
  %2686 = vmatprep.subr.mxu0 %v2454
  %2687 = vmatpush1.msra.mxu0 %v2453
  %2688 = vmatprep.subr.mxu0 %v2460
  %2689 = vmatpush1.msra.mxu0 %v2459
  %2690 = vmatprep.subr.mxu0 %v2466
  %2691 = vmatpush1.msra.mxu0 %v2465
  %2692 = vmatprep.subr.mxu0 %v2472
  %2693 = vmatpush1.msra.mxu0 %v2471
  %2694 = vmatprep.subr.mxu0 %v2478
  %2695 = vmatpush1.msra.mxu0 %v2477
  %2696 = vmatprep.subr.mxu0 %v2484
  %2697 = vmatpush1.msra.mxu0 %v2483
  %2698 = vmatprep.subr.mxu0 %v2490
  %2699 = vmatpush1.msra.mxu0 %v2489
  %2700 = vmatprep.subr.mxu0 %v2496
  %2701 = vmatpush1.msra.mxu0 %v2495
  %2702 = vmatprep.subr.mxu0 %v2502
  %2703 = vmatpush1.msra.mxu0 %v2501
  %2704 = vmatprep.subr.mxu0 %v2508
  %2705 = vmatpush1.msra.mxu0 %v2507
  %2706 = vmatprep.subr.mxu0 %v2514
  %2707 = vmatpush1.msra.mxu0 %v2513
  %2708 = vmatprep.subr.mxu0 %v2520
  %2709 = vmatpush1.msra.mxu0 %v2519
  %2710 = vmatprep.subr.mxu0 %v2526
  %2711 = vmatpush1.msra.mxu0 %v2525
  %2712 = vmatprep.subr.mxu0 %v2532
  %2713 = vmatpush1.msra.mxu0 %v2531
  %2714 = vmatprep.subr.mxu0 %v2538
  %2715 = vmatpush1.msra.mxu0 %v2537
  %2716 = vmatprep.subr.mxu0 %v2544
  %2717 = vmatpush1.msra.mxu0 %v2543
  %2718 = vmatprep.subr.mxu0 %v2550
  %2719 = vmatpush1.msra.mxu0 %v2549
  %2720 = vmatprep.subr.mxu0 %v2556
  %2721 = vmatpush1.msra.mxu0 %v2555
  %2722 = vmatprep.subr.mxu0 %v2562
  %2723 = vmatpush1.msra.mxu0 %v2561
  %2724 = vmatprep.subr.mxu0 %v2568
  %2725 = vmatpush1.msra.mxu0 %v2567
  %2726 = vmatprep.subr.mxu0 %v2574
  %2727 = vmatpush1.msra.mxu0 %v2573
  %2728 = vmatprep.subr.mxu0 %v2580
  %2729 = vmatpush1.msra.mxu0 %v2579
  %2730 = vmatprep.subr.mxu0 %v2586
  %2731 = vmatpush1.msra.mxu0 %v2585
  %2732 = vmatprep.subr.mxu0 %v2592
  %2733 = vmatpush1.msra.mxu0 %v2591
  %2734 = vmatprep.subr.mxu0 %v2598
  %2735 = vmatpush1.msra.mxu0 %v2597
  %2736 = vmatprep.subr.mxu0 %v2604
  %2737 = vmatpush1.msra.mxu0 %v2603
  %2738 = vmatprep.subr.mxu0 %v2610
  %2739 = vmatpush1.msra.mxu0 %v2609
  %2740 = vmatprep.mubr.f32.mxu0 %v2412
  %2741 = vmatmul.mubr.f32.gmra.mrb[0].mxu0 %v2411
  %v2742 = vpop.f32.mrb[0].mxu0
  %v2743 = vadd.f32 %v2646, %v2742
  %v2744 = vpop.f32.mrb[0].mxu0
  %v2745 = vadd.f32 %v2646, %v2744
  %2746 = vmatprep.mubr.f32.mxu0 %v2415
  %2747 = vmatmul.mubr.f32.gmra.mrb[0].mxu0 %v2414
  %v2748 = vpop.f32.mrb[0].mxu0
  %v2749 = vadd.f32 %v2651, %v2748
  %v2750 = vpop.f32.mrb[0].mxu0
  %v2751 = vadd.f32 %v2651, %v2750
  %2752 = vmatprep.mubr.f32.mxu0 %v2418
  %2753 = vmatmul.mubr.f32.gmra.mrb[0].mxu0 %v2417
  %v2754 = vpop.f32.mrb[0].mxu0
  %v2755 = vadd.f32 %v2656, %v2754
  %v2756 = vpop.f32.mrb[0].mxu0
  %v2757 = vadd.f32 %v2656, %v2756
  %2758 = vmatprep.mubr.f32.mxu0 %v2421
  %2759 = vmatmul.mubr.f32.gmra.mrb[0].mxu0 %v2420
  %v2760 = vpop.f32.mrb[0].mxu0
  %v2761 = vadd.f32 %v2661, %v2760
  %v2762 = vpop.f32.mrb[0].mxu0
  %v2763 = vadd.f32 %v2661, %v2762
  %2764 = vdwg.mxu0
  %2765 = vmatprep.subr.mxu0 %v2616
  %2766 = vmatpush1.msra.mxu0 %v2615
  %2767 = vmatprep.subr.mxu0 %v2622
  %2768 = vmatpush1.msra.mxu0 %v2621
  %2769 = vmatprep.subr.mxu0 %v2628
  %2770 = vmatpush1.msra.mxu0 %v2627
  %2771 = vmatprep.subr.mxu0 %v2634
  %2772 = vmatpush1.msra.mxu0 %v2633
  %2773 = vmatprep.subr.mxu0 0.0
  %2774 = vmatpush1.msra.mxu0 0.0
  %2775 = vmatprep.subr.mxu0 0.0
  %2776 = vmatpush1.msra.mxu0 0.0
  %2777 = vmatprep.subr.mxu0 0.0
  %2778 = vmatpush1.msra.mxu0 0.0
  %2779 = vmatprep.subr.mxu0 0.0
  %2780 = vmatpush1.msra.mxu0 0.0
  %2781 = vmatprep.subr.mxu0 0.0
  %2782 = vmatpush1.msra.mxu0 0.0
  %2783 = vmatprep.subr.mxu0 0.0
  %2784 = vmatpush1.msra.mxu0 0.0
  %2785 = vmatprep.subr.mxu0 0.0
  %2786 = vmatpush1.msra.mxu0 0.0
  %2787 = vmatprep.subr.mxu0 0.0
  %2788 = vmatpush1.msra.mxu0 0.0
  %2789 = vmatprep.subr.mxu0 0.0
  %2790 = vmatpush1.msra.mxu0 0.0
  %2791 = vmatprep.subr.mxu0 0.0
  %2792 = vmatpush1.msra.mxu0 0.0
  %2793 = vmatprep.subr.mxu0 0.0
  %2794 = vmatpush1.msra.mxu0 0.0
  %2795 = vmatprep.subr.mxu0 0.0
  %2796 = vmatpush1.msra.mxu0 0.0
  %2797 = vmatprep.subr.mxu0 0.0
  %2798 = vmatpush1.msra.mxu0 0.0
  %2799 = vmatprep.subr.mxu0 0.0
  %2800 = vmatpush1.msra.mxu0 0.0
  %2801 = vmatprep.subr.mxu0 0.0
  %2802 = vmatpush1.msra.mxu0 0.0
  %2803 = vmatprep.subr.mxu0 0.0
  %2804 = vmatpush1.msra.mxu0 0.0
  %2805 = vmatprep.subr.mxu0 0.0
  %2806 = vmatpush1.msra.mxu0 0.0
  %2807 = vmatprep.subr.mxu0 0.0
  %2808 = vmatpush1.msra.mxu0 0.0
  %2809 = vmatprep.subr.mxu0 0.0
  %2810 = vmatpush1.msra.mxu0 0.0
  %2811 = vmatprep.subr.mxu0 0.0
  %2812 = vmatpush1.msra.mxu0 0.0
  %2813 = vmatprep.subr.mxu0 0.0
  %2814 = vmatpush1.msra.mxu0 0.0
  %2815 = vmatprep.subr.mxu0 0.0
  %2816 = vmatpush1.msra.mxu0 0.0
  %2817 = vmatprep.subr.mxu0 0.0
  %2818 = vmatpush1.msra.mxu0 0.0
  %2819 = vmatprep.subr.mxu0 0.0
  %2820 = vmatpush1.msra.mxu0 0.0
  %2821 = vmatprep.subr.mxu0 0.0
  %2822 = vmatpush1.msra.mxu0 0.0
  %2823 = vmatprep.subr.mxu0 0.0
  %2824 = vmatpush1.msra.mxu0 0.0
  %2825 = vmatprep.subr.mxu0 0.0
  %2826 = vmatpush1.msra.mxu0 0.0
  %2827 = vmatprep.subr.mxu0 0.0
  %2828 = vmatpush1.msra.mxu0 0.0
  %2829 = vmatprep.mubr.f32.mxu0 0.0
  %2830 = vmatmul.mubr.f32.gmra.mrb[0].mxu0 %v2665
  %v2831 = vpop.f32.mrb[0].mxu0
  %v2832 = vadd.f32 %v2743, %v2831
  %v2833 = vpop.f32.mrb[0].mxu0
  %v2834 = vadd.f32 %v2745, %v2833
  %2835 = vmatprep.mubr.f32.mxu0 0.0
  %2836 = vmatmul.mubr.f32.gmra.mrb[0].mxu0 %v2668
  %v2837 = vpop.f32.mrb[0].mxu0
  %v2838 = vadd.f32 %v2749, %v2837
  %v2839 = vpop.f32.mrb[0].mxu0
  %v2840 = vadd.f32 %v2751, %v2839
  %2841 = vmatprep.mubr.f32.mxu0 0.0
  %2842 = vmatmul.mubr.f32.gmra.mrb[0].mxu0 %v2671
  %v2843 = vpop.f32.mrb[0].mxu0
  %v2844 = vadd.f32 %v2755, %v2843
  %v2845 = vpop.f32.mrb[0].mxu0
  %v2846 = vadd.f32 %v2757, %v2845
  %2847 = vmatprep.mubr.f32.mxu0 0.0
  %2848 = vmatmul.mubr.f32.gmra.mrb[0].mxu0 %v2674
  %v2849 = vpop.f32.mrb[0].mxu0
  %v2850 = vadd.f32 %v2761, %v2849
  %v2851 = vpop.f32.mrb[0].mxu0
  %v2852 = vadd.f32 %v2763, %v2851
  %2853 = vdwg.mxu0
  %2854 = vmatprep.subr.mxu0 %v2426
  %2855 = vmatpush1.msra.mxu0 %v2425
  %2856 = vmatprep.subr.mxu0 %v2432
  %2857 = vmatpush1.msra.mxu0 %v2431
  %2858 = vmatprep.subr.mxu0 %v2438
  %2859 = vmatpush1.msra.mxu0 %v2437
  %2860 = vmatprep.subr.mxu0 %v2444
  %2861 = vmatpush1.msra.mxu0 %v2443
  %2862 = vmatprep.subr.mxu0 %v2450
  %2863 = vmatpush1.msra.mxu0 %v2449
  %2864 = vmatprep.subr.mxu0 %v2456
  %2865 = vmatpush1.msra.mxu0 %v2455
  %2866 = vmatprep.subr.mxu0 %v2462
  %2867 = vmatpush1.msra.mxu0 %v2461
  %2868 = vmatprep.subr.mxu0 %v2468
  %2869 = vmatpush1.msra.mxu0 %v2467
  %2870 = vmatprep.subr.mxu0 %v2474
  %2871 = vmatpush1.msra.mxu0 %v2473
  %2872 = vmatprep.subr.mxu0 %v2480
  %2873 = vmatpush1.msra.mxu0 %v2479
  %2874 = vmatprep.subr.mxu0 %v2486
  %2875 = vmatpush1.msra.mxu0 %v2485
  %2876 = vmatprep.subr.mxu0 %v2492
  %2877 = vmatpush1.msra.mxu0 %v2491
  %2878 = vmatprep.subr.mxu0 %v2498
  %2879 = vmatpush1.msra.mxu0 %v2497
  %2880 = vmatprep.subr.mxu0 %v2504
  %2881 = vmatpush1.msra.mxu0 %v2503
  %2882 = vmatprep.subr.mxu0 %v2510
  %2883 = vmatpush1.msra.mxu0 %v2509
  %2884 = vmatprep.subr.mxu0 %v2516
  %2885 = vmatpush1.msra.mxu0 %v2515
  %2886 = vmatprep.subr.mxu0 %v2522
  %2887 = vmatpush1.msra.mxu0 %v2521
  %2888 = vmatprep.subr.mxu0 %v2528
  %2889 = vmatpush1.msra.mxu0 %v2527
  %2890 = vmatprep.subr.mxu0 %v2534
  %2891 = vmatpush1.msra.mxu0 %v2533
  %2892 = vmatprep.subr.mxu0 %v2540
  %2893 = vmatpush1.msra.mxu0 %v2539
  %2894 = vmatprep.subr.mxu0 %v2546
  %2895 = vmatpush1.msra.mxu0 %v2545
  %2896 = vmatprep.subr.mxu0 %v2552
  %2897 = vmatpush1.msra.mxu0 %v2551
  %2898 = vmatprep.subr.mxu0 %v2558
  %2899 = vmatpush1.msra.mxu0 %v2557
  %2900 = vmatprep.subr.mxu0 %v2564
  %2901 = vmatpush1.msra.mxu0 %v2563
  %2902 = vmatprep.subr.mxu0 %v2570
  %2903 = vmatpush1.msra.mxu0 %v2569
  %2904 = vmatprep.subr.mxu0 %v2576
  %2905 = vmatpush1.msra.mxu0 %v2575
  %2906 = vmatprep.subr.mxu0 %v2582
  %2907 = vmatpush1.msra.mxu0 %v2581
  %2908 = vmatprep.subr.mxu0 %v2588
  %2909 = vmatpush1.msra.mxu0 %v2587
  %2910 = vmatprep.subr.mxu0 %v2594
  %2911 = vmatpush1.msra.mxu0 %v2593
  %2912 = vmatprep.subr.mxu0 %v2600
  %2913 = vmatpush1.msra.mxu0 %v2599
  %2914 = vmatprep.subr.mxu0 %v2606
  %2915 = vmatpush1.msra.mxu0 %v2605
  %2916 = vmatprep.subr.mxu0 %v2612
  %2917 = vmatpush1.msra.mxu0 %v2611
  %2918 = vmatprep.mubr.f32.mxu0 %v2412
  %2919 = vmatmul.mubr.f32.gmra.mrb[0].mxu0 %v2411
  %v2920 = vpop.f32.mrb[0].mxu0
  %v2921 = vadd.f32 %v2646, %v2920
  %v2922 = vpop.f32.mrb[0].mxu0
  %v2923 = vadd.f32 %v2646, %v2922
  %2924 = vmatprep.mubr.f32.mxu0 %v2415
  %2925 = vmatmul.mubr.f32.gmra.mrb[0].mxu0 %v2414
  %v2926 = vpop.f32.mrb[0].mxu0
  %v2927 = vadd.f32 %v2651, %v2926
  %v2928 = vpop.f32.mrb[0].mxu0
  %v2929 = vadd.f32 %v2651, %v2928
  %2930 = vmatprep.mubr.f32.mxu0 %v2418
  %2931 = vmatmul.mubr.f32.gmra.mrb[0].mxu0 %v2417
  %v2932 = vpop.f32.mrb[0].mxu0
  %v2933 = vadd.f32 %v2656, %v2932
  %v2934 = vpop.f32.mrb[0].mxu0
  %v2935 = vadd.f32 %v2656, %v2934
  %2936 = vmatprep.mubr.f32.mxu0 %v2421
  %2937 = vmatmul.mubr.f32.gmra.mrb[0].mxu0 %v2420
  %v2938 = vpop.f32.mrb[0].mxu0
  %v2939 = vadd.f32 %v2661, %v2938
  %v2940 = vpop.f32.mrb[0].mxu0
  %v2941 = vadd.f32 %v2661, %v2940
  %2942 = vdwg.mxu0
  %2943 = vmatprep.subr.mxu0 %v2618
  %2944 = vmatpush1.msra.mxu0 %v2617
  %2945 = vmatprep.subr.mxu0 %v2624
  %2946 = vmatpush1.msra.mxu0 %v2623
  %2947 = vmatprep.subr.mxu0 %v2630
  %2948 = vmatpush1.msra.mxu0 %v2629
  %2949 = vmatprep.subr.mxu0 %v2636
  %2950 = vmatpush1.msra.mxu0 %v2635
  %2951 = vmatprep.subr.mxu0 0.0
  %2952 = vmatpush1.msra.mxu0 0.0
  %2953 = vmatprep.subr.mxu0 0.0
  %2954 = vmatpush1.msra.mxu0 0.0
  %2955 = vmatprep.subr.mxu0 0.0
  %2956 = vmatpush1.msra.mxu0 0.0
  %2957 = vmatprep.subr.mxu0 0.0
  %2958 = vmatpush1.msra.mxu0 0.0
  %2959 = vmatprep.subr.mxu0 0.0
  %2960 = vmatpush1.msra.mxu0 0.0
  %2961 = vmatprep.subr.mxu0 0.0
  %2962 = vmatpush1.msra.mxu0 0.0
  %2963 = vmatprep.subr.mxu0 0.0
  %2964 = vmatpush1.msra.mxu0 0.0
  %2965 = vmatprep.subr.mxu0 0.0
  %2966 = vmatpush1.msra.mxu0 0.0
  %2967 = vmatprep.subr.mxu0 0.0
  %2968 = vmatpush1.msra.mxu0 0.0
  %2969 = vmatprep.subr.mxu0 0.0
  %2970 = vmatpush1.msra.mxu0 0.0
  %2971 = vmatprep.subr.mxu0 0.0
  %2972 = vmatpush1.msra.mxu0 0.0
  %2973 = vmatprep.subr.mxu0 0.0
  %2974 = vmatpush1.msra.mxu0 0.0
  %2975 = vmatprep.subr.mxu0 0.0
  %2976 = vmatpush1.msra.mxu0 0.0
  %2977 = vmatprep.subr.mxu0 0.0
  %2978 = vmatpush1.msra.mxu0 0.0
  %2979 = vmatprep.subr.mxu0 0.0
  %2980 = vmatpush1.msra.mxu0 0.0
  %2981 = vmatprep.subr.mxu0 0.0
  %2982 = vmatpush1.msra.mxu0 0.0
  %2983 = vmatprep.subr.mxu0 0.0
  %2984 = vmatpush1.msra.mxu0 0.0
  %2985 = vmatprep.subr.mxu0 0.0
  %2986 = vmatpush1.msra.mxu0 0.0
  %2987 = vmatprep.subr.mxu0 0.0
  %2988 = vmatpush1.msra.mxu0 0.0
  %2989 = vmatprep.subr.mxu0 0.0
  %2990 = vmatpush1.msra.mxu0 0.0
  %2991 = vmatprep.subr.mxu0 0.0
  %2992 = vmatpush1.msra.mxu0 0.0
  %2993 = vmatprep.subr.mxu0 0.0
  %2994 = vmatpush1.msra.mxu0 0.0
  %2995 = vmatprep.subr.mxu0 0.0
  %2996 = vmatpush1.msra.mxu0 0.0
  %2997 = vmatprep.subr.mxu0 0.0
  %2998 = vmatpush1.msra.mxu0 0.0
  %2999 = vmatprep.subr.mxu0 0.0
  %3000 = vmatpush1.msra.mxu0 0.0
  %3001 = vmatprep.subr.mxu0 0.0
  %3002 = vmatpush1.msra.mxu0 0.0
  %3003 = vmatprep.subr.mxu0 0.0
  %3004 = vmatpush1.msra.mxu0 0.0
  %3005 = vmatprep.subr.mxu0 0.0
  %3006 = vmatpush1.msra.mxu0 0.0
  %3007 = vmatprep.mubr.f32.mxu0 0.0
  %3008 = vmatmul.mubr.f32.gmra.mrb[0].mxu0 %v2665
  %v3009 = vpop.f32.mrb[0].mxu0
  %v3010 = vadd.f32 %v2921, %v3009
  %v3011 = vpop.f32.mrb[0].mxu0
  %v3012 = vadd.f32 %v2923, %v3011
  %3013 = vmatprep.mubr.f32.mxu0 0.0
  %3014 = vmatmul.mubr.f32.gmra.mrb[0].mxu0 %v2668
  %v3015 = vpop.f32.mrb[0].mxu0
  %v3016 = vadd.f32 %v2927, %v3015
  %v3017 = vpop.f32.mrb[0].mxu0
  %v3018 = vadd.f32 %v2929, %v3017
  %3019 = vmatprep.mubr.f32.mxu0 0.0
  %3020 = vmatmul.mubr.f32.gmra.mrb[0].mxu0 %v2671
  %v3021 = vpop.f32.mrb[0].mxu0
  %v3022 = vadd.f32 %v2933, %v3021
  %v3023 = vpop.f32.mrb[0].mxu0
  %v3024 = vadd.f32 %v2935, %v3023
  %3025 = vmatprep.mubr.f32.mxu0 0.0
  %3026 = vmatmul.mubr.f32.gmra.mrb[0].mxu0 %v2674
  %v3027 = vpop.f32.mrb[0].mxu0
  %v3028 = vadd.f32 %v2939, %v3027
  %v3029 = vpop.f32.mrb[0].mxu0
  %v3030 = vadd.f32 %v2941, %v3029
  %3031 = vdwg.mxu0
  %3032 = vmatprep.subr.mxu0 %v2428
  %3033 = vmatpush1.msra.mxu0 %v2427
  %3034 = vmatprep.subr.mxu0 %v2434
  %3035 = vmatpush1.msra.mxu0 %v2433
  %3036 = vmatprep.subr.mxu0 %v2440
  %3037 = vmatpush1.msra.mxu0 %v2439
  %3038 = vmatprep.subr.mxu0 %v2446
  %3039 = vmatpush1.msra.mxu0 %v2445
  %3040 = vmatprep.subr.mxu0 %v2452
  %3041 = vmatpush1.msra.mxu0 %v2451
  %3042 = vmatprep.subr.mxu0 %v2458
  %3043 = vmatpush1.msra.mxu0 %v2457
  %3044 = vmatprep.subr.mxu0 %v2464
  %3045 = vmatpush1.msra.mxu0 %v2463
  %3046 = vmatprep.subr.mxu0 %v2470
  %3047 = vmatpush1.msra.mxu0 %v2469
  %3048 = vmatprep.subr.mxu0 %v2476
  %3049 = vmatpush1.msra.mxu0 %v2475
  %3050 = vmatprep.subr.mxu0 %v2482
  %3051 = vmatpush1.msra.mxu0 %v2481
  %3052 = vmatprep.subr.mxu0 %v2488
  %3053 = vmatpush1.msra.mxu0 %v2487
  %3054 = vmatprep.subr.mxu0 %v2494
  %3055 = vmatpush1.msra.mxu0 %v2493
  %3056 = vmatprep.subr.mxu0 %v2500
  %3057 = vmatpush1.msra.mxu0 %v2499
  %3058 = vmatprep.subr.mxu0 %v2506
  %3059 = vmatpush1.msra.mxu0 %v2505
  %3060 = vmatprep.subr.mxu0 %v2512
  %3061 = vmatpush1.msra.mxu0 %v2511
  %3062 = vmatprep.subr.mxu0 %v2518
  %3063 = vmatpush1.msra.mxu0 %v2517
  %3064 = vmatprep.subr.mxu0 %v2524
  %3065 = vmatpush1.msra.mxu0 %v2523
  %3066 = vmatprep.subr.mxu0 %v2530
  %3067 = vmatpush1.msra.mxu0 %v2529
  %3068 = vmatprep.subr.mxu0 %v2536
  %3069 = vmatpush1.msra.mxu0 %v2535
  %3070 = vmatprep.subr.mxu0 %v2542
  %3071 = vmatpush1.msra.mxu0 %v2541
  %3072 = vmatprep.subr.mxu0 %v2548
  %3073 = vmatpush1.msra.mxu0 %v2547
  %3074 = vmatprep.subr.mxu0 %v2554
  %3075 = vmatpush1.msra.mxu0 %v2553
  %3076 = vmatprep.subr.mxu0 %v2560
  %3077 = vmatpush1.msra.mxu0 %v2559
  %3078 = vmatprep.subr.mxu0 %v2566
  %3079 = vmatpush1.msra.mxu0 %v2565
  %3080 = vmatprep.subr.mxu0 %v2572
  %3081 = vmatpush1.msra.mxu0 %v2571
  %3082 = vmatprep.subr.mxu0 %v2578
  %3083 = vmatpush1.msra.mxu0 %v2577
  %3084 = vmatprep.subr.mxu0 %v2584
  %3085 = vmatpush1.msra.mxu0 %v2583
  %3086 = vmatprep.subr.mxu0 %v2590
  %3087 = vmatpush1.msra.mxu0 %v2589
  %3088 = vmatprep.subr.mxu0 %v2596
  %3089 = vmatpush1.msra.mxu0 %v2595
  %3090 = vmatprep.subr.mxu0 %v2602
  %3091 = vmatpush1.msra.mxu0 %v2601
  %3092 = vmatprep.subr.mxu0 %v2608
  %3093 = vmatpush1.msra.mxu0 %v2607
  %3094 = vmatprep.subr.mxu0 %v2614
  %3095 = vmatpush1.msra.mxu0 %v2613
  %3096 = vmatprep.mubr.f32.mxu0 %v2412
  %3097 = vmatmul.mubr.f32.gmra.mrb[0].mxu0 %v2411
  %v3098 = vpop.f32.mrb[0].mxu0
  %v3099 = vadd.f32 %v2646, %v3098
  %v3100 = vpop.f32.mrb[0].mxu0
  %v3101 = vadd.f32 %v2646, %v3100
  %3102 = vmatprep.mubr.f32.mxu0 %v2415
  %3103 = vmatmul.mubr.f32.gmra.mrb[0].mxu0 %v2414
  %v3104 = vpop.f32.mrb[0].mxu0
  %v3105 = vadd.f32 %v2651, %v3104
  %v3106 = vpop.f32.mrb[0].mxu0
  %v3107 = vadd.f32 %v2651, %v3106
  %3108 = vmatprep.mubr.f32.mxu0 %v2418
  %3109 = vmatmul.mubr.f32.gmra.mrb[0].mxu0 %v2417
  %v3110 = vpop.f32.mrb[0].mxu0
  %v3111 = vadd.f32 %v2656, %v3110
  %v3112 = vpop.f32.mrb[0].mxu0
  %v3113 = vadd.f32 %v2656, %v3112
  %3114 = vmatprep.mubr.f32.mxu0 %v2421
  %3115 = vmatmul.mubr.f32.gmra.mrb[0].mxu0 %v2420
  %v3116 = vpop.f32.mrb[0].mxu0
  %v3117 = vadd.f32 %v2661, %v3116
  %v3118 = vpop.f32.mrb[0].mxu0
  %v3119 = vadd.f32 %v2661, %v3118
  %3120 = vdwg.mxu0
  %3121 = vmatprep.subr.mxu0 %v2620
  %3122 = vmatpush1.msra.mxu0 %v2619
  %3123 = vmatprep.subr.mxu0 %v2626
  %3124 = vmatpush1.msra.mxu0 %v2625
  %3125 = vmatprep.subr.mxu0 %v2632
  %3126 = vmatpush1.msra.mxu0 %v2631
  %3127 = vmatprep.subr.mxu0 %v2638
  %3128 = vmatpush1.msra.mxu0 %v2637
  %3129 = vmatprep.subr.mxu0 0.0
  %3130 = vmatpush1.msra.mxu0 0.0
  %3131 = vmatprep.subr.mxu0 0.0
  %3132 = vmatpush1.msra.mxu0 0.0
  %3133 = vmatprep.subr.mxu0 0.0
  %3134 = vmatpush1.msra.mxu0 0.0
  %3135 = vmatprep.subr.mxu0 0.0
  %3136 = vmatpush1.msra.mxu0 0.0
  %3137 = vmatprep.subr.mxu0 0.0
  %3138 = vmatpush1.msra.mxu0 0.0
  %3139 = vmatprep.subr.mxu0 0.0
  %3140 = vmatpush1.msra.mxu0 0.0
  %3141 = vmatprep.subr.mxu0 0.0
  %3142 = vmatpush1.msra.mxu0 0.0
  %3143 = vmatprep.subr.mxu0 0.0
  %3144 = vmatpush1.msra.mxu0 0.0
  %3145 = vmatprep.subr.mxu0 0.0
  %3146 = vmatpush1.msra.mxu0 0.0
  %3147 = vmatprep.subr.mxu0 0.0
  %3148 = vmatpush1.msra.mxu0 0.0
  %3149 = vmatprep.subr.mxu0 0.0
  %3150 = vmatpush1.msra.mxu0 0.0
  %3151 = vmatprep.subr.mxu0 0.0
  %3152 = vmatpush1.msra.mxu0 0.0
  %3153 = vmatprep.subr.mxu0 0.0
  %3154 = vmatpush1.msra.mxu0 0.0
  %3155 = vmatprep.subr.mxu0 0.0
  %3156 = vmatpush1.msra.mxu0 0.0
  %3157 = vmatprep.subr.mxu0 0.0
  %3158 = vmatpush1.msra.mxu0 0.0
  %3159 = vmatprep.subr.mxu0 0.0
  %3160 = vmatpush1.msra.mxu0 0.0
  %3161 = vmatprep.subr.mxu0 0.0
  %3162 = vmatpush1.msra.mxu0 0.0
  %3163 = vmatprep.subr.mxu0 0.0
  %3164 = vmatpush1.msra.mxu0 0.0
  %3165 = vmatprep.subr.mxu0 0.0
  %3166 = vmatpush1.msra.mxu0 0.0
  %3167 = vmatprep.subr.mxu0 0.0
  %3168 = vmatpush1.msra.mxu0 0.0
  %3169 = vmatprep.subr.mxu0 0.0
  %3170 = vmatpush1.msra.mxu0 0.0
  %3171 = vmatprep.subr.mxu0 0.0
  %3172 = vmatpush1.msra.mxu0 0.0
  %3173 = vmatprep.subr.mxu0 0.0
  %3174 = vmatpush1.msra.mxu0 0.0
  %3175 = vmatprep.subr.mxu0 0.0
  %3176 = vmatpush1.msra.mxu0 0.0
  %3177 = vmatprep.subr.mxu0 0.0
  %3178 = vmatpush1.msra.mxu0 0.0
  %3179 = vmatprep.subr.mxu0 0.0
  %3180 = vmatpush1.msra.mxu0 0.0
  %3181 = vmatprep.subr.mxu0 0.0
  %3182 = vmatpush1.msra.mxu0 0.0
  %3183 = vmatprep.subr.mxu0 0.0
  %3184 = vmatpush1.msra.mxu0 0.0
  %3185 = vmatprep.mubr.f32.mxu0 0.0
  %3186 = vmatmul.mubr.f32.gmra.mrb[0].mxu0 %v2665
  %v3187 = vpop.f32.mrb[0].mxu0
  %v3188 = vadd.f32 %v3099, %v3187
  %v3189 = vpop.f32.mrb[0].mxu0
  %v3190 = vadd.f32 %v3101, %v3189
  %3191 = vmatprep.mubr.f32.mxu0 0.0
  %3192 = vmatmul.mubr.f32.gmra.mrb[0].mxu0 %v2668
  %v3193 = vpop.f32.mrb[0].mxu0
  %v3194 = vadd.f32 %v3105, %v3193
  %v3195 = vpop.f32.mrb[0].mxu0
  %v3196 = vadd.f32 %v3107, %v3195
  %3197 = vmatprep.mubr.f32.mxu0 0.0
  %3198 = vmatmul.mubr.f32.gmra.mrb[0].mxu0 %v2671
  %v3199 = vpop.f32.mrb[0].mxu0
  %v3200 = vadd.f32 %v3111, %v3199
  %v3201 = vpop.f32.mrb[0].mxu0
  %v3202 = vadd.f32 %v3113, %v3201
  %3203 = vmatprep.mubr.f32.mxu0 0.0
  %3204 = vmatmul.mubr.f32.gmra.mrb[0].mxu0 %v2674
  %v3205 = vpop.f32.mrb[0].mxu0
  %v3206 = vadd.f32 %v3117, %v3205
  %v3207 = vpop.f32.mrb[0].mxu0
  %v3208 = vadd.f32 %v3119, %v3207
  %3209 = vdwg.mxu0
  %v3210 = vmax.f32 %v2832, 0.0
  %v3211 = vmax.f32 %v2834, 0.0
  %v3212 = vmax.f32 %v3010, 0.0
  %v3213 = vmax.f32 %v3012, 0.0
  %v3214 = vmax.f32 %v3188, 0.0
  %v3215 = vmax.f32 %v3190, 0.0
  %v3216 = vmax.f32 %v2838, 0.0
  %v3217 = vmax.f32 %v2840, 0.0
  %v3218 = vmax.f32 %v3016, 0.0
  %v3219 = vmax.f32 %v3018, 0.0
  %v3220 = vmax.f32 %v3194, 0.0
  %v3221 = vmax.f32 %v3196, 0.0
  %v3222 = vmax.f32 %v2844, 0.0
  %v3223 = vmax.f32 %v2846, 0.0
  %v3224 = vmax.f32 %v3022, 0.0
  %v3225 = vmax.f32 %v3024, 0.0
  %v3226 = vmax.f32 %v3200, 0.0
  %v3227 = vmax.f32 %v3202, 0.0
  %v3228 = vmax.f32 %v2850, 0.0
  %v3229 = vmax.f32 %v2852, 0.0
  %v3230 = vmax.f32 %v3028, 0.0
  %v3231 = vmax.f32 %v3030, 0.0
  %v3232 = vmax.f32 %v3206, 0.0
  %v3233 = vmax.f32 %v3208, 0.0
  %3234 = vst [vmem:[#allocation4] sm:$0xff] 0.0
  %3235 = vst [vmem:[#allocation4 + $0x40] sm:$0xff] 0.0
  %3236 = vst [vmem:[#allocation4 + $0x80] sm:$0xff] 0.0
  %3237 = vst [vmem:[#allocation4 + $0xc0] sm:$0xff] 0.0
  %3238 = vst [vmem:[#allocation4 + $0x38] sm:$0xff] 0.0
  %3239 = vst [vmem:[#allocation4 + $0x78] sm:$0xff] 0.0
  %3240 = vst [vmem:[#allocation4 + $0xb8] sm:$0xff] 0.0
  %3241 = vst [vmem:[#allocation4 + $0xf8] sm:$0xff] 0.0
  %v3242 = vmul.f32 %v3210, %v816
  %v3243 = vmul.f32 %v3211, %v820
  %v3244 = vmul.f32 %v3212, %v824
  %v3245 = vmul.f32 %v3213, %v828
  %v3246 = vmul.f32 %v3214, %v832
  %v3247 = vmul.f32 %v3215, %v836
  %v3248 = vmul.f32 %v3216, %v816
  %v3249 = vmul.f32 %v3217, %v820
  %v3250 = vmul.f32 %v3218, %v824
  %v3251 = vmul.f32 %v3219, %v828
  %v3252 = vmul.f32 %v3220, %v832
  %v3253 = vmul.f32 %v3221, %v836
  %v3254 = vmul.f32 %v3222, %v816
  %v3255 = vmul.f32 %v3223, %v820
  %v3256 = vmul.f32 %v3224, %v824
  %v3257 = vmul.f32 %v3225, %v828
  %v3258 = vmul.f32 %v3226, %v832
  %v3259 = vmul.f32 %v3227, %v836
  %v3260 = vmul.f32 %v3228, %v816
  %v3261 = vmul.f32 %v3229, %v820
  %v3262 = vmul.f32 %v3230, %v824
  %v3263 = vmul.f32 %v3231, %v828
  %v3264 = vmul.f32 %v3232, %v832
  %v3265 = vmul.f32 %v3233, %v836
  %3266 = vst [vmem:[#allocation4 + $0x8] sm:$0xff] %v3242
  %3267 = vst [vmem:[#allocation4 + $0x10] sm:$0xff] %v3243
  %3268 = vst [vmem:[#allocation4 + $0x18] sm:$0xff] %v3244
  %3269 = vst [vmem:[#allocation4 + $0x20] sm:$0xff] %v3245
  %3270 = vst [vmem:[#allocation4 + $0x28] sm:$0xff] %v3246
  %3271 = vst [vmem:[#allocation4 + $0x30] sm:$0xff] %v3247
  %3272 = vst [vmem:[#allocation4 + $0x48] sm:$0xff] %v3248
  %3273 = vst [vmem:[#allocation4 + $0x50] sm:$0xff] %v3249
  %3274 = vst [vmem:[#allocation4 + $0x58] sm:$0xff] %v3250
  %3275 = vst [vmem:[#allocation4 + $0x60] sm:$0xff] %v3251
  %3276 = vst [vmem:[#allocation4 + $0x68] sm:$0xff] %v3252
  %3277 = vst [vmem:[#allocation4 + $0x70] sm:$0xff] %v3253
  %3278 = vst [vmem:[#allocation4 + $0x88] sm:$0xff] %v3254
  %3279 = vst [vmem:[#allocation4 + $0x90] sm:$0xff] %v3255
  %3280 = vst [vmem:[#allocation4 + $0x98] sm:$0xff] %v3256
  %3281 = vst [vmem:[#allocation4 + $0xa0] sm:$0xff] %v3257
  %3282 = vst [vmem:[#allocation4 + $0xa8] sm:$0xff] %v3258
  %3283 = vst [vmem:[#allocation4 + $0xb0] sm:$0xff] %v3259
  %3284 = vst [vmem:[#allocation4 + $0xc8] sm:$0xff] %v3260
  %3285 = vst [vmem:[#allocation4 + $0xd0] sm:$0xff] %v3261
  %3286 = vst [vmem:[#allocation4 + $0xd8] sm:$0xff] %v3262
  %3287 = vst [vmem:[#allocation4 + $0xe0] sm:$0xff] %v3263
  %3288 = vst [vmem:[#allocation4 + $0xe8] sm:$0xff] %v3264
  %3289 = vst [vmem:[#allocation4 + $0xf0] sm:$0xff] %v3265
  %v3290 = vld [vmem:[#allocation4] sm:$0xff]
  %v3291 = vld [vmem:[#allocation4 + $0x8] sm:$0xff]
  %v3292 = vld [vmem:[#allocation4 + $0x10] sm:$0xff]
  %v3293 = vld [vmem:[#allocation4 + $0x18] sm:$0xff]
  %v3294 = vld [vmem:[#allocation4 + $0x20] sm:$0xff]
  %v3295 = vld [vmem:[#allocation4 + $0x28] sm:$0xff]
  %v3296 = vld [vmem:[#allocation4 + $0x30] sm:$0xff]
  %v3297 = vld [vmem:[#allocation4 + $0x40] sm:$0xff]
  %v3298 = vld [vmem:[#allocation4 + $0x48] sm:$0xff]
  %v3299 = vld [vmem:[#allocation4 + $0x50] sm:$0xff]
  %v3300 = vld [vmem:[#allocation4 + $0x58] sm:$0xff]
  %v3301 = vld [vmem:[#allocation4 + $0x60] sm:$0xff]
  %v3302 = vld [vmem:[#allocation4 + $0x68] sm:$0xff]
  %v3303 = vld [vmem:[#allocation4 + $0x70] sm:$0xff]
  %v3304 = vld [vmem:[#allocation4 + $0x80] sm:$0xff]
  %v3305 = vld [vmem:[#allocation4 + $0x88] sm:$0xff]
  %v3306 = vld [vmem:[#allocation4 + $0x90] sm:$0xff]
  %v3307 = vld [vmem:[#allocation4 + $0x98] sm:$0xff]
  %v3308 = vld [vmem:[#allocation4 + $0xa0] sm:$0xff]
  %v3309 = vld [vmem:[#allocation4 + $0xa8] sm:$0xff]
  %v3310 = vld [vmem:[#allocation4 + $0xb0] sm:$0xff]
  %v3311 = vld [vmem:[#allocation4 + $0xc0] sm:$0xff]
  %v3312 = vld [vmem:[#allocation4 + $0xc8] sm:$0xff]
  %v3313 = vld [vmem:[#allocation4 + $0xd0] sm:$0xff]
  %v3314 = vld [vmem:[#allocation4 + $0xd8] sm:$0xff]
  %v3315 = vld [vmem:[#allocation4 + $0xe0] sm:$0xff]
  %v3316 = vld [vmem:[#allocation4 + $0xe8] sm:$0xff]
  %v3317 = vld [vmem:[#allocation4 + $0xf0] sm:$0xff]
  %3346 = vrot.lane.b32.xlu0 %v3290, 19
  %v3347 = vpop.permute.xlu0 %3346
  %3348 = vrot.lane.b32.xlu0 %v3291, 19
  %v3349 = vpop.permute.xlu0 %3348
  %3350 = vrot.lane.b32.xlu0 %v3292, 19
  %v3351 = vpop.permute.xlu0 %3350
  %3352 = vrot.lane.b32.xlu0 %v3293, 19
  %v3353 = vpop.permute.xlu0 %3352
  %3354 = vrot.lane.b32.xlu0 %v3294, 19
  %v3355 = vpop.permute.xlu0 %3354
  %3356 = vrot.lane.b32.xlu0 %v3295, 19
  %v3357 = vpop.permute.xlu0 %3356
  %3358 = vrot.lane.b32.xlu0 %v3296, 19
  %v3359 = vpop.permute.xlu0 %3358
  %3360 = vrot.lane.b32.xlu0 %v3297, 19
  %v3361 = vpop.permute.xlu0 %3360
  %3362 = vrot.lane.b32.xlu0 %v3298, 19
  %v3363 = vpop.permute.xlu0 %3362
  %3364 = vrot.lane.b32.xlu0 %v3299, 19
  %v3365 = vpop.permute.xlu0 %3364
  %3366 = vrot.lane.b32.xlu0 %v3300, 19
  %v3367 = vpop.permute.xlu0 %3366
  %3368 = vrot.lane.b32.xlu0 %v3301, 19
  %v3369 = vpop.permute.xlu0 %3368
  %3370 = vrot.lane.b32.xlu0 %v3302, 19
  %v3371 = vpop.permute.xlu0 %3370
  %3372 = vrot.lane.b32.xlu0 %v3303, 19
  %v3373 = vpop.permute.xlu0 %3372
  %3374 = vrot.lane.b32.xlu0 %v3304, 19
  %v3375 = vpop.permute.xlu0 %3374
  %3376 = vrot.lane.b32.xlu0 %v3305, 19
  %v3377 = vpop.permute.xlu0 %3376
  %3378 = vrot.lane.b32.xlu0 %v3306, 19
  %v3379 = vpop.permute.xlu0 %3378
  %3380 = vrot.lane.b32.xlu0 %v3307, 19
  %v3381 = vpop.permute.xlu0 %3380
  %3382 = vrot.lane.b32.xlu0 %v3308, 19
  %v3383 = vpop.permute.xlu0 %3382
  %3384 = vrot.lane.b32.xlu0 %v3309, 19
  %v3385 = vpop.permute.xlu0 %3384
  %3386 = vrot.lane.b32.xlu0 %v3310, 19
  %v3387 = vpop.permute.xlu0 %3386
  %3388 = vrot.lane.b32.xlu0 %v3311, 19
  %v3389 = vpop.permute.xlu0 %3388
  %3390 = vrot.lane.b32.xlu0 %v3312, 19
  %v3391 = vpop.permute.xlu0 %3390
  %3392 = vrot.lane.b32.xlu0 %v3313, 19
  %v3393 = vpop.permute.xlu0 %3392
  %3394 = vrot.lane.b32.xlu0 %v3314, 19
  %v3395 = vpop.permute.xlu0 %3394
  %3396 = vrot.lane.b32.xlu0 %v3315, 19
  %v3397 = vpop.permute.xlu0 %3396
  %3398 = vrot.lane.b32.xlu0 %v3316, 19
  %v3399 = vpop.permute.xlu0 %3398
  %3400 = vrot.lane.b32.xlu0 %v3317, 19
  %v3401 = vpop.permute.xlu0 %3400
  %v3402 = vsel %vm58, %v3347, %v3349
  %v3403 = vsel %vm58, %v3349, %v3351
  %v3404 = vsel %vm58, %v3351, %v3353
  %v3405 = vsel %vm58, %v3353, %v3355
  %v3406 = vsel %vm58, %v3355, %v3357
  %v3407 = vsel %vm58, %v3357, %v3359
  %v3408 = vsel %vm58, %v3361, %v3363
  %v3409 = vsel %vm58, %v3363, %v3365
  %v3410 = vsel %vm58, %v3365, %v3367
  %v3411 = vsel %vm58, %v3367, %v3369
  %v3412 = vsel %vm58, %v3369, %v3371
  %v3413 = vsel %vm58, %v3371, %v3373
  %v3414 = vsel %vm58, %v3375, %v3377
  %v3415 = vsel %vm58, %v3377, %v3379
  %v3416 = vsel %vm58, %v3379, %v3381
  %v3417 = vsel %vm58, %v3381, %v3383
  %v3418 = vsel %vm58, %v3383, %v3385
  %v3419 = vsel %vm58, %v3385, %v3387
  %v3420 = vsel %vm58, %v3389, %v3391
  %v3421 = vsel %vm58, %v3391, %v3393
  %v3422 = vsel %vm58, %v3393, %v3395
  %v3423 = vsel %vm58, %v3395, %v3397
  %v3424 = vsel %vm58, %v3397, %v3399
  %v3425 = vsel %vm58, %v3399, %v3401
  %3450 = vst [vmem:[#allocation2] sm:$0xff] %v3402
  %3451 = vst [vmem:[#allocation2 + $0x8] sm:$0xff] %v3403
  %3452 = vst [vmem:[#allocation2 + $0x10] sm:$0xff] %v3404
  %3453 = vst [vmem:[#allocation2 + $0x18] sm:$0xff] %v3405
  %3454 = vst [vmem:[#allocation2 + $0x20] sm:$0xff] %v3406
  %3455 = vst [vmem:[#allocation2 + $0x28] sm:$0xff] %v3407
  %3456 = vst [vmem:[#allocation2 + $0x30] sm:$0xff] %v3408
  %3457 = vst [vmem:[#allocation2 + $0x38] sm:$0xff] %v3409
  %3458 = vst [vmem:[#allocation2 + $0x40] sm:$0xff] %v3410
  %3459 = vst [vmem:[#allocation2 + $0x48] sm:$0xff] %v3411
  %3460 = vst [vmem:[#allocation2 + $0x50] sm:$0xff] %v3412
  %3461 = vst [vmem:[#allocation2 + $0x58] sm:$0xff] %v3413
  %3462 = vst [vmem:[#allocation2 + $0x60] sm:$0xff] %v3414
  %3463 = vst [vmem:[#allocation2 + $0x68] sm:$0xff] %v3415
  %3464 = vst [vmem:[#allocation2 + $0x70] sm:$0xff] %v3416
  %3465 = vst [vmem:[#allocation2 + $0x78] sm:$0xff] %v3417
  %3466 = vst [vmem:[#allocation2 + $0x80] sm:$0xff] %v3418
  %3467 = vst [vmem:[#allocation2 + $0x88] sm:$0xff] %v3419
  %3468 = vst [vmem:[#allocation2 + $0x90] sm:$0xff] %v3420
  %3469 = vst [vmem:[#allocation2 + $0x98] sm:$0xff] %v3421
  %3470 = vst [vmem:[#allocation2 + $0xa0] sm:$0xff] %v3422
  %3471 = vst [vmem:[#allocation2 + $0xa8] sm:$0xff] %v3423
  %3472 = vst [vmem:[#allocation2 + $0xb0] sm:$0xff] %v3424
  %3473 = vst [vmem:[#allocation2 + $0xb8] sm:$0xff] %v3425
  %v3474 = vld [vmem:[#allocation4] sm:$0xff]
  %v3475 = vld [vmem:[#allocation4 + $0x8] sm:$0xff]
  %v3476 = vld [vmem:[#allocation4 + $0x10] sm:$0xff]
  %v3477 = vld [vmem:[#allocation4 + $0x18] sm:$0xff]
  %v3478 = vld [vmem:[#allocation4 + $0x20] sm:$0xff]
  %v3479 = vld [vmem:[#allocation4 + $0x28] sm:$0xff]
  %v3480 = vld [vmem:[#allocation4 + $0x30] sm:$0xff]
  %v3481 = vld [vmem:[#allocation4 + $0x40] sm:$0xff]
  %v3482 = vld [vmem:[#allocation4 + $0x48] sm:$0xff]
  %v3483 = vld [vmem:[#allocation4 + $0x50] sm:$0xff]
  %v3484 = vld [vmem:[#allocation4 + $0x58] sm:$0xff]
  %v3485 = vld [vmem:[#allocation4 + $0x60] sm:$0xff]
  %v3486 = vld [vmem:[#allocation4 + $0x68] sm:$0xff]
  %v3487 = vld [vmem:[#allocation4 + $0x70] sm:$0xff]
  %v3488 = vld [vmem:[#allocation4 + $0x80] sm:$0xff]
  %v3489 = vld [vmem:[#allocation4 + $0x88] sm:$0xff]
  %v3490 = vld [vmem:[#allocation4 + $0x90] sm:$0xff]
  %v3491 = vld [vmem:[#allocation4 + $0x98] sm:$0xff]
  %v3492 = vld [vmem:[#allocation4 + $0xa0] sm:$0xff]
  %v3493 = vld [vmem:[#allocation4 + $0xa8] sm:$0xff]
  %v3494 = vld [vmem:[#allocation4 + $0xb0] sm:$0xff]
  %v3495 = vld [vmem:[#allocation4 + $0xc0] sm:$0xff]
  %v3496 = vld [vmem:[#allocation4 + $0xc8] sm:$0xff]
  %v3497 = vld [vmem:[#allocation4 + $0xd0] sm:$0xff]
  %v3498 = vld [vmem:[#allocation4 + $0xd8] sm:$0xff]
  %v3499 = vld [vmem:[#allocation4 + $0xe0] sm:$0xff]
  %v3500 = vld [vmem:[#allocation4 + $0xe8] sm:$0xff]
  %v3501 = vld [vmem:[#allocation4 + $0xf0] sm:$0xff]
  %3530 = vrot.lane.b32.xlu0 %v3474, 18
  %v3531 = vpop.permute.xlu0 %3530
  %3532 = vrot.lane.b32.xlu0 %v3475, 18
  %v3533 = vpop.permute.xlu0 %3532
  %3534 = vrot.lane.b32.xlu0 %v3476, 18
  %v3535 = vpop.permute.xlu0 %3534
  %3536 = vrot.lane.b32.xlu0 %v3477, 18
  %v3537 = vpop.permute.xlu0 %3536
  %3538 = vrot.lane.b32.xlu0 %v3478, 18
  %v3539 = vpop.permute.xlu0 %3538
  %3540 = vrot.lane.b32.xlu0 %v3479, 18
  %v3541 = vpop.permute.xlu0 %3540
  %3542 = vrot.lane.b32.xlu0 %v3480, 18
  %v3543 = vpop.permute.xlu0 %3542
  %3544 = vrot.lane.b32.xlu0 %v3481, 18
  %v3545 = vpop.permute.xlu0 %3544
  %3546 = vrot.lane.b32.xlu0 %v3482, 18
  %v3547 = vpop.permute.xlu0 %3546
  %3548 = vrot.lane.b32.xlu0 %v3483, 18
  %v3549 = vpop.permute.xlu0 %3548
  %3550 = vrot.lane.b32.xlu0 %v3484, 18
  %v3551 = vpop.permute.xlu0 %3550
  %3552 = vrot.lane.b32.xlu0 %v3485, 18
  %v3553 = vpop.permute.xlu0 %3552
  %3554 = vrot.lane.b32.xlu0 %v3486, 18
  %v3555 = vpop.permute.xlu0 %3554
  %3556 = vrot.lane.b32.xlu0 %v3487, 18
  %v3557 = vpop.permute.xlu0 %3556
  %3558 = vrot.lane.b32.xlu0 %v3488, 18
  %v3559 = vpop.permute.xlu0 %3558
  %3560 = vrot.lane.b32.xlu0 %v3489, 18
  %v3561 = vpop.permute.xlu0 %3560
  %3562 = vrot.lane.b32.xlu0 %v3490, 18
  %v3563 = vpop.permute.xlu0 %3562
  %3564 = vrot.lane.b32.xlu0 %v3491, 18
  %v3565 = vpop.permute.xlu0 %3564
  %3566 = vrot.lane.b32.xlu0 %v3492, 18
  %v3567 = vpop.permute.xlu0 %3566
  %3568 = vrot.lane.b32.xlu0 %v3493, 18
  %v3569 = vpop.permute.xlu0 %3568
  %3570 = vrot.lane.b32.xlu0 %v3494, 18
  %v3571 = vpop.permute.xlu0 %3570
  %3572 = vrot.lane.b32.xlu0 %v3495, 18
  %v3573 = vpop.permute.xlu0 %3572
  %3574 = vrot.lane.b32.xlu0 %v3496, 18
  %v3575 = vpop.permute.xlu0 %3574
  %3576 = vrot.lane.b32.xlu0 %v3497, 18
  %v3577 = vpop.permute.xlu0 %3576
  %3578 = vrot.lane.b32.xlu0 %v3498, 18
  %v3579 = vpop.permute.xlu0 %3578
  %3580 = vrot.lane.b32.xlu0 %v3499, 18
  %v3581 = vpop.permute.xlu0 %3580
  %3582 = vrot.lane.b32.xlu0 %v3500, 18
  %v3583 = vpop.permute.xlu0 %3582
  %3584 = vrot.lane.b32.xlu0 %v3501, 18
  %v3585 = vpop.permute.xlu0 %3584
  %v3586 = vsel %vm105, %v3531, %v3533
  %v3587 = vsel %vm105, %v3533, %v3535
  %v3588 = vsel %vm105, %v3535, %v3537
  %v3589 = vsel %vm105, %v3537, %v3539
  %v3590 = vsel %vm105, %v3539, %v3541
  %v3591 = vsel %vm105, %v3541, %v3543
  %v3592 = vsel %vm105, %v3545, %v3547
  %v3593 = vsel %vm105, %v3547, %v3549
  %v3594 = vsel %vm105, %v3549, %v3551
  %v3595 = vsel %vm105, %v3551, %v3553
  %v3596 = vsel %vm105, %v3553, %v3555
  %v3597 = vsel %vm105, %v3555, %v3557
  %v3598 = vsel %vm105, %v3559, %v3561
  %v3599 = vsel %vm105, %v3561, %v3563
  %v3600 = vsel %vm105, %v3563, %v3565
  %v3601 = vsel %vm105, %v3565, %v3567
  %v3602 = vsel %vm105, %v3567, %v3569
  %v3603 = vsel %vm105, %v3569, %v3571
  %v3604 = vsel %vm105, %v3573, %v3575
  %v3605 = vsel %vm105, %v3575, %v3577
  %v3606 = vsel %vm105, %v3577, %v3579
  %v3607 = vsel %vm105, %v3579, %v3581
  %v3608 = vsel %vm105, %v3581, %v3583
  %v3609 = vsel %vm105, %v3583, %v3585
  %3634 = vst [vmem:[#allocation2 + $0xc0] sm:$0xff] %v3586
  %3635 = vst [vmem:[#allocation2 + $0xc8] sm:$0xff] %v3587
  %3636 = vst [vmem:[#allocation2 + $0xd0] sm:$0xff] %v3588
  %3637 = vst [vmem:[#allocation2 + $0xd8] sm:$0xff] %v3589
  %3638 = vst [vmem:[#allocation2 + $0xe0] sm:$0xff] %v3590
  %3639 = vst [vmem:[#allocation2 + $0xe8] sm:$0xff] %v3591
  %3640 = vst [vmem:[#allocation2 + $0xf0] sm:$0xff] %v3592
  %3641 = vst [vmem:[#allocation2 + $0xf8] sm:$0xff] %v3593
  %3642 = vst [vmem:[#allocation2 + $0x100] sm:$0xff] %v3594
  %3643 = vst [vmem:[#allocation2 + $0x108] sm:$0xff] %v3595
  %3644 = vst [vmem:[#allocation2 + $0x110] sm:$0xff] %v3596
  %3645 = vst [vmem:[#allocation2 + $0x118] sm:$0xff] %v3597
  %3646 = vst [vmem:[#allocation2 + $0x120] sm:$0xff] %v3598
  %3647 = vst [vmem:[#allocation2 + $0x128] sm:$0xff] %v3599
  %3648 = vst [vmem:[#allocation2 + $0x130] sm:$0xff] %v3600
  %3649 = vst [vmem:[#allocation2 + $0x138] sm:$0xff] %v3601
  %3650 = vst [vmem:[#allocation2 + $0x140] sm:$0xff] %v3602
  %3651 = vst [vmem:[#allocation2 + $0x148] sm:$0xff] %v3603
  %3652 = vst [vmem:[#allocation2 + $0x150] sm:$0xff] %v3604
  %3653 = vst [vmem:[#allocation2 + $0x158] sm:$0xff] %v3605
  %3654 = vst [vmem:[#allocation2 + $0x160] sm:$0xff] %v3606
  %3655 = vst [vmem:[#allocation2 + $0x168] sm:$0xff] %v3607
  %3656 = vst [vmem:[#allocation2 + $0x170] sm:$0xff] %v3608
  %3657 = vst [vmem:[#allocation2 + $0x178] sm:$0xff] %v3609
  %v3658 = vld [vmem:[#allocation4] sm:$0xff]
  %v3659 = vld [vmem:[#allocation4 + $0x8] sm:$0xff]
  %v3660 = vld [vmem:[#allocation4 + $0x10] sm:$0xff]
  %v3661 = vld [vmem:[#allocation4 + $0x18] sm:$0xff]
  %v3662 = vld [vmem:[#allocation4 + $0x20] sm:$0xff]
  %v3663 = vld [vmem:[#allocation4 + $0x28] sm:$0xff]
  %v3664 = vld [vmem:[#allocation4 + $0x30] sm:$0xff]
  %v3665 = vld [vmem:[#allocation4 + $0x40] sm:$0xff]
  %v3666 = vld [vmem:[#allocation4 + $0x48] sm:$0xff]
  %v3667 = vld [vmem:[#allocation4 + $0x50] sm:$0xff]
  %v3668 = vld [vmem:[#allocation4 + $0x58] sm:$0xff]
  %v3669 = vld [vmem:[#allocation4 + $0x60] sm:$0xff]
  %v3670 = vld [vmem:[#allocation4 + $0x68] sm:$0xff]
  %v3671 = vld [vmem:[#allocation4 + $0x70] sm:$0xff]
  %v3672 = vld [vmem:[#allocation4 + $0x80] sm:$0xff]
  %v3673 = vld [vmem:[#allocation4 + $0x88] sm:$0xff]
  %v3674 = vld [vmem:[#allocation4 + $0x90] sm:$0xff]
  %v3675 = vld [vmem:[#allocation4 + $0x98] sm:$0xff]
  %v3676 = vld [vmem:[#allocation4 + $0xa0] sm:$0xff]
  %v3677 = vld [vmem:[#allocation4 + $0xa8] sm:$0xff]
  %v3678 = vld [vmem:[#allocation4 + $0xb0] sm:$0xff]
  %v3679 = vld [vmem:[#allocation4 + $0xc0] sm:$0xff]
  %v3680 = vld [vmem:[#allocation4 + $0xc8] sm:$0xff]
  %v3681 = vld [vmem:[#allocation4 + $0xd0] sm:$0xff]
  %v3682 = vld [vmem:[#allocation4 + $0xd8] sm:$0xff]
  %v3683 = vld [vmem:[#allocation4 + $0xe0] sm:$0xff]
  %v3684 = vld [vmem:[#allocation4 + $0xe8] sm:$0xff]
  %v3685 = vld [vmem:[#allocation4 + $0xf0] sm:$0xff]
  %3714 = vrot.lane.b32.xlu0 %v3658, 17
  %v3715 = vpop.permute.xlu0 %3714
  %3716 = vrot.lane.b32.xlu0 %v3659, 17
  %v3717 = vpop.permute.xlu0 %3716
  %3718 = vrot.lane.b32.xlu0 %v3660, 17
  %v3719 = vpop.permute.xlu0 %3718
  %3720 = vrot.lane.b32.xlu0 %v3661, 17
  %v3721 = vpop.permute.xlu0 %3720
  %3722 = vrot.lane.b32.xlu0 %v3662, 17
  %v3723 = vpop.permute.xlu0 %3722
  %3724 = vrot.lane.b32.xlu0 %v3663, 17
  %v3725 = vpop.permute.xlu0 %3724
  %3726 = vrot.lane.b32.xlu0 %v3664, 17
  %v3727 = vpop.permute.xlu0 %3726
  %3728 = vrot.lane.b32.xlu0 %v3665, 17
  %v3729 = vpop.permute.xlu0 %3728
  %3730 = vrot.lane.b32.xlu0 %v3666, 17
  %v3731 = vpop.permute.xlu0 %3730
  %3732 = vrot.lane.b32.xlu0 %v3667, 17
  %v3733 = vpop.permute.xlu0 %3732
  %3734 = vrot.lane.b32.xlu0 %v3668, 17
  %v3735 = vpop.permute.xlu0 %3734
  %3736 = vrot.lane.b32.xlu0 %v3669, 17
  %v3737 = vpop.permute.xlu0 %3736
  %3738 = vrot.lane.b32.xlu0 %v3670, 17
  %v3739 = vpop.permute.xlu0 %3738
  %3740 = vrot.lane.b32.xlu0 %v3671, 17
  %v3741 = vpop.permute.xlu0 %3740
  %3742 = vrot.lane.b32.xlu0 %v3672, 17
  %v3743 = vpop.permute.xlu0 %3742
  %3744 = vrot.lane.b32.xlu0 %v3673, 17
  %v3745 = vpop.permute.xlu0 %3744
  %3746 = vrot.lane.b32.xlu0 %v3674, 17
  %v3747 = vpop.permute.xlu0 %3746
  %3748 = vrot.lane.b32.xlu0 %v3675, 17
  %v3749 = vpop.permute.xlu0 %3748
  %3750 = vrot.lane.b32.xlu0 %v3676, 17
  %v3751 = vpop.permute.xlu0 %3750
  %3752 = vrot.lane.b32.xlu0 %v3677, 17
  %v3753 = vpop.permute.xlu0 %3752
  %3754 = vrot.lane.b32.xlu0 %v3678, 17
  %v3755 = vpop.permute.xlu0 %3754
  %3756 = vrot.lane.b32.xlu0 %v3679, 17
  %v3757 = vpop.permute.xlu0 %3756
  %3758 = vrot.lane.b32.xlu0 %v3680, 17
  %v3759 = vpop.permute.xlu0 %3758
  %3760 = vrot.lane.b32.xlu0 %v3681, 17
  %v3761 = vpop.permute.xlu0 %3760
  %3762 = vrot.lane.b32.xlu0 %v3682, 17
  %v3763 = vpop.permute.xlu0 %3762
  %3764 = vrot.lane.b32.xlu0 %v3683, 17
  %v3765 = vpop.permute.xlu0 %3764
  %3766 = vrot.lane.b32.xlu0 %v3684, 17
  %v3767 = vpop.permute.xlu0 %3766
  %3768 = vrot.lane.b32.xlu0 %v3685, 17
  %v3769 = vpop.permute.xlu0 %3768
  %v3770 = vsel %vm152, %v3715, %v3717
  %v3771 = vsel %vm152, %v3717, %v3719
  %v3772 = vsel %vm152, %v3719, %v3721
  %v3773 = vsel %vm152, %v3721, %v3723
  %v3774 = vsel %vm152, %v3723, %v3725
  %v3775 = vsel %vm152, %v3725, %v3727
  %v3776 = vsel %vm152, %v3729, %v3731
  %v3777 = vsel %vm152, %v3731, %v3733
  %v3778 = vsel %vm152, %v3733, %v3735
  %v3779 = vsel %vm152, %v3735, %v3737
  %v3780 = vsel %vm152, %v3737, %v3739
  %v3781 = vsel %vm152, %v3739, %v3741
  %v3782 = vsel %vm152, %v3743, %v3745
  %v3783 = vsel %vm152, %v3745, %v3747
  %v3784 = vsel %vm152, %v3747, %v3749
  %v3785 = vsel %vm152, %v3749, %v3751
  %v3786 = vsel %vm152, %v3751, %v3753
  %v3787 = vsel %vm152, %v3753, %v3755
  %v3788 = vsel %vm152, %v3757, %v3759
  %v3789 = vsel %vm152, %v3759, %v3761
  %v3790 = vsel %vm152, %v3761, %v3763
  %v3791 = vsel %vm152, %v3763, %v3765
  %v3792 = vsel %vm152, %v3765, %v3767
  %v3793 = vsel %vm152, %v3767, %v3769
  %3818 = vst [vmem:[#allocation2 + $0x180] sm:$0xff] %v3770
  %3819 = vst [vmem:[#allocation2 + $0x188] sm:$0xff] %v3771
  %3820 = vst [vmem:[#allocation2 + $0x190] sm:$0xff] %v3772
  %3821 = vst [vmem:[#allocation2 + $0x198] sm:$0xff] %v3773
  %3822 = vst [vmem:[#allocation2 + $0x1a0] sm:$0xff] %v3774
  %3823 = vst [vmem:[#allocation2 + $0x1a8] sm:$0xff] %v3775
  %3824 = vst [vmem:[#allocation2 + $0x1b0] sm:$0xff] %v3776
  %3825 = vst [vmem:[#allocation2 + $0x1b8] sm:$0xff] %v3777
  %3826 = vst [vmem:[#allocation2 + $0x1c0] sm:$0xff] %v3778
  %3827 = vst [vmem:[#allocation2 + $0x1c8] sm:$0xff] %v3779
  %3828 = vst [vmem:[#allocation2 + $0x1d0] sm:$0xff] %v3780
  %3829 = vst [vmem:[#allocation2 + $0x1d8] sm:$0xff] %v3781
  %3830 = vst [vmem:[#allocation2 + $0x1e0] sm:$0xff] %v3782
  %3831 = vst [vmem:[#allocation2 + $0x1e8] sm:$0xff] %v3783
  %3832 = vst [vmem:[#allocation2 + $0x1f0] sm:$0xff] %v3784
  %3833 = vst [vmem:[#allocation2 + $0x1f8] sm:$0xff] %v3785
  %3834 = vst [vmem:[#allocation2 + $0x200] sm:$0xff] %v3786
  %3835 = vst [vmem:[#allocation2 + $0x208] sm:$0xff] %v3787
  %3836 = vst [vmem:[#allocation2 + $0x210] sm:$0xff] %v3788
  %3837 = vst [vmem:[#allocation2 + $0x218] sm:$0xff] %v3789
  %3838 = vst [vmem:[#allocation2 + $0x220] sm:$0xff] %v3790
  %3839 = vst [vmem:[#allocation2 + $0x228] sm:$0xff] %v3791
  %3840 = vst [vmem:[#allocation2 + $0x230] sm:$0xff] %v3792
  %3841 = vst [vmem:[#allocation2 + $0x238] sm:$0xff] %v3793
  %v3842 = vld [vmem:[#allocation4] sm:$0xff]
  %v3843 = vld [vmem:[#allocation4 + $0x8] sm:$0xff]
  %v3844 = vld [vmem:[#allocation4 + $0x10] sm:$0xff]
  %v3845 = vld [vmem:[#allocation4 + $0x18] sm:$0xff]
  %v3846 = vld [vmem:[#allocation4 + $0x20] sm:$0xff]
  %v3847 = vld [vmem:[#allocation4 + $0x28] sm:$0xff]
  %v3848 = vld [vmem:[#allocation4 + $0x30] sm:$0xff]
  %v3849 = vld [vmem:[#allocation4 + $0x40] sm:$0xff]
  %v3850 = vld [vmem:[#allocation4 + $0x48] sm:$0xff]
  %v3851 = vld [vmem:[#allocation4 + $0x50] sm:$0xff]
  %v3852 = vld [vmem:[#allocation4 + $0x58] sm:$0xff]
  %v3853 = vld [vmem:[#allocation4 + $0x60] sm:$0xff]
  %v3854 = vld [vmem:[#allocation4 + $0x68] sm:$0xff]
  %v3855 = vld [vmem:[#allocation4 + $0x70] sm:$0xff]
  %v3856 = vld [vmem:[#allocation4 + $0x80] sm:$0xff]
  %v3857 = vld [vmem:[#allocation4 + $0x88] sm:$0xff]
  %v3858 = vld [vmem:[#allocation4 + $0x90] sm:$0xff]
  %v3859 = vld [vmem:[#allocation4 + $0x98] sm:$0xff]
  %v3860 = vld [vmem:[#allocation4 + $0xa0] sm:$0xff]
  %v3861 = vld [vmem:[#allocation4 + $0xa8] sm:$0xff]
  %v3862 = vld [vmem:[#allocation4 + $0xb0] sm:$0xff]
  %v3863 = vld [vmem:[#allocation4 + $0xc0] sm:$0xff]
  %v3864 = vld [vmem:[#allocation4 + $0xc8] sm:$0xff]
  %v3865 = vld [vmem:[#allocation4 + $0xd0] sm:$0xff]
  %v3866 = vld [vmem:[#allocation4 + $0xd8] sm:$0xff]
  %v3867 = vld [vmem:[#allocation4 + $0xe0] sm:$0xff]
  %v3868 = vld [vmem:[#allocation4 + $0xe8] sm:$0xff]
  %v3869 = vld [vmem:[#allocation4 + $0xf0] sm:$0xff]
  %3898 = vrot.lane.b32.xlu0 %v3842, 1
  %v3899 = vpop.permute.xlu0 %3898
  %3900 = vrot.lane.b32.xlu0 %v3843, 1
  %v3901 = vpop.permute.xlu0 %3900
  %3902 = vrot.lane.b32.xlu0 %v3844, 1
  %v3903 = vpop.permute.xlu0 %3902
  %3904 = vrot.lane.b32.xlu0 %v3845, 1
  %v3905 = vpop.permute.xlu0 %3904
  %3906 = vrot.lane.b32.xlu0 %v3846, 1
  %v3907 = vpop.permute.xlu0 %3906
  %3908 = vrot.lane.b32.xlu0 %v3847, 1
  %v3909 = vpop.permute.xlu0 %3908
  %3910 = vrot.lane.b32.xlu0 %v3848, 1
  %v3911 = vpop.permute.xlu0 %3910
  %3912 = vrot.lane.b32.xlu0 %v3849, 1
  %v3913 = vpop.permute.xlu0 %3912
  %3914 = vrot.lane.b32.xlu0 %v3850, 1
  %v3915 = vpop.permute.xlu0 %3914
  %3916 = vrot.lane.b32.xlu0 %v3851, 1
  %v3917 = vpop.permute.xlu0 %3916
  %3918 = vrot.lane.b32.xlu0 %v3852, 1
  %v3919 = vpop.permute.xlu0 %3918
  %3920 = vrot.lane.b32.xlu0 %v3853, 1
  %v3921 = vpop.permute.xlu0 %3920
  %3922 = vrot.lane.b32.xlu0 %v3854, 1
  %v3923 = vpop.permute.xlu0 %3922
  %3924 = vrot.lane.b32.xlu0 %v3855, 1
  %v3925 = vpop.permute.xlu0 %3924
  %3926 = vrot.lane.b32.xlu0 %v3856, 1
  %v3927 = vpop.permute.xlu0 %3926
  %3928 = vrot.lane.b32.xlu0 %v3857, 1
  %v3929 = vpop.permute.xlu0 %3928
  %3930 = vrot.lane.b32.xlu0 %v3858, 1
  %v3931 = vpop.permute.xlu0 %3930
  %3932 = vrot.lane.b32.xlu0 %v3859, 1
  %v3933 = vpop.permute.xlu0 %3932
  %3934 = vrot.lane.b32.xlu0 %v3860, 1
  %v3935 = vpop.permute.xlu0 %3934
  %3936 = vrot.lane.b32.xlu0 %v3861, 1
  %v3937 = vpop.permute.xlu0 %3936
  %3938 = vrot.lane.b32.xlu0 %v3862, 1
  %v3939 = vpop.permute.xlu0 %3938
  %3940 = vrot.lane.b32.xlu0 %v3863, 1
  %v3941 = vpop.permute.xlu0 %3940
  %3942 = vrot.lane.b32.xlu0 %v3864, 1
  %v3943 = vpop.permute.xlu0 %3942
  %3944 = vrot.lane.b32.xlu0 %v3865, 1
  %v3945 = vpop.permute.xlu0 %3944
  %3946 = vrot.lane.b32.xlu0 %v3866, 1
  %v3947 = vpop.permute.xlu0 %3946
  %3948 = vrot.lane.b32.xlu0 %v3867, 1
  %v3949 = vpop.permute.xlu0 %3948
  %3950 = vrot.lane.b32.xlu0 %v3868, 1
  %v3951 = vpop.permute.xlu0 %3950
  %3952 = vrot.lane.b32.xlu0 %v3869, 1
  %v3953 = vpop.permute.xlu0 %3952
  %v3954 = vsel %vm199, %v3899, %v3901
  %v3955 = vsel %vm199, %v3901, %v3903
  %v3956 = vsel %vm199, %v3903, %v3905
  %v3957 = vsel %vm199, %v3905, %v3907
  %v3958 = vsel %vm199, %v3907, %v3909
  %v3959 = vsel %vm199, %v3909, %v3911
  %v3960 = vsel %vm199, %v3913, %v3915
  %v3961 = vsel %vm199, %v3915, %v3917
  %v3962 = vsel %vm199, %v3917, %v3919
  %v3963 = vsel %vm199, %v3919, %v3921
  %v3964 = vsel %vm199, %v3921, %v3923
  %v3965 = vsel %vm199, %v3923, %v3925
  %v3966 = vsel %vm199, %v3927, %v3929
  %v3967 = vsel %vm199, %v3929, %v3931
  %v3968 = vsel %vm199, %v3931, %v3933
  %v3969 = vsel %vm199, %v3933, %v3935
  %v3970 = vsel %vm199, %v3935, %v3937
  %v3971 = vsel %vm199, %v3937, %v3939
  %v3972 = vsel %vm199, %v3941, %v3943
  %v3973 = vsel %vm199, %v3943, %v3945
  %v3974 = vsel %vm199, %v3945, %v3947
  %v3975 = vsel %vm199, %v3947, %v3949
  %v3976 = vsel %vm199, %v3949, %v3951
  %v3977 = vsel %vm199, %v3951, %v3953
  %4002 = vst [vmem:[#allocation2 + $0x240] sm:$0xff] %v3954
  %4003 = vst [vmem:[#allocation2 + $0x248] sm:$0xff] %v3955
  %4004 = vst [vmem:[#allocation2 + $0x250] sm:$0xff] %v3956
  %4005 = vst [vmem:[#allocation2 + $0x258] sm:$0xff] %v3957
  %4006 = vst [vmem:[#allocation2 + $0x260] sm:$0xff] %v3958
  %4007 = vst [vmem:[#allocation2 + $0x268] sm:$0xff] %v3959
  %4008 = vst [vmem:[#allocation2 + $0x270] sm:$0xff] %v3960
  %4009 = vst [vmem:[#allocation2 + $0x278] sm:$0xff] %v3961
  %4010 = vst [vmem:[#allocation2 + $0x280] sm:$0xff] %v3962
  %4011 = vst [vmem:[#allocation2 + $0x288] sm:$0xff] %v3963
  %4012 = vst [vmem:[#allocation2 + $0x290] sm:$0xff] %v3964
  %4013 = vst [vmem:[#allocation2 + $0x298] sm:$0xff] %v3965
  %4014 = vst [vmem:[#allocation2 + $0x2a0] sm:$0xff] %v3966
  %4015 = vst [vmem:[#allocation2 + $0x2a8] sm:$0xff] %v3967
  %4016 = vst [vmem:[#allocation2 + $0x2b0] sm:$0xff] %v3968
  %4017 = vst [vmem:[#allocation2 + $0x2b8] sm:$0xff] %v3969
  %4018 = vst [vmem:[#allocation2 + $0x2c0] sm:$0xff] %v3970
  %4019 = vst [vmem:[#allocation2 + $0x2c8] sm:$0xff] %v3971
  %4020 = vst [vmem:[#allocation2 + $0x2d0] sm:$0xff] %v3972
  %4021 = vst [vmem:[#allocation2 + $0x2d8] sm:$0xff] %v3973
  %4022 = vst [vmem:[#allocation2 + $0x2e0] sm:$0xff] %v3974
  %4023 = vst [vmem:[#allocation2 + $0x2e8] sm:$0xff] %v3975
  %4024 = vst [vmem:[#allocation2 + $0x2f0] sm:$0xff] %v3976
  %4025 = vst [vmem:[#allocation2 + $0x2f8] sm:$0xff] %v3977
  %v4026 = vld [vmem:[#allocation4 + $0x8] sm:$0xff]
  %v4027 = vld [vmem:[#allocation4 + $0x10] sm:$0xff]
  %v4028 = vld [vmem:[#allocation4 + $0x18] sm:$0xff]
  %v4029 = vld [vmem:[#allocation4 + $0x20] sm:$0xff]
  %v4030 = vld [vmem:[#allocation4 + $0x28] sm:$0xff]
  %v4031 = vld [vmem:[#allocation4 + $0x30] sm:$0xff]
  %v4032 = vld [vmem:[#allocation4 + $0x48] sm:$0xff]
  %v4033 = vld [vmem:[#allocation4 + $0x50] sm:$0xff]
  %v4034 = vld [vmem:[#allocation4 + $0x58] sm:$0xff]
  %v4035 = vld [vmem:[#allocation4 + $0x60] sm:$0xff]
  %v4036 = vld [vmem:[#allocation4 + $0x68] sm:$0xff]
  %v4037 = vld [vmem:[#allocation4 + $0x70] sm:$0xff]
  %v4038 = vld [vmem:[#allocation4 + $0x88] sm:$0xff]
  %v4039 = vld [vmem:[#allocation4 + $0x90] sm:$0xff]
  %v4040 = vld [vmem:[#allocation4 + $0x98] sm:$0xff]
  %v4041 = vld [vmem:[#allocation4 + $0xa0] sm:$0xff]
  %v4042 = vld [vmem:[#allocation4 + $0xa8] sm:$0xff]
  %v4043 = vld [vmem:[#allocation4 + $0xb0] sm:$0xff]
  %v4044 = vld [vmem:[#allocation4 + $0xc8] sm:$0xff]
  %v4045 = vld [vmem:[#allocation4 + $0xd0] sm:$0xff]
  %v4046 = vld [vmem:[#allocation4 + $0xd8] sm:$0xff]
  %v4047 = vld [vmem:[#allocation4 + $0xe0] sm:$0xff]
  %v4048 = vld [vmem:[#allocation4 + $0xe8] sm:$0xff]
  %v4049 = vld [vmem:[#allocation4 + $0xf0] sm:$0xff]
  %4050 = vst [vmem:[#allocation2 + $0x300] sm:$0xff] %v4026
  %4051 = vst [vmem:[#allocation2 + $0x308] sm:$0xff] %v4027
  %4052 = vst [vmem:[#allocation2 + $0x310] sm:$0xff] %v4028
  %4053 = vst [vmem:[#allocation2 + $0x318] sm:$0xff] %v4029
  %4054 = vst [vmem:[#allocation2 + $0x320] sm:$0xff] %v4030
  %4055 = vst [vmem:[#allocation2 + $0x328] sm:$0xff] %v4031
  %4056 = vst [vmem:[#allocation2 + $0x330] sm:$0xff] %v4032
  %4057 = vst [vmem:[#allocation2 + $0x338] sm:$0xff] %v4033
  %4058 = vst [vmem:[#allocation2 + $0x340] sm:$0xff] %v4034
  %4059 = vst [vmem:[#allocation2 + $0x348] sm:$0xff] %v4035
  %4060 = vst [vmem:[#allocation2 + $0x350] sm:$0xff] %v4036
  %4061 = vst [vmem:[#allocation2 + $0x358] sm:$0xff] %v4037
  %4062 = vst [vmem:[#allocation2 + $0x360] sm:$0xff] %v4038
  %4063 = vst [vmem:[#allocation2 + $0x368] sm:$0xff] %v4039
  %4064 = vst [vmem:[#allocation2 + $0x370] sm:$0xff] %v4040
  %4065 = vst [vmem:[#allocation2 + $0x378] sm:$0xff] %v4041
  %4066 = vst [vmem:[#allocation2 + $0x380] sm:$0xff] %v4042
  %4067 = vst [vmem:[#allocation2 + $0x388] sm:$0xff] %v4043
  %4068 = vst [vmem:[#allocation2 + $0x390] sm:$0xff] %v4044
  %4069 = vst [vmem:[#allocation2 + $0x398] sm:$0xff] %v4045
  %4070 = vst [vmem:[#allocation2 + $0x3a0] sm:$0xff] %v4046
  %4071 = vst [vmem:[#allocation2 + $0x3a8] sm:$0xff] %v4047
  %4072 = vst [vmem:[#allocation2 + $0x3b0] sm:$0xff] %v4048
  %4073 = vst [vmem:[#allocation2 + $0x3b8] sm:$0xff] %v4049
  %v4074 = vld [vmem:[#allocation4 + $0x8] sm:$0xff]
  %v4075 = vld [vmem:[#allocation4 + $0x10] sm:$0xff]
  %v4076 = vld [vmem:[#allocation4 + $0x18] sm:$0xff]
  %v4077 = vld [vmem:[#allocation4 + $0x20] sm:$0xff]
  %v4078 = vld [vmem:[#allocation4 + $0x28] sm:$0xff]
  %v4079 = vld [vmem:[#allocation4 + $0x30] sm:$0xff]
  %v4080 = vld [vmem:[#allocation4 + $0x38] sm:$0xff]
  %v4081 = vld [vmem:[#allocation4 + $0x48] sm:$0xff]
  %v4082 = vld [vmem:[#allocation4 + $0x50] sm:$0xff]
  %v4083 = vld [vmem:[#allocation4 + $0x58] sm:$0xff]
  %v4084 = vld [vmem:[#allocation4 + $0x60] sm:$0xff]
  %v4085 = vld [vmem:[#allocation4 + $0x68] sm:$0xff]
  %v4086 = vld [vmem:[#allocation4 + $0x70] sm:$0xff]
  %v4087 = vld [vmem:[#allocation4 + $0x78] sm:$0xff]
  %v4088 = vld [vmem:[#allocation4 + $0x88] sm:$0xff]
  %v4089 = vld [vmem:[#allocation4 + $0x90] sm:$0xff]
  %v4090 = vld [vmem:[#allocation4 + $0x98] sm:$0xff]
  %v4091 = vld [vmem:[#allocation4 + $0xa0] sm:$0xff]
  %v4092 = vld [vmem:[#allocation4 + $0xa8] sm:$0xff]
  %v4093 = vld [vmem:[#allocation4 + $0xb0] sm:$0xff]
  %v4094 = vld [vmem:[#allocation4 + $0xb8] sm:$0xff]
  %v4095 = vld [vmem:[#allocation4 + $0xc8] sm:$0xff]
  %v4096 = vld [vmem:[#allocation4 + $0xd0] sm:$0xff]
  %v4097 = vld [vmem:[#allocation4 + $0xd8] sm:$0xff]
  %v4098 = vld [vmem:[#allocation4 + $0xe0] sm:$0xff]
  %v4099 = vld [vmem:[#allocation4 + $0xe8] sm:$0xff]
  %v4100 = vld [vmem:[#allocation4 + $0xf0] sm:$0xff]
  %v4101 = vld [vmem:[#allocation4 + $0xf8] sm:$0xff]
  %4130 = vrot.lane.b32.xlu0 %v4074, 127
  %v4131 = vpop.permute.xlu0 %4130
  %4132 = vrot.lane.b32.xlu0 %v4075, 127
  %v4133 = vpop.permute.xlu0 %4132
  %4134 = vrot.lane.b32.xlu0 %v4076, 127
  %v4135 = vpop.permute.xlu0 %4134
  %4136 = vrot.lane.b32.xlu0 %v4077, 127
  %v4137 = vpop.permute.xlu0 %4136
  %4138 = vrot.lane.b32.xlu0 %v4078, 127
  %v4139 = vpop.permute.xlu0 %4138
  %4140 = vrot.lane.b32.xlu0 %v4079, 127
  %v4141 = vpop.permute.xlu0 %4140
  %4142 = vrot.lane.b32.xlu0 %v4080, 127
  %v4143 = vpop.permute.xlu0 %4142
  %4144 = vrot.lane.b32.xlu0 %v4081, 127
  %v4145 = vpop.permute.xlu0 %4144
  %4146 = vrot.lane.b32.xlu0 %v4082, 127
  %v4147 = vpop.permute.xlu0 %4146
  %4148 = vrot.lane.b32.xlu0 %v4083, 127
  %v4149 = vpop.permute.xlu0 %4148
  %4150 = vrot.lane.b32.xlu0 %v4084, 127
  %v4151 = vpop.permute.xlu0 %4150
  %4152 = vrot.lane.b32.xlu0 %v4085, 127
  %v4153 = vpop.permute.xlu0 %4152
  %4154 = vrot.lane.b32.xlu0 %v4086, 127
  %v4155 = vpop.permute.xlu0 %4154
  %4156 = vrot.lane.b32.xlu0 %v4087, 127
  %v4157 = vpop.permute.xlu0 %4156
  %4158 = vrot.lane.b32.xlu0 %v4088, 127
  %v4159 = vpop.permute.xlu0 %4158
  %4160 = vrot.lane.b32.xlu0 %v4089, 127
  %v4161 = vpop.permute.xlu0 %4160
  %4162 = vrot.lane.b32.xlu0 %v4090, 127
  %v4163 = vpop.permute.xlu0 %4162
  %4164 = vrot.lane.b32.xlu0 %v4091, 127
  %v4165 = vpop.permute.xlu0 %4164
  %4166 = vrot.lane.b32.xlu0 %v4092, 127
  %v4167 = vpop.permute.xlu0 %4166
  %4168 = vrot.lane.b32.xlu0 %v4093, 127
  %v4169 = vpop.permute.xlu0 %4168
  %4170 = vrot.lane.b32.xlu0 %v4094, 127
  %v4171 = vpop.permute.xlu0 %4170
  %4172 = vrot.lane.b32.xlu0 %v4095, 127
  %v4173 = vpop.permute.xlu0 %4172
  %4174 = vrot.lane.b32.xlu0 %v4096, 127
  %v4175 = vpop.permute.xlu0 %4174
  %4176 = vrot.lane.b32.xlu0 %v4097, 127
  %v4177 = vpop.permute.xlu0 %4176
  %4178 = vrot.lane.b32.xlu0 %v4098, 127
  %v4179 = vpop.permute.xlu0 %4178
  %4180 = vrot.lane.b32.xlu0 %v4099, 127
  %v4181 = vpop.permute.xlu0 %4180
  %4182 = vrot.lane.b32.xlu0 %v4100, 127
  %v4183 = vpop.permute.xlu0 %4182
  %4184 = vrot.lane.b32.xlu0 %v4101, 127
  %v4185 = vpop.permute.xlu0 %4184
  %v4186 = vsel %vm258, %v4131, %v4133
  %v4187 = vsel %vm258, %v4133, %v4135
  %v4188 = vsel %vm258, %v4135, %v4137
  %v4189 = vsel %vm258, %v4137, %v4139
  %v4190 = vsel %vm258, %v4139, %v4141
  %v4191 = vsel %vm258, %v4141, %v4143
  %v4192 = vsel %vm258, %v4145, %v4147
  %v4193 = vsel %vm258, %v4147, %v4149
  %v4194 = vsel %vm258, %v4149, %v4151
  %v4195 = vsel %vm258, %v4151, %v4153
  %v4196 = vsel %vm258, %v4153, %v4155
  %v4197 = vsel %vm258, %v4155, %v4157
  %v4198 = vsel %vm258, %v4159, %v4161
  %v4199 = vsel %vm258, %v4161, %v4163
  %v4200 = vsel %vm258, %v4163, %v4165
  %v4201 = vsel %vm258, %v4165, %v4167
  %v4202 = vsel %vm258, %v4167, %v4169
  %v4203 = vsel %vm258, %v4169, %v4171
  %v4204 = vsel %vm258, %v4173, %v4175
  %v4205 = vsel %vm258, %v4175, %v4177
  %v4206 = vsel %vm258, %v4177, %v4179
  %v4207 = vsel %vm258, %v4179, %v4181
  %v4208 = vsel %vm258, %v4181, %v4183
  %v4209 = vsel %vm258, %v4183, %v4185
  %4234 = vst [vmem:[#allocation2 + $0x3c0] sm:$0xff] %v4186
  %4235 = vst [vmem:[#allocation2 + $0x3c8] sm:$0xff] %v4187
  %4236 = vst [vmem:[#allocation2 + $0x3d0] sm:$0xff] %v4188
  %4237 = vst [vmem:[#allocation2 + $0x3d8] sm:$0xff] %v4189
  %4238 = vst [vmem:[#allocation2 + $0x3e0] sm:$0xff] %v4190
  %4239 = vst [vmem:[#allocation2 + $0x3e8] sm:$0xff] %v4191
  %4240 = vst [vmem:[#allocation2 + $0x3f0] sm:$0xff] %v4192
  %4241 = vst [vmem:[#allocation2 + $0x3f8] sm:$0xff] %v4193
  %4242 = vst [vmem:[#allocation2 + $0x400] sm:$0xff] %v4194
  %4243 = vst [vmem:[#allocation2 + $0x408] sm:$0xff] %v4195
  %4244 = vst [vmem:[#allocation2 + $0x410] sm:$0xff] %v4196
  %4245 = vst [vmem:[#allocation2 + $0x418] sm:$0xff] %v4197
  %4246 = vst [vmem:[#allocation2 + $0x420] sm:$0xff] %v4198
  %4247 = vst [vmem:[#allocation2 + $0x428] sm:$0xff] %v4199
  %4248 = vst [vmem:[#allocation2 + $0x430] sm:$0xff] %v4200
  %4249 = vst [vmem:[#allocation2 + $0x438] sm:$0xff] %v4201
  %4250 = vst [vmem:[#allocation2 + $0x440] sm:$0xff] %v4202
  %4251 = vst [vmem:[#allocation2 + $0x448] sm:$0xff] %v4203
  %4252 = vst [vmem:[#allocation2 + $0x450] sm:$0xff] %v4204
  %4253 = vst [vmem:[#allocation2 + $0x458] sm:$0xff] %v4205
  %4254 = vst [vmem:[#allocation2 + $0x460] sm:$0xff] %v4206
  %4255 = vst [vmem:[#allocation2 + $0x468] sm:$0xff] %v4207
  %4256 = vst [vmem:[#allocation2 + $0x470] sm:$0xff] %v4208
  %4257 = vst [vmem:[#allocation2 + $0x478] sm:$0xff] %v4209
  %v4258 = vld [vmem:[#allocation4 + $0x8] sm:$0xff]
  %v4259 = vld [vmem:[#allocation4 + $0x10] sm:$0xff]
  %v4260 = vld [vmem:[#allocation4 + $0x18] sm:$0xff]
  %v4261 = vld [vmem:[#allocation4 + $0x20] sm:$0xff]
  %v4262 = vld [vmem:[#allocation4 + $0x28] sm:$0xff]
  %v4263 = vld [vmem:[#allocation4 + $0x30] sm:$0xff]
  %v4264 = vld [vmem:[#allocation4 + $0x38] sm:$0xff]
  %v4265 = vld [vmem:[#allocation4 + $0x48] sm:$0xff]
  %v4266 = vld [vmem:[#allocation4 + $0x50] sm:$0xff]
  %v4267 = vld [vmem:[#allocation4 + $0x58] sm:$0xff]
  %v4268 = vld [vmem:[#allocation4 + $0x60] sm:$0xff]
  %v4269 = vld [vmem:[#allocation4 + $0x68] sm:$0xff]
  %v4270 = vld [vmem:[#allocation4 + $0x70] sm:$0xff]
  %v4271 = vld [vmem:[#allocation4 + $0x78] sm:$0xff]
  %v4272 = vld [vmem:[#allocation4 + $0x88] sm:$0xff]
  %v4273 = vld [vmem:[#allocation4 + $0x90] sm:$0xff]
  %v4274 = vld [vmem:[#allocation4 + $0x98] sm:$0xff]
  %v4275 = vld [vmem:[#allocation4 + $0xa0] sm:$0xff]
  %v4276 = vld [vmem:[#allocation4 + $0xa8] sm:$0xff]
  %v4277 = vld [vmem:[#allocation4 + $0xb0] sm:$0xff]
  %v4278 = vld [vmem:[#allocation4 + $0xb8] sm:$0xff]
  %v4279 = vld [vmem:[#allocation4 + $0xc8] sm:$0xff]
  %v4280 = vld [vmem:[#allocation4 + $0xd0] sm:$0xff]
  %v4281 = vld [vmem:[#allocation4 + $0xd8] sm:$0xff]
  %v4282 = vld [vmem:[#allocation4 + $0xe0] sm:$0xff]
  %v4283 = vld [vmem:[#allocation4 + $0xe8] sm:$0xff]
  %v4284 = vld [vmem:[#allocation4 + $0xf0] sm:$0xff]
  %v4285 = vld [vmem:[#allocation4 + $0xf8] sm:$0xff]
  %4314 = vrot.lane.b32.xlu0 %v4258, 111
  %v4315 = vpop.permute.xlu0 %4314
  %4316 = vrot.lane.b32.xlu0 %v4259, 111
  %v4317 = vpop.permute.xlu0 %4316
  %4318 = vrot.lane.b32.xlu0 %v4260, 111
  %v4319 = vpop.permute.xlu0 %4318
  %4320 = vrot.lane.b32.xlu0 %v4261, 111
  %v4321 = vpop.permute.xlu0 %4320
  %4322 = vrot.lane.b32.xlu0 %v4262, 111
  %v4323 = vpop.permute.xlu0 %4322
  %4324 = vrot.lane.b32.xlu0 %v4263, 111
  %v4325 = vpop.permute.xlu0 %4324
  %4326 = vrot.lane.b32.xlu0 %v4264, 111
  %v4327 = vpop.permute.xlu0 %4326
  %4328 = vrot.lane.b32.xlu0 %v4265, 111
  %v4329 = vpop.permute.xlu0 %4328
  %4330 = vrot.lane.b32.xlu0 %v4266, 111
  %v4331 = vpop.permute.xlu0 %4330
  %4332 = vrot.lane.b32.xlu0 %v4267, 111
  %v4333 = vpop.permute.xlu0 %4332
  %4334 = vrot.lane.b32.xlu0 %v4268, 111
  %v4335 = vpop.permute.xlu0 %4334
  %4336 = vrot.lane.b32.xlu0 %v4269, 111
  %v4337 = vpop.permute.xlu0 %4336
  %4338 = vrot.lane.b32.xlu0 %v4270, 111
  %v4339 = vpop.permute.xlu0 %4338
  %4340 = vrot.lane.b32.xlu0 %v4271, 111
  %v4341 = vpop.permute.xlu0 %4340
  %4342 = vrot.lane.b32.xlu0 %v4272, 111
  %v4343 = vpop.permute.xlu0 %4342
  %4344 = vrot.lane.b32.xlu0 %v4273, 111
  %v4345 = vpop.permute.xlu0 %4344
  %4346 = vrot.lane.b32.xlu0 %v4274, 111
  %v4347 = vpop.permute.xlu0 %4346
  %4348 = vrot.lane.b32.xlu0 %v4275, 111
  %v4349 = vpop.permute.xlu0 %4348
  %4350 = vrot.lane.b32.xlu0 %v4276, 111
  %v4351 = vpop.permute.xlu0 %4350
  %4352 = vrot.lane.b32.xlu0 %v4277, 111
  %v4353 = vpop.permute.xlu0 %4352
  %4354 = vrot.lane.b32.xlu0 %v4278, 111
  %v4355 = vpop.permute.xlu0 %4354
  %4356 = vrot.lane.b32.xlu0 %v4279, 111
  %v4357 = vpop.permute.xlu0 %4356
  %4358 = vrot.lane.b32.xlu0 %v4280, 111
  %v4359 = vpop.permute.xlu0 %4358
  %4360 = vrot.lane.b32.xlu0 %v4281, 111
  %v4361 = vpop.permute.xlu0 %4360
  %4362 = vrot.lane.b32.xlu0 %v4282, 111
  %v4363 = vpop.permute.xlu0 %4362
  %4364 = vrot.lane.b32.xlu0 %v4283, 111
  %v4365 = vpop.permute.xlu0 %4364
  %4366 = vrot.lane.b32.xlu0 %v4284, 111
  %v4367 = vpop.permute.xlu0 %4366
  %4368 = vrot.lane.b32.xlu0 %v4285, 111
  %v4369 = vpop.permute.xlu0 %4368
  %v4370 = vsel %vm305, %v4315, %v4317
  %v4371 = vsel %vm305, %v4317, %v4319
  %v4372 = vsel %vm305, %v4319, %v4321
  %v4373 = vsel %vm305, %v4321, %v4323
  %v4374 = vsel %vm305, %v4323, %v4325
  %v4375 = vsel %vm305, %v4325, %v4327
  %v4376 = vsel %vm305, %v4329, %v4331
  %v4377 = vsel %vm305, %v4331, %v4333
  %v4378 = vsel %vm305, %v4333, %v4335
  %v4379 = vsel %vm305, %v4335, %v4337
  %v4380 = vsel %vm305, %v4337, %v4339
  %v4381 = vsel %vm305, %v4339, %v4341
  %v4382 = vsel %vm305, %v4343, %v4345
  %v4383 = vsel %vm305, %v4345, %v4347
  %v4384 = vsel %vm305, %v4347, %v4349
  %v4385 = vsel %vm305, %v4349, %v4351
  %v4386 = vsel %vm305, %v4351, %v4353
  %v4387 = vsel %vm305, %v4353, %v4355
  %v4388 = vsel %vm305, %v4357, %v4359
  %v4389 = vsel %vm305, %v4359, %v4361
  %v4390 = vsel %vm305, %v4361, %v4363
  %v4391 = vsel %vm305, %v4363, %v4365
  %v4392 = vsel %vm305, %v4365, %v4367
  %v4393 = vsel %vm305, %v4367, %v4369
  %4418 = vst [vmem:[#allocation2 + $0x480] sm:$0xff] %v4370
  %4419 = vst [vmem:[#allocation2 + $0x488] sm:$0xff] %v4371
  %4420 = vst [vmem:[#allocation2 + $0x490] sm:$0xff] %v4372
  %4421 = vst [vmem:[#allocation2 + $0x498] sm:$0xff] %v4373
  %4422 = vst [vmem:[#allocation2 + $0x4a0] sm:$0xff] %v4374
  %4423 = vst [vmem:[#allocation2 + $0x4a8] sm:$0xff] %v4375
  %4424 = vst [vmem:[#allocation2 + $0x4b0] sm:$0xff] %v4376
  %4425 = vst [vmem:[#allocation2 + $0x4b8] sm:$0xff] %v4377
  %4426 = vst [vmem:[#allocation2 + $0x4c0] sm:$0xff] %v4378
  %4427 = vst [vmem:[#allocation2 + $0x4c8] sm:$0xff] %v4379
  %4428 = vst [vmem:[#allocation2 + $0x4d0] sm:$0xff] %v4380
  %4429 = vst [vmem:[#allocation2 + $0x4d8] sm:$0xff] %v4381
  %4430 = vst [vmem:[#allocation2 + $0x4e0] sm:$0xff] %v4382
  %4431 = vst [vmem:[#allocation2 + $0x4e8] sm:$0xff] %v4383
  %4432 = vst [vmem:[#allocation2 + $0x4f0] sm:$0xff] %v4384
  %4433 = vst [vmem:[#allocation2 + $0x4f8] sm:$0xff] %v4385
  %4434 = vst [vmem:[#allocation2 + $0x500] sm:$0xff] %v4386
  %4435 = vst [vmem:[#allocation2 + $0x508] sm:$0xff] %v4387
  %4436 = vst [vmem:[#allocation2 + $0x510] sm:$0xff] %v4388
  %4437 = vst [vmem:[#allocation2 + $0x518] sm:$0xff] %v4389
  %4438 = vst [vmem:[#allocation2 + $0x520] sm:$0xff] %v4390
  %4439 = vst [vmem:[#allocation2 + $0x528] sm:$0xff] %v4391
  %4440 = vst [vmem:[#allocation2 + $0x530] sm:$0xff] %v4392
  %4441 = vst [vmem:[#allocation2 + $0x538] sm:$0xff] %v4393
  %v4442 = vld [vmem:[#allocation4 + $0x8] sm:$0xff]
  %v4443 = vld [vmem:[#allocation4 + $0x10] sm:$0xff]
  %v4444 = vld [vmem:[#allocation4 + $0x18] sm:$0xff]
  %v4445 = vld [vmem:[#allocation4 + $0x20] sm:$0xff]
  %v4446 = vld [vmem:[#allocation4 + $0x28] sm:$0xff]
  %v4447 = vld [vmem:[#allocation4 + $0x30] sm:$0xff]
  %v4448 = vld [vmem:[#allocation4 + $0x38] sm:$0xff]
  %v4449 = vld [vmem:[#allocation4 + $0x48] sm:$0xff]
  %v4450 = vld [vmem:[#allocation4 + $0x50] sm:$0xff]
  %v4451 = vld [vmem:[#allocation4 + $0x58] sm:$0xff]
  %v4452 = vld [vmem:[#allocation4 + $0x60] sm:$0xff]
  %v4453 = vld [vmem:[#allocation4 + $0x68] sm:$0xff]
  %v4454 = vld [vmem:[#allocation4 + $0x70] sm:$0xff]
  %v4455 = vld [vmem:[#allocation4 + $0x78] sm:$0xff]
  %v4456 = vld [vmem:[#allocation4 + $0x88] sm:$0xff]
  %v4457 = vld [vmem:[#allocation4 + $0x90] sm:$0xff]
  %v4458 = vld [vmem:[#allocation4 + $0x98] sm:$0xff]
  %v4459 = vld [vmem:[#allocation4 + $0xa0] sm:$0xff]
  %v4460 = vld [vmem:[#allocation4 + $0xa8] sm:$0xff]
  %v4461 = vld [vmem:[#allocation4 + $0xb0] sm:$0xff]
  %v4462 = vld [vmem:[#allocation4 + $0xb8] sm:$0xff]
  %v4463 = vld [vmem:[#allocation4 + $0xc8] sm:$0xff]
  %v4464 = vld [vmem:[#allocation4 + $0xd0] sm:$0xff]
  %v4465 = vld [vmem:[#allocation4 + $0xd8] sm:$0xff]
  %v4466 = vld [vmem:[#allocation4 + $0xe0] sm:$0xff]
  %v4467 = vld [vmem:[#allocation4 + $0xe8] sm:$0xff]
  %v4468 = vld [vmem:[#allocation4 + $0xf0] sm:$0xff]
  %v4469 = vld [vmem:[#allocation4 + $0xf8] sm:$0xff]
  %4498 = vrot.lane.b32.xlu0 %v4442, 110
  %v4499 = vpop.permute.xlu0 %4498
  %4500 = vrot.lane.b32.xlu0 %v4443, 110
  %v4501 = vpop.permute.xlu0 %4500
  %4502 = vrot.lane.b32.xlu0 %v4444, 110
  %v4503 = vpop.permute.xlu0 %4502
  %4504 = vrot.lane.b32.xlu0 %v4445, 110
  %v4505 = vpop.permute.xlu0 %4504
  %4506 = vrot.lane.b32.xlu0 %v4446, 110
  %v4507 = vpop.permute.xlu0 %4506
  %4508 = vrot.lane.b32.xlu0 %v4447, 110
  %v4509 = vpop.permute.xlu0 %4508
  %4510 = vrot.lane.b32.xlu0 %v4448, 110
  %v4511 = vpop.permute.xlu0 %4510
  %4512 = vrot.lane.b32.xlu0 %v4449, 110
  %v4513 = vpop.permute.xlu0 %4512
  %4514 = vrot.lane.b32.xlu0 %v4450, 110
  %v4515 = vpop.permute.xlu0 %4514
  %4516 = vrot.lane.b32.xlu0 %v4451, 110
  %v4517 = vpop.permute.xlu0 %4516
  %4518 = vrot.lane.b32.xlu0 %v4452, 110
  %v4519 = vpop.permute.xlu0 %4518
  %4520 = vrot.lane.b32.xlu0 %v4453, 110
  %v4521 = vpop.permute.xlu0 %4520
  %4522 = vrot.lane.b32.xlu0 %v4454, 110
  %v4523 = vpop.permute.xlu0 %4522
  %4524 = vrot.lane.b32.xlu0 %v4455, 110
  %v4525 = vpop.permute.xlu0 %4524
  %4526 = vrot.lane.b32.xlu0 %v4456, 110
  %v4527 = vpop.permute.xlu0 %4526
  %4528 = vrot.lane.b32.xlu0 %v4457, 110
  %v4529 = vpop.permute.xlu0 %4528
  %4530 = vrot.lane.b32.xlu0 %v4458, 110
  %v4531 = vpop.permute.xlu0 %4530
  %4532 = vrot.lane.b32.xlu0 %v4459, 110
  %v4533 = vpop.permute.xlu0 %4532
  %4534 = vrot.lane.b32.xlu0 %v4460, 110
  %v4535 = vpop.permute.xlu0 %4534
  %4536 = vrot.lane.b32.xlu0 %v4461, 110
  %v4537 = vpop.permute.xlu0 %4536
  %4538 = vrot.lane.b32.xlu0 %v4462, 110
  %v4539 = vpop.permute.xlu0 %4538
  %4540 = vrot.lane.b32.xlu0 %v4463, 110
  %v4541 = vpop.permute.xlu0 %4540
  %4542 = vrot.lane.b32.xlu0 %v4464, 110
  %v4543 = vpop.permute.xlu0 %4542
  %4544 = vrot.lane.b32.xlu0 %v4465, 110
  %v4545 = vpop.permute.xlu0 %4544
  %4546 = vrot.lane.b32.xlu0 %v4466, 110
  %v4547 = vpop.permute.xlu0 %4546
  %4548 = vrot.lane.b32.xlu0 %v4467, 110
  %v4549 = vpop.permute.xlu0 %4548
  %4550 = vrot.lane.b32.xlu0 %v4468, 110
  %v4551 = vpop.permute.xlu0 %4550
  %4552 = vrot.lane.b32.xlu0 %v4469, 110
  %v4553 = vpop.permute.xlu0 %4552
  %v4554 = vsel %vm352, %v4499, %v4501
  %v4555 = vsel %vm352, %v4501, %v4503
  %v4556 = vsel %vm352, %v4503, %v4505
  %v4557 = vsel %vm352, %v4505, %v4507
  %v4558 = vsel %vm352, %v4507, %v4509
  %v4559 = vsel %vm352, %v4509, %v4511
  %v4560 = vsel %vm352, %v4513, %v4515
  %v4561 = vsel %vm352, %v4515, %v4517
  %v4562 = vsel %vm352, %v4517, %v4519
  %v4563 = vsel %vm352, %v4519, %v4521
  %v4564 = vsel %vm352, %v4521, %v4523
  %v4565 = vsel %vm352, %v4523, %v4525
  %v4566 = vsel %vm352, %v4527, %v4529
  %v4567 = vsel %vm352, %v4529, %v4531
  %v4568 = vsel %vm352, %v4531, %v4533
  %v4569 = vsel %vm352, %v4533, %v4535
  %v4570 = vsel %vm352, %v4535, %v4537
  %v4571 = vsel %vm352, %v4537, %v4539
  %v4572 = vsel %vm352, %v4541, %v4543
  %v4573 = vsel %vm352, %v4543, %v4545
  %v4574 = vsel %vm352, %v4545, %v4547
  %v4575 = vsel %vm352, %v4547, %v4549
  %v4576 = vsel %vm352, %v4549, %v4551
  %v4577 = vsel %vm352, %v4551, %v4553
  %4602 = vst [vmem:[#allocation2 + $0x540] sm:$0xff] %v4554
  %4603 = vst [vmem:[#allocation2 + $0x548] sm:$0xff] %v4555
  %4604 = vst [vmem:[#allocation2 + $0x550] sm:$0xff] %v4556
  %4605 = vst [vmem:[#allocation2 + $0x558] sm:$0xff] %v4557
  %4606 = vst [vmem:[#allocation2 + $0x560] sm:$0xff] %v4558
  %4607 = vst [vmem:[#allocation2 + $0x568] sm:$0xff] %v4559
  %4608 = vst [vmem:[#allocation2 + $0x570] sm:$0xff] %v4560
  %4609 = vst [vmem:[#allocation2 + $0x578] sm:$0xff] %v4561
  %4610 = vst [vmem:[#allocation2 + $0x580] sm:$0xff] %v4562
  %4611 = vst [vmem:[#allocation2 + $0x588] sm:$0xff] %v4563
  %4612 = vst [vmem:[#allocation2 + $0x590] sm:$0xff] %v4564
  %4613 = vst [vmem:[#allocation2 + $0x598] sm:$0xff] %v4565
  %4614 = vst [vmem:[#allocation2 + $0x5a0] sm:$0xff] %v4566
  %4615 = vst [vmem:[#allocation2 + $0x5a8] sm:$0xff] %v4567
  %4616 = vst [vmem:[#allocation2 + $0x5b0] sm:$0xff] %v4568
  %4617 = vst [vmem:[#allocation2 + $0x5b8] sm:$0xff] %v4569
  %4618 = vst [vmem:[#allocation2 + $0x5c0] sm:$0xff] %v4570
  %4619 = vst [vmem:[#allocation2 + $0x5c8] sm:$0xff] %v4571
  %4620 = vst [vmem:[#allocation2 + $0x5d0] sm:$0xff] %v4572
  %4621 = vst [vmem:[#allocation2 + $0x5d8] sm:$0xff] %v4573
  %4622 = vst [vmem:[#allocation2 + $0x5e0] sm:$0xff] %v4574
  %4623 = vst [vmem:[#allocation2 + $0x5e8] sm:$0xff] %v4575
  %4624 = vst [vmem:[#allocation2 + $0x5f0] sm:$0xff] %v4576
  %4625 = vst [vmem:[#allocation2 + $0x5f8] sm:$0xff] %v4577
  %v4626 = vld [vmem:[#allocation4 + $0x8] sm:$0xff]
  %v4627 = vld [vmem:[#allocation4 + $0x10] sm:$0xff]
  %v4628 = vld [vmem:[#allocation4 + $0x18] sm:$0xff]
  %v4629 = vld [vmem:[#allocation4 + $0x20] sm:$0xff]
  %v4630 = vld [vmem:[#allocation4 + $0x28] sm:$0xff]
  %v4631 = vld [vmem:[#allocation4 + $0x30] sm:$0xff]
  %v4632 = vld [vmem:[#allocation4 + $0x38] sm:$0xff]
  %v4633 = vld [vmem:[#allocation4 + $0x48] sm:$0xff]
  %v4634 = vld [vmem:[#allocation4 + $0x50] sm:$0xff]
  %v4635 = vld [vmem:[#allocation4 + $0x58] sm:$0xff]
  %v4636 = vld [vmem:[#allocation4 + $0x60] sm:$0xff]
  %v4637 = vld [vmem:[#allocation4 + $0x68] sm:$0xff]
  %v4638 = vld [vmem:[#allocation4 + $0x70] sm:$0xff]
  %v4639 = vld [vmem:[#allocation4 + $0x78] sm:$0xff]
  %v4640 = vld [vmem:[#allocation4 + $0x88] sm:$0xff]
  %v4641 = vld [vmem:[#allocation4 + $0x90] sm:$0xff]
  %v4642 = vld [vmem:[#allocation4 + $0x98] sm:$0xff]
  %v4643 = vld [vmem:[#allocation4 + $0xa0] sm:$0xff]
  %v4644 = vld [vmem:[#allocation4 + $0xa8] sm:$0xff]
  %v4645 = vld [vmem:[#allocation4 + $0xb0] sm:$0xff]
  %v4646 = vld [vmem:[#allocation4 + $0xb8] sm:$0xff]
  %v4647 = vld [vmem:[#allocation4 + $0xc8] sm:$0xff]
  %v4648 = vld [vmem:[#allocation4 + $0xd0] sm:$0xff]
  %v4649 = vld [vmem:[#allocation4 + $0xd8] sm:$0xff]
  %v4650 = vld [vmem:[#allocation4 + $0xe0] sm:$0xff]
  %v4651 = vld [vmem:[#allocation4 + $0xe8] sm:$0xff]
  %v4652 = vld [vmem:[#allocation4 + $0xf0] sm:$0xff]
  %v4653 = vld [vmem:[#allocation4 + $0xf8] sm:$0xff]
  %4682 = vrot.lane.b32.xlu0 %v4626, 109
  %v4683 = vpop.permute.xlu0 %4682
  %4684 = vrot.lane.b32.xlu0 %v4627, 109
  %v4685 = vpop.permute.xlu0 %4684
  %4686 = vrot.lane.b32.xlu0 %v4628, 109
  %v4687 = vpop.permute.xlu0 %4686
  %4688 = vrot.lane.b32.xlu0 %v4629, 109
  %v4689 = vpop.permute.xlu0 %4688
  %4690 = vrot.lane.b32.xlu0 %v4630, 109
  %v4691 = vpop.permute.xlu0 %4690
  %4692 = vrot.lane.b32.xlu0 %v4631, 109
  %v4693 = vpop.permute.xlu0 %4692
  %4694 = vrot.lane.b32.xlu0 %v4632, 109
  %v4695 = vpop.permute.xlu0 %4694
  %4696 = vrot.lane.b32.xlu0 %v4633, 109
  %v4697 = vpop.permute.xlu0 %4696
  %4698 = vrot.lane.b32.xlu0 %v4634, 109
  %v4699 = vpop.permute.xlu0 %4698
  %4700 = vrot.lane.b32.xlu0 %v4635, 109
  %v4701 = vpop.permute.xlu0 %4700
  %4702 = vrot.lane.b32.xlu0 %v4636, 109
  %v4703 = vpop.permute.xlu0 %4702
  %4704 = vrot.lane.b32.xlu0 %v4637, 109
  %v4705 = vpop.permute.xlu0 %4704
  %4706 = vrot.lane.b32.xlu0 %v4638, 109
  %v4707 = vpop.permute.xlu0 %4706
  %4708 = vrot.lane.b32.xlu0 %v4639, 109
  %v4709 = vpop.permute.xlu0 %4708
  %4710 = vrot.lane.b32.xlu0 %v4640, 109
  %v4711 = vpop.permute.xlu0 %4710
  %4712 = vrot.lane.b32.xlu0 %v4641, 109
  %v4713 = vpop.permute.xlu0 %4712
  %4714 = vrot.lane.b32.xlu0 %v4642, 109
  %v4715 = vpop.permute.xlu0 %4714
  %4716 = vrot.lane.b32.xlu0 %v4643, 109
  %v4717 = vpop.permute.xlu0 %4716
  %4718 = vrot.lane.b32.xlu0 %v4644, 109
  %v4719 = vpop.permute.xlu0 %4718
  %4720 = vrot.lane.b32.xlu0 %v4645, 109
  %v4721 = vpop.permute.xlu0 %4720
  %4722 = vrot.lane.b32.xlu0 %v4646, 109
  %v4723 = vpop.permute.xlu0 %4722
  %4724 = vrot.lane.b32.xlu0 %v4647, 109
  %v4725 = vpop.permute.xlu0 %4724
  %4726 = vrot.lane.b32.xlu0 %v4648, 109
  %v4727 = vpop.permute.xlu0 %4726
  %4728 = vrot.lane.b32.xlu0 %v4649, 109
  %v4729 = vpop.permute.xlu0 %4728
  %4730 = vrot.lane.b32.xlu0 %v4650, 109
  %v4731 = vpop.permute.xlu0 %4730
  %4732 = vrot.lane.b32.xlu0 %v4651, 109
  %v4733 = vpop.permute.xlu0 %4732
  %4734 = vrot.lane.b32.xlu0 %v4652, 109
  %v4735 = vpop.permute.xlu0 %4734
  %4736 = vrot.lane.b32.xlu0 %v4653, 109
  %v4737 = vpop.permute.xlu0 %4736
  %v4738 = vsel %vm399, %v4683, %v4685
  %v4739 = vsel %vm399, %v4685, %v4687
  %v4740 = vsel %vm399, %v4687, %v4689
  %v4741 = vsel %vm399, %v4689, %v4691
  %v4742 = vsel %vm399, %v4691, %v4693
  %v4743 = vsel %vm399, %v4693, %v4695
  %v4744 = vsel %vm399, %v4697, %v4699
  %v4745 = vsel %vm399, %v4699, %v4701
  %v4746 = vsel %vm399, %v4701, %v4703
  %v4747 = vsel %vm399, %v4703, %v4705
  %v4748 = vsel %vm399, %v4705, %v4707
  %v4749 = vsel %vm399, %v4707, %v4709
  %v4750 = vsel %vm399, %v4711, %v4713
  %v4751 = vsel %vm399, %v4713, %v4715
  %v4752 = vsel %vm399, %v4715, %v4717
  %v4753 = vsel %vm399, %v4717, %v4719
  %v4754 = vsel %vm399, %v4719, %v4721
  %v4755 = vsel %vm399, %v4721, %v4723
  %v4756 = vsel %vm399, %v4725, %v4727
  %v4757 = vsel %vm399, %v4727, %v4729
  %v4758 = vsel %vm399, %v4729, %v4731
  %v4759 = vsel %vm399, %v4731, %v4733
  %v4760 = vsel %vm399, %v4733, %v4735
  %v4761 = vsel %vm399, %v4735, %v4737
  %4786 = vst [vmem:[#allocation2 + $0x600] sm:$0xff] %v4738
  %4787 = vst [vmem:[#allocation2 + $0x608] sm:$0xff] %v4739
  %4788 = vst [vmem:[#allocation2 + $0x610] sm:$0xff] %v4740
  %4789 = vst [vmem:[#allocation2 + $0x618] sm:$0xff] %v4741
  %4790 = vst [vmem:[#allocation2 + $0x620] sm:$0xff] %v4742
  %4791 = vst [vmem:[#allocation2 + $0x628] sm:$0xff] %v4743
  %4792 = vst [vmem:[#allocation2 + $0x630] sm:$0xff] %v4744
  %4793 = vst [vmem:[#allocation2 + $0x638] sm:$0xff] %v4745
  %4794 = vst [vmem:[#allocation2 + $0x640] sm:$0xff] %v4746
  %4795 = vst [vmem:[#allocation2 + $0x648] sm:$0xff] %v4747
  %4796 = vst [vmem:[#allocation2 + $0x650] sm:$0xff] %v4748
  %4797 = vst [vmem:[#allocation2 + $0x658] sm:$0xff] %v4749
  %4798 = vst [vmem:[#allocation2 + $0x660] sm:$0xff] %v4750
  %4799 = vst [vmem:[#allocation2 + $0x668] sm:$0xff] %v4751
  %4800 = vst [vmem:[#allocation2 + $0x670] sm:$0xff] %v4752
  %4801 = vst [vmem:[#allocation2 + $0x678] sm:$0xff] %v4753
  %4802 = vst [vmem:[#allocation2 + $0x680] sm:$0xff] %v4754
  %4803 = vst [vmem:[#allocation2 + $0x688] sm:$0xff] %v4755
  %4804 = vst [vmem:[#allocation2 + $0x690] sm:$0xff] %v4756
  %4805 = vst [vmem:[#allocation2 + $0x698] sm:$0xff] %v4757
  %4806 = vst [vmem:[#allocation2 + $0x6a0] sm:$0xff] %v4758
  %4807 = vst [vmem:[#allocation2 + $0x6a8] sm:$0xff] %v4759
  %4808 = vst [vmem:[#allocation2 + $0x6b0] sm:$0xff] %v4760
  %4809 = vst [vmem:[#allocation2 + $0x6b8] sm:$0xff] %v4761
  %v4810 = vld [vmem:[%s6] sm:$0xff]
  %v4811 = vld [vmem:[%s6 + $0x8] sm:$0xff]
  %v4812 = vld [vmem:[%s6 + $0x10] sm:$0xff]
  %v4813 = vld [vmem:[%s6 + $0x18] sm:$0xff]
  %v4814 = vld [vmem:[%s6 + $0x20] sm:$0xff]
  %v4815 = vld [vmem:[%s6 + $0x28] sm:$0xff]
  %v4816 = vld [vmem:[#allocation2] sm:$0xff]
  %v4817 = vld [vmem:[#allocation2 + $0x8] sm:$0xff]
  %v4818 = vld [vmem:[#allocation2 + $0x10] sm:$0xff]
  %v4819 = vld [vmem:[#allocation2 + $0x18] sm:$0xff]
  %v4820 = vld [vmem:[#allocation2 + $0x20] sm:$0xff]
  %v4821 = vld [vmem:[#allocation2 + $0x28] sm:$0xff]
  %v4822 = vld [vmem:[#allocation2 + $0x30] sm:$0xff]
  %v4823 = vld [vmem:[#allocation2 + $0x38] sm:$0xff]
  %v4824 = vld [vmem:[#allocation2 + $0x40] sm:$0xff]
  %v4825 = vld [vmem:[#allocation2 + $0x48] sm:$0xff]
  %v4826 = vld [vmem:[#allocation2 + $0x50] sm:$0xff]
  %v4827 = vld [vmem:[#allocation2 + $0x58] sm:$0xff]
  %v4828 = vld [vmem:[#allocation2 + $0x60] sm:$0xff]
  %v4829 = vld [vmem:[#allocation2 + $0x68] sm:$0xff]
  %v4830 = vld [vmem:[#allocation2 + $0x70] sm:$0xff]
  %v4831 = vld [vmem:[#allocation2 + $0x78] sm:$0xff]
  %v4832 = vld [vmem:[#allocation2 + $0x80] sm:$0xff]
  %v4833 = vld [vmem:[#allocation2 + $0x88] sm:$0xff]
  %v4834 = vld [vmem:[#allocation2 + $0x90] sm:$0xff]
  %v4835 = vld [vmem:[#allocation2 + $0x98] sm:$0xff]
  %v4836 = vld [vmem:[#allocation2 + $0xa0] sm:$0xff]
  %v4837 = vld [vmem:[#allocation2 + $0xa8] sm:$0xff]
  %v4838 = vld [vmem:[#allocation2 + $0xb0] sm:$0xff]
  %v4839 = vld [vmem:[#allocation2 + $0xb8] sm:$0xff]
  %v4840 = vld [vmem:[#allocation2 + $0xc0] sm:$0xff]
  %v4841 = vld [vmem:[#allocation2 + $0xc8] sm:$0xff]
  %v4842 = vld [vmem:[#allocation2 + $0xd0] sm:$0xff]
  %v4843 = vld [vmem:[#allocation2 + $0xd8] sm:$0xff]
  %v4844 = vld [vmem:[#allocation2 + $0xe0] sm:$0xff]
  %v4845 = vld [vmem:[#allocation2 + $0xe8] sm:$0xff]
  %v4846 = vld [vmem:[#allocation2 + $0xf0] sm:$0xff]
  %v4847 = vld [vmem:[#allocation2 + $0xf8] sm:$0xff]
  %v4848 = vld [vmem:[#allocation2 + $0x100] sm:$0xff]
  %v4849 = vld [vmem:[#allocation2 + $0x108] sm:$0xff]
  %v4850 = vld [vmem:[#allocation2 + $0x110] sm:$0xff]
  %v4851 = vld [vmem:[#allocation2 + $0x118] sm:$0xff]
  %v4852 = vld [vmem:[#allocation2 + $0x120] sm:$0xff]
  %v4853 = vld [vmem:[#allocation2 + $0x128] sm:$0xff]
  %v4854 = vld [vmem:[#allocation2 + $0x130] sm:$0xff]
  %v4855 = vld [vmem:[#allocation2 + $0x138] sm:$0xff]
  %v4856 = vld [vmem:[#allocation2 + $0x140] sm:$0xff]
  %v4857 = vld [vmem:[#allocation2 + $0x148] sm:$0xff]
  %v4858 = vld [vmem:[#allocation2 + $0x150] sm:$0xff]
  %v4859 = vld [vmem:[#allocation2 + $0x158] sm:$0xff]
  %v4860 = vld [vmem:[#allocation2 + $0x160] sm:$0xff]
  %v4861 = vld [vmem:[#allocation2 + $0x168] sm:$0xff]
  %v4862 = vld [vmem:[#allocation2 + $0x170] sm:$0xff]
  %v4863 = vld [vmem:[#allocation2 + $0x178] sm:$0xff]
  %v4864 = vld [vmem:[#allocation2 + $0x180] sm:$0xff]
  %v4865 = vld [vmem:[#allocation2 + $0x188] sm:$0xff]
  %v4866 = vld [vmem:[#allocation2 + $0x190] sm:$0xff]
  %v4867 = vld [vmem:[#allocation2 + $0x198] sm:$0xff]
  %v4868 = vld [vmem:[#allocation2 + $0x1a0] sm:$0xff]
  %v4869 = vld [vmem:[#allocation2 + $0x1a8] sm:$0xff]
  %v4870 = vld [vmem:[#allocation2 + $0x1b0] sm:$0xff]
  %v4871 = vld [vmem:[#allocation2 + $0x1b8] sm:$0xff]
  %v4872 = vld [vmem:[#allocation2 + $0x1c0] sm:$0xff]
  %v4873 = vld [vmem:[#allocation2 + $0x1c8] sm:$0xff]
  %v4874 = vld [vmem:[#allocation2 + $0x1d0] sm:$0xff]
  %v4875 = vld [vmem:[#allocation2 + $0x1d8] sm:$0xff]
  %v4876 = vld [vmem:[#allocation2 + $0x1e0] sm:$0xff]
  %v4877 = vld [vmem:[#allocation2 + $0x1e8] sm:$0xff]
  %v4878 = vld [vmem:[#allocation2 + $0x1f0] sm:$0xff]
  %v4879 = vld [vmem:[#allocation2 + $0x1f8] sm:$0xff]
  %v4880 = vld [vmem:[#allocation2 + $0x200] sm:$0xff]
  %v4881 = vld [vmem:[#allocation2 + $0x208] sm:$0xff]
  %v4882 = vld [vmem:[#allocation2 + $0x210] sm:$0xff]
  %v4883 = vld [vmem:[#allocation2 + $0x218] sm:$0xff]
  %v4884 = vld [vmem:[#allocation2 + $0x220] sm:$0xff]
  %v4885 = vld [vmem:[#allocation2 + $0x228] sm:$0xff]
  %v4886 = vld [vmem:[#allocation2 + $0x230] sm:$0xff]
  %v4887 = vld [vmem:[#allocation2 + $0x238] sm:$0xff]
  %v4888 = vld [vmem:[#allocation2 + $0x240] sm:$0xff]
  %v4889 = vld [vmem:[#allocation2 + $0x248] sm:$0xff]
  %v4890 = vld [vmem:[#allocation2 + $0x250] sm:$0xff]
  %v4891 = vld [vmem:[#allocation2 + $0x258] sm:$0xff]
  %v4892 = vld [vmem:[#allocation2 + $0x260] sm:$0xff]
  %v4893 = vld [vmem:[#allocation2 + $0x268] sm:$0xff]
  %v4894 = vld [vmem:[#allocation2 + $0x270] sm:$0xff]
  %v4895 = vld [vmem:[#allocation2 + $0x278] sm:$0xff]
  %v4896 = vld [vmem:[#allocation2 + $0x280] sm:$0xff]
  %v4897 = vld [vmem:[#allocation2 + $0x288] sm:$0xff]
  %v4898 = vld [vmem:[#allocation2 + $0x290] sm:$0xff]
  %v4899 = vld [vmem:[#allocation2 + $0x298] sm:$0xff]
  %v4900 = vld [vmem:[#allocation2 + $0x2a0] sm:$0xff]
  %v4901 = vld [vmem:[#allocation2 + $0x2a8] sm:$0xff]
  %v4902 = vld [vmem:[#allocation2 + $0x2b0] sm:$0xff]
  %v4903 = vld [vmem:[#allocation2 + $0x2b8] sm:$0xff]
  %v4904 = vld [vmem:[#allocation2 + $0x2c0] sm:$0xff]
  %v4905 = vld [vmem:[#allocation2 + $0x2c8] sm:$0xff]
  %v4906 = vld [vmem:[#allocation2 + $0x2d0] sm:$0xff]
  %v4907 = vld [vmem:[#allocation2 + $0x2d8] sm:$0xff]
  %v4908 = vld [vmem:[#allocation2 + $0x2e0] sm:$0xff]
  %v4909 = vld [vmem:[#allocation2 + $0x2e8] sm:$0xff]
  %v4910 = vld [vmem:[#allocation2 + $0x2f0] sm:$0xff]
  %v4911 = vld [vmem:[#allocation2 + $0x2f8] sm:$0xff]
  %v4912 = vld [vmem:[#allocation2 + $0x300] sm:$0xff]
  %v4913 = vld [vmem:[#allocation2 + $0x308] sm:$0xff]
  %v4914 = vld [vmem:[#allocation2 + $0x310] sm:$0xff]
  %v4915 = vld [vmem:[#allocation2 + $0x318] sm:$0xff]
  %v4916 = vld [vmem:[#allocation2 + $0x320] sm:$0xff]
  %v4917 = vld [vmem:[#allocation2 + $0x328] sm:$0xff]
  %v4918 = vld [vmem:[#allocation2 + $0x330] sm:$0xff]
  %v4919 = vld [vmem:[#allocation2 + $0x338] sm:$0xff]
  %v4920 = vld [vmem:[#allocation2 + $0x340] sm:$0xff]
  %v4921 = vld [vmem:[#allocation2 + $0x348] sm:$0xff]
  %v4922 = vld [vmem:[#allocation2 + $0x350] sm:$0xff]
  %v4923 = vld [vmem:[#allocation2 + $0x358] sm:$0xff]
  %v4924 = vld [vmem:[#allocation2 + $0x360] sm:$0xff]
  %v4925 = vld [vmem:[#allocation2 + $0x368] sm:$0xff]
  %v4926 = vld [vmem:[#allocation2 + $0x370] sm:$0xff]
  %v4927 = vld [vmem:[#allocation2 + $0x378] sm:$0xff]
  %v4928 = vld [vmem:[#allocation2 + $0x380] sm:$0xff]
  %v4929 = vld [vmem:[#allocation2 + $0x388] sm:$0xff]
  %v4930 = vld [vmem:[#allocation2 + $0x390] sm:$0xff]
  %v4931 = vld [vmem:[#allocation2 + $0x398] sm:$0xff]
  %v4932 = vld [vmem:[#allocation2 + $0x3a0] sm:$0xff]
  %v4933 = vld [vmem:[#allocation2 + $0x3a8] sm:$0xff]
  %v4934 = vld [vmem:[#allocation2 + $0x3b0] sm:$0xff]
  %v4935 = vld [vmem:[#allocation2 + $0x3b8] sm:$0xff]
  %v4936 = vld [vmem:[#allocation2 + $0x3c0] sm:$0xff]
  %v4937 = vld [vmem:[#allocation2 + $0x3c8] sm:$0xff]
  %v4938 = vld [vmem:[#allocation2 + $0x3d0] sm:$0xff]
  %v4939 = vld [vmem:[#allocation2 + $0x3d8] sm:$0xff]
  %v4940 = vld [vmem:[#allocation2 + $0x3e0] sm:$0xff]
  %v4941 = vld [vmem:[#allocation2 + $0x3e8] sm:$0xff]
  %v4942 = vld [vmem:[#allocation2 + $0x3f0] sm:$0xff]
  %v4943 = vld [vmem:[#allocation2 + $0x3f8] sm:$0xff]
  %v4944 = vld [vmem:[#allocation2 + $0x400] sm:$0xff]
  %v4945 = vld [vmem:[#allocation2 + $0x408] sm:$0xff]
  %v4946 = vld [vmem:[#allocation2 + $0x410] sm:$0xff]
  %v4947 = vld [vmem:[#allocation2 + $0x418] sm:$0xff]
  %v4948 = vld [vmem:[#allocation2 + $0x420] sm:$0xff]
  %v4949 = vld [vmem:[#allocation2 + $0x428] sm:$0xff]
  %v4950 = vld [vmem:[#allocation2 + $0x430] sm:$0xff]
  %v4951 = vld [vmem:[#allocation2 + $0x438] sm:$0xff]
  %v4952 = vld [vmem:[#allocation2 + $0x440] sm:$0xff]
  %v4953 = vld [vmem:[#allocation2 + $0x448] sm:$0xff]
  %v4954 = vld [vmem:[#allocation2 + $0x450] sm:$0xff]
  %v4955 = vld [vmem:[#allocation2 + $0x458] sm:$0xff]
  %v4956 = vld [vmem:[#allocation2 + $0x460] sm:$0xff]
  %v4957 = vld [vmem:[#allocation2 + $0x468] sm:$0xff]
  %v4958 = vld [vmem:[#allocation2 + $0x470] sm:$0xff]
  %v4959 = vld [vmem:[#allocation2 + $0x478] sm:$0xff]
  %v4960 = vld [vmem:[#allocation2 + $0x480] sm:$0xff]
  %v4961 = vld [vmem:[#allocation2 + $0x488] sm:$0xff]
  %v4962 = vld [vmem:[#allocation2 + $0x490] sm:$0xff]
  %v4963 = vld [vmem:[#allocation2 + $0x498] sm:$0xff]
  %v4964 = vld [vmem:[#allocation2 + $0x4a0] sm:$0xff]
  %v4965 = vld [vmem:[#allocation2 + $0x4a8] sm:$0xff]
  %v4966 = vld [vmem:[#allocation2 + $0x4b0] sm:$0xff]
  %v4967 = vld [vmem:[#allocation2 + $0x4b8] sm:$0xff]
  %v4968 = vld [vmem:[#allocation2 + $0x4c0] sm:$0xff]
  %v4969 = vld [vmem:[#allocation2 + $0x4c8] sm:$0xff]
  %v4970 = vld [vmem:[#allocation2 + $0x4d0] sm:$0xff]
  %v4971 = vld [vmem:[#allocation2 + $0x4d8] sm:$0xff]
  %v4972 = vld [vmem:[#allocation2 + $0x4e0] sm:$0xff]
  %v4973 = vld [vmem:[#allocation2 + $0x4e8] sm:$0xff]
  %v4974 = vld [vmem:[#allocation2 + $0x4f0] sm:$0xff]
  %v4975 = vld [vmem:[#allocation2 + $0x4f8] sm:$0xff]
  %v4976 = vld [vmem:[#allocation2 + $0x500] sm:$0xff]
  %v4977 = vld [vmem:[#allocation2 + $0x508] sm:$0xff]
  %v4978 = vld [vmem:[#allocation2 + $0x510] sm:$0xff]
  %v4979 = vld [vmem:[#allocation2 + $0x518] sm:$0xff]
  %v4980 = vld [vmem:[#allocation2 + $0x520] sm:$0xff]
  %v4981 = vld [vmem:[#allocation2 + $0x528] sm:$0xff]
  %v4982 = vld [vmem:[#allocation2 + $0x530] sm:$0xff]
  %v4983 = vld [vmem:[#allocation2 + $0x538] sm:$0xff]
  %v4984 = vld [vmem:[#allocation2 + $0x540] sm:$0xff]
  %v4985 = vld [vmem:[#allocation2 + $0x548] sm:$0xff]
  %v4986 = vld [vmem:[#allocation2 + $0x550] sm:$0xff]
  %v4987 = vld [vmem:[#allocation2 + $0x558] sm:$0xff]
  %v4988 = vld [vmem:[#allocation2 + $0x560] sm:$0xff]
  %v4989 = vld [vmem:[#allocation2 + $0x568] sm:$0xff]
  %v4990 = vld [vmem:[#allocation2 + $0x570] sm:$0xff]
  %v4991 = vld [vmem:[#allocation2 + $0x578] sm:$0xff]
  %v4992 = vld [vmem:[#allocation2 + $0x580] sm:$0xff]
  %v4993 = vld [vmem:[#allocation2 + $0x588] sm:$0xff]
  %v4994 = vld [vmem:[#allocation2 + $0x590] sm:$0xff]
  %v4995 = vld [vmem:[#allocation2 + $0x598] sm:$0xff]
  %v4996 = vld [vmem:[#allocation2 + $0x5a0] sm:$0xff]
  %v4997 = vld [vmem:[#allocation2 + $0x5a8] sm:$0xff]
  %v4998 = vld [vmem:[#allocation2 + $0x5b0] sm:$0xff]
  %v4999 = vld [vmem:[#allocation2 + $0x5b8] sm:$0xff]
  %v5000 = vld [vmem:[#allocation2 + $0x5c0] sm:$0xff]
  %v5001 = vld [vmem:[#allocation2 + $0x5c8] sm:$0xff]
  %v5002 = vld [vmem:[#allocation2 + $0x5d0] sm:$0xff]
  %v5003 = vld [vmem:[#allocation2 + $0x5d8] sm:$0xff]
  %v5004 = vld [vmem:[#allocation2 + $0x5e0] sm:$0xff]
  %v5005 = vld [vmem:[#allocation2 + $0x5e8] sm:$0xff]
  %v5006 = vld [vmem:[#allocation2 + $0x5f0] sm:$0xff]
  %v5007 = vld [vmem:[#allocation2 + $0x5f8] sm:$0xff]
  %v5008 = vld [vmem:[#allocation2 + $0x600] sm:$0xff]
  %v5009 = vld [vmem:[#allocation2 + $0x608] sm:$0xff]
  %v5010 = vld [vmem:[#allocation2 + $0x610] sm:$0xff]
  %v5011 = vld [vmem:[#allocation2 + $0x618] sm:$0xff]
  %v5012 = vld [vmem:[#allocation2 + $0x620] sm:$0xff]
  %v5013 = vld [vmem:[#allocation2 + $0x628] sm:$0xff]
  %v5014 = vld [vmem:[#allocation2 + $0x630] sm:$0xff]
  %v5015 = vld [vmem:[#allocation2 + $0x638] sm:$0xff]
  %v5016 = vld [vmem:[#allocation2 + $0x640] sm:$0xff]
  %v5017 = vld [vmem:[#allocation2 + $0x648] sm:$0xff]
  %v5018 = vld [vmem:[#allocation2 + $0x650] sm:$0xff]
  %v5019 = vld [vmem:[#allocation2 + $0x658] sm:$0xff]
  %v5020 = vld [vmem:[#allocation2 + $0x660] sm:$0xff]
  %v5021 = vld [vmem:[#allocation2 + $0x668] sm:$0xff]
  %v5022 = vld [vmem:[#allocation2 + $0x670] sm:$0xff]
  %v5023 = vld [vmem:[#allocation2 + $0x678] sm:$0xff]
  %v5024 = vld [vmem:[#allocation2 + $0x680] sm:$0xff]
  %v5025 = vld [vmem:[#allocation2 + $0x688] sm:$0xff]
  %v5026 = vld [vmem:[#allocation2 + $0x690] sm:$0xff]
  %v5027 = vld [vmem:[#allocation2 + $0x698] sm:$0xff]
  %v5028 = vld [vmem:[#allocation2 + $0x6a0] sm:$0xff]
  %v5029 = vld [vmem:[#allocation2 + $0x6a8] sm:$0xff]
  %v5030 = vld [vmem:[#allocation2 + $0x6b0] sm:$0xff]
  %v5031 = vld [vmem:[#allocation2 + $0x6b8] sm:$0xff]
  %v5032 = vld [vmem:[%s7] sm:$0xff]
  %v5033 = vld [vmem:[%s7 + $0x8] sm:$0xff]
  %5035 = vset.pattern.permute.xlu0 0
  %5036 = vperm.xlu0 %5035, %v5032
  %v5037 = vpop.permute.xlu0 %5036
  %5040 = vset.pattern.permute.xlu0 0
  %5041 = vperm.xlu0 %5040, %v5033
  %v5042 = vpop.permute.xlu0 %5041
  %v5045 = vsel %vm2663, %v4812, 0
  %v5048 = vsel %vm2663, %v4815, 0
  %5050 = vmatprep.subr.mxu0 %v4817
  %5051 = vmatpush1.msra.mxu0 %v4816
  %5052 = vmatprep.subr.mxu0 %v4823
  %5053 = vmatpush1.msra.mxu0 %v4822
  %5054 = vmatprep.subr.mxu0 %v4829
  %5055 = vmatpush1.msra.mxu0 %v4828
  %5056 = vmatprep.subr.mxu0 %v4835
  %5057 = vmatpush1.msra.mxu0 %v4834
  %5058 = vmatprep.subr.mxu0 %v4841
  %5059 = vmatpush1.msra.mxu0 %v4840
  %5060 = vmatprep.subr.mxu0 %v4847
  %5061 = vmatpush1.msra.mxu0 %v4846
  %5062 = vmatprep.subr.mxu0 %v4853
  %5063 = vmatpush1.msra.mxu0 %v4852
  %5064 = vmatprep.subr.mxu0 %v4859
  %5065 = vmatpush1.msra.mxu0 %v4858
  %5066 = vmatprep.subr.mxu0 %v4865
  %5067 = vmatpush1.msra.mxu0 %v4864
  %5068 = vmatprep.subr.mxu0 %v4871
  %5069 = vmatpush1.msra.mxu0 %v4870
  %5070 = vmatprep.subr.mxu0 %v4877
  %5071 = vmatpush1.msra.mxu0 %v4876
  %5072 = vmatprep.subr.mxu0 %v4883
  %5073 = vmatpush1.msra.mxu0 %v4882
  %5074 = vmatprep.subr.mxu0 %v4889
  %5075 = vmatpush1.msra.mxu0 %v4888
  %5076 = vmatprep.subr.mxu0 %v4895
  %5077 = vmatpush1.msra.mxu0 %v4894
  %5078 = vmatprep.subr.mxu0 %v4901
  %5079 = vmatpush1.msra.mxu0 %v4900
  %5080 = vmatprep.subr.mxu0 %v4907
  %5081 = vmatpush1.msra.mxu0 %v4906
  %5082 = vmatprep.subr.mxu0 %v4913
  %5083 = vmatpush1.msra.mxu0 %v4912
  %5084 = vmatprep.subr.mxu0 %v4919
  %5085 = vmatpush1.msra.mxu0 %v4918
  %5086 = vmatprep.subr.mxu0 %v4925
  %5087 = vmatpush1.msra.mxu0 %v4924
  %5088 = vmatprep.subr.mxu0 %v4931
  %5089 = vmatpush1.msra.mxu0 %v4930
  %5090 = vmatprep.subr.mxu0 %v4937
  %5091 = vmatpush1.msra.mxu0 %v4936
  %5092 = vmatprep.subr.mxu0 %v4943
  %5093 = vmatpush1.msra.mxu0 %v4942
  %5094 = vmatprep.subr.mxu0 %v4949
  %5095 = vmatpush1.msra.mxu0 %v4948
  %5096 = vmatprep.subr.mxu0 %v4955
  %5097 = vmatpush1.msra.mxu0 %v4954
  %5098 = vmatprep.subr.mxu0 %v4961
  %5099 = vmatpush1.msra.mxu0 %v4960
  %5100 = vmatprep.subr.mxu0 %v4967
  %5101 = vmatpush1.msra.mxu0 %v4966
  %5102 = vmatprep.subr.mxu0 %v4973
  %5103 = vmatpush1.msra.mxu0 %v4972
  %5104 = vmatprep.subr.mxu0 %v4979
  %5105 = vmatpush1.msra.mxu0 %v4978
  %5106 = vmatprep.subr.mxu0 %v4985
  %5107 = vmatpush1.msra.mxu0 %v4984
  %5108 = vmatprep.subr.mxu0 %v4991
  %5109 = vmatpush1.msra.mxu0 %v4990
  %5110 = vmatprep.subr.mxu0 %v4997
  %5111 = vmatpush1.msra.mxu0 %v4996
  %5112 = vmatprep.subr.mxu0 %v5003
  %5113 = vmatpush1.msra.mxu0 %v5002
  %5114 = vmatprep.mubr.f32.mxu0 %v4811
  %5115 = vmatmul.mubr.f32.gmra.mrb[0].mxu0 %v4810
  %v5116 = vpop.f32.mrb[0].mxu0
  %v5117 = vadd.f32 %v5037, %v5116
  %v5118 = vpop.f32.mrb[0].mxu0
  %v5119 = vadd.f32 %v5037, %v5118
  %5120 = vmatprep.mubr.f32.mxu0 %v4814
  %5121 = vmatmul.mubr.f32.gmra.mrb[0].mxu0 %v4813
  %v5122 = vpop.f32.mrb[0].mxu0
  %v5123 = vadd.f32 %v5042, %v5122
  %v5124 = vpop.f32.mrb[0].mxu0
  %v5125 = vadd.f32 %v5042, %v5124
  %5126 = vdwg.mxu0
  %5127 = vmatprep.subr.mxu0 %v5009
  %5128 = vmatpush1.msra.mxu0 %v5008
  %5129 = vmatprep.subr.mxu0 %v5015
  %5130 = vmatpush1.msra.mxu0 %v5014
  %5131 = vmatprep.subr.mxu0 %v5021
  %5132 = vmatpush1.msra.mxu0 %v5020
  %5133 = vmatprep.subr.mxu0 %v5027
  %5134 = vmatpush1.msra.mxu0 %v5026
  %5135 = vmatprep.subr.mxu0 0.0
  %5136 = vmatpush1.msra.mxu0 0.0
  %5137 = vmatprep.subr.mxu0 0.0
  %5138 = vmatpush1.msra.mxu0 0.0
  %5139 = vmatprep.subr.mxu0 0.0
  %5140 = vmatpush1.msra.mxu0 0.0
  %5141 = vmatprep.subr.mxu0 0.0
  %5142 = vmatpush1.msra.mxu0 0.0
  %5143 = vmatprep.subr.mxu0 0.0
  %5144 = vmatpush1.msra.mxu0 0.0
  %5145 = vmatprep.subr.mxu0 0.0
  %5146 = vmatpush1.msra.mxu0 0.0
  %5147 = vmatprep.subr.mxu0 0.0
  %5148 = vmatpush1.msra.mxu0 0.0
  %5149 = vmatprep.subr.mxu0 0.0
  %5150 = vmatpush1.msra.mxu0 0.0
  %5151 = vmatprep.subr.mxu0 0.0
  %5152 = vmatpush1.msra.mxu0 0.0
  %5153 = vmatprep.subr.mxu0 0.0
  %5154 = vmatpush1.msra.mxu0 0.0
  %5155 = vmatprep.subr.mxu0 0.0
  %5156 = vmatpush1.msra.mxu0 0.0
  %5157 = vmatprep.subr.mxu0 0.0
  %5158 = vmatpush1.msra.mxu0 0.0
  %5159 = vmatprep.subr.mxu0 0.0
  %5160 = vmatpush1.msra.mxu0 0.0
  %5161 = vmatprep.subr.mxu0 0.0
  %5162 = vmatpush1.msra.mxu0 0.0
  %5163 = vmatprep.subr.mxu0 0.0
  %5164 = vmatpush1.msra.mxu0 0.0
  %5165 = vmatprep.subr.mxu0 0.0
  %5166 = vmatpush1.msra.mxu0 0.0
  %5167 = vmatprep.subr.mxu0 0.0
  %5168 = vmatpush1.msra.mxu0 0.0
  %5169 = vmatprep.subr.mxu0 0.0
  %5170 = vmatpush1.msra.mxu0 0.0
  %5171 = vmatprep.subr.mxu0 0.0
  %5172 = vmatpush1.msra.mxu0 0.0
  %5173 = vmatprep.subr.mxu0 0.0
  %5174 = vmatpush1.msra.mxu0 0.0
  %5175 = vmatprep.subr.mxu0 0.0
  %5176 = vmatpush1.msra.mxu0 0.0
  %5177 = vmatprep.subr.mxu0 0.0
  %5178 = vmatpush1.msra.mxu0 0.0
  %5179 = vmatprep.subr.mxu0 0.0
  %5180 = vmatpush1.msra.mxu0 0.0
  %5181 = vmatprep.subr.mxu0 0.0
  %5182 = vmatpush1.msra.mxu0 0.0
  %5183 = vmatprep.subr.mxu0 0.0
  %5184 = vmatpush1.msra.mxu0 0.0
  %5185 = vmatprep.subr.mxu0 0.0
  %5186 = vmatpush1.msra.mxu0 0.0
  %5187 = vmatprep.subr.mxu0 0.0
  %5188 = vmatpush1.msra.mxu0 0.0
  %5189 = vmatprep.subr.mxu0 0.0
  %5190 = vmatpush1.msra.mxu0 0.0
  %5191 = vmatprep.mubr.f32.mxu0 0.0
  %5192 = vmatmul.mubr.f32.gmra.mrb[0].mxu0 %v5045
  %v5193 = vpop.f32.mrb[0].mxu0
  %v5194 = vadd.f32 %v5117, %v5193
  %v5195 = vpop.f32.mrb[0].mxu0
  %v5196 = vadd.f32 %v5119, %v5195
  %5197 = vmatprep.mubr.f32.mxu0 0.0
  %5198 = vmatmul.mubr.f32.gmra.mrb[0].mxu0 %v5048
  %v5199 = vpop.f32.mrb[0].mxu0
  %v5200 = vadd.f32 %v5123, %v5199
  %v5201 = vpop.f32.mrb[0].mxu0
  %v5202 = vadd.f32 %v5125, %v5201
  %5203 = vdwg.mxu0
  %5204 = vmatprep.subr.mxu0 %v4819
  %5205 = vmatpush1.msra.mxu0 %v4818
  %5206 = vmatprep.subr.mxu0 %v4825
  %5207 = vmatpush1.msra.mxu0 %v4824
  %5208 = vmatprep.subr.mxu0 %v4831
  %5209 = vmatpush1.msra.mxu0 %v4830
  %5210 = vmatprep.subr.mxu0 %v4837
  %5211 = vmatpush1.msra.mxu0 %v4836
  %5212 = vmatprep.subr.mxu0 %v4843
  %5213 = vmatpush1.msra.mxu0 %v4842
  %5214 = vmatprep.subr.mxu0 %v4849
  %5215 = vmatpush1.msra.mxu0 %v4848
  %5216 = vmatprep.subr.mxu0 %v4855
  %5217 = vmatpush1.msra.mxu0 %v4854
  %5218 = vmatprep.subr.mxu0 %v4861
  %5219 = vmatpush1.msra.mxu0 %v4860
  %5220 = vmatprep.subr.mxu0 %v4867
  %5221 = vmatpush1.msra.mxu0 %v4866
  %5222 = vmatprep.subr.mxu0 %v4873
  %5223 = vmatpush1.msra.mxu0 %v4872
  %5224 = vmatprep.subr.mxu0 %v4879
  %5225 = vmatpush1.msra.mxu0 %v4878
  %5226 = vmatprep.subr.mxu0 %v4885
  %5227 = vmatpush1.msra.mxu0 %v4884
  %5228 = vmatprep.subr.mxu0 %v4891
  %5229 = vmatpush1.msra.mxu0 %v4890
  %5230 = vmatprep.subr.mxu0 %v4897
  %5231 = vmatpush1.msra.mxu0 %v4896
  %5232 = vmatprep.subr.mxu0 %v4903
  %5233 = vmatpush1.msra.mxu0 %v4902
  %5234 = vmatprep.subr.mxu0 %v4909
  %5235 = vmatpush1.msra.mxu0 %v4908
  %5236 = vmatprep.subr.mxu0 %v4915
  %5237 = vmatpush1.msra.mxu0 %v4914
  %5238 = vmatprep.subr.mxu0 %v4921
  %5239 = vmatpush1.msra.mxu0 %v4920
  %5240 = vmatprep.subr.mxu0 %v4927
  %5241 = vmatpush1.msra.mxu0 %v4926
  %5242 = vmatprep.subr.mxu0 %v4933
  %5243 = vmatpush1.msra.mxu0 %v4932
  %5244 = vmatprep.subr.mxu0 %v4939
  %5245 = vmatpush1.msra.mxu0 %v4938
  %5246 = vmatprep.subr.mxu0 %v4945
  %5247 = vmatpush1.msra.mxu0 %v4944
  %5248 = vmatprep.subr.mxu0 %v4951
  %5249 = vmatpush1.msra.mxu0 %v4950
  %5250 = vmatprep.subr.mxu0 %v4957
  %5251 = vmatpush1.msra.mxu0 %v4956
  %5252 = vmatprep.subr.mxu0 %v4963
  %5253 = vmatpush1.msra.mxu0 %v4962
  %5254 = vmatprep.subr.mxu0 %v4969
  %5255 = vmatpush1.msra.mxu0 %v4968
  %5256 = vmatprep.subr.mxu0 %v4975
  %5257 = vmatpush1.msra.mxu0 %v4974
  %5258 = vmatprep.subr.mxu0 %v4981
  %5259 = vmatpush1.msra.mxu0 %v4980
  %5260 = vmatprep.subr.mxu0 %v4987
  %5261 = vmatpush1.msra.mxu0 %v4986
  %5262 = vmatprep.subr.mxu0 %v4993
  %5263 = vmatpush1.msra.mxu0 %v4992
  %5264 = vmatprep.subr.mxu0 %v4999
  %5265 = vmatpush1.msra.mxu0 %v4998
  %5266 = vmatprep.subr.mxu0 %v5005
  %5267 = vmatpush1.msra.mxu0 %v5004
  %5268 = vmatprep.mubr.f32.mxu0 %v4811
  %5269 = vmatmul.mubr.f32.gmra.mrb[0].mxu0 %v4810
  %v5270 = vpop.f32.mrb[0].mxu0
  %v5271 = vadd.f32 %v5037, %v5270
  %v5272 = vpop.f32.mrb[0].mxu0
  %v5273 = vadd.f32 %v5037, %v5272
  %5274 = vmatprep.mubr.f32.mxu0 %v4814
  %5275 = vmatmul.mubr.f32.gmra.mrb[0].mxu0 %v4813
  %v5276 = vpop.f32.mrb[0].mxu0
  %v5277 = vadd.f32 %v5042, %v5276
  %v5278 = vpop.f32.mrb[0].mxu0
  %v5279 = vadd.f32 %v5042, %v5278
  %5280 = vdwg.mxu0
  %5281 = vmatprep.subr.mxu0 %v5011
  %5282 = vmatpush1.msra.mxu0 %v5010
  %5283 = vmatprep.subr.mxu0 %v5017
  %5284 = vmatpush1.msra.mxu0 %v5016
  %5285 = vmatprep.subr.mxu0 %v5023
  %5286 = vmatpush1.msra.mxu0 %v5022
  %5287 = vmatprep.subr.mxu0 %v5029
  %5288 = vmatpush1.msra.mxu0 %v5028
  %5289 = vmatprep.subr.mxu0 0.0
  %5290 = vmatpush1.msra.mxu0 0.0
  %5291 = vmatprep.subr.mxu0 0.0
  %5292 = vmatpush1.msra.mxu0 0.0
  %5293 = vmatprep.subr.mxu0 0.0
  %5294 = vmatpush1.msra.mxu0 0.0
  %5295 = vmatprep.subr.mxu0 0.0
  %5296 = vmatpush1.msra.mxu0 0.0
  %5297 = vmatprep.subr.mxu0 0.0
  %5298 = vmatpush1.msra.mxu0 0.0
  %5299 = vmatprep.subr.mxu0 0.0
  %5300 = vmatpush1.msra.mxu0 0.0
  %5301 = vmatprep.subr.mxu0 0.0
  %5302 = vmatpush1.msra.mxu0 0.0
  %5303 = vmatprep.subr.mxu0 0.0
  %5304 = vmatpush1.msra.mxu0 0.0
  %5305 = vmatprep.subr.mxu0 0.0
  %5306 = vmatpush1.msra.mxu0 0.0
  %5307 = vmatprep.subr.mxu0 0.0
  %5308 = vmatpush1.msra.mxu0 0.0
  %5309 = vmatprep.subr.mxu0 0.0
  %5310 = vmatpush1.msra.mxu0 0.0
  %5311 = vmatprep.subr.mxu0 0.0
  %5312 = vmatpush1.msra.mxu0 0.0
  %5313 = vmatprep.subr.mxu0 0.0
  %5314 = vmatpush1.msra.mxu0 0.0
  %5315 = vmatprep.subr.mxu0 0.0
  %5316 = vmatpush1.msra.mxu0 0.0
  %5317 = vmatprep.subr.mxu0 0.0
  %5318 = vmatpush1.msra.mxu0 0.0
  %5319 = vmatprep.subr.mxu0 0.0
  %5320 = vmatpush1.msra.mxu0 0.0
  %5321 = vmatprep.subr.mxu0 0.0
  %5322 = vmatpush1.msra.mxu0 0.0
  %5323 = vmatprep.subr.mxu0 0.0
  %5324 = vmatpush1.msra.mxu0 0.0
  %5325 = vmatprep.subr.mxu0 0.0
  %5326 = vmatpush1.msra.mxu0 0.0
  %5327 = vmatprep.subr.mxu0 0.0
  %5328 = vmatpush1.msra.mxu0 0.0
  %5329 = vmatprep.subr.mxu0 0.0
  %5330 = vmatpush1.msra.mxu0 0.0
  %5331 = vmatprep.subr.mxu0 0.0
  %5332 = vmatpush1.msra.mxu0 0.0
  %5333 = vmatprep.subr.mxu0 0.0
  %5334 = vmatpush1.msra.mxu0 0.0
  %5335 = vmatprep.subr.mxu0 0.0
  %5336 = vmatpush1.msra.mxu0 0.0
  %5337 = vmatprep.subr.mxu0 0.0
  %5338 = vmatpush1.msra.mxu0 0.0
  %5339 = vmatprep.subr.mxu0 0.0
  %5340 = vmatpush1.msra.mxu0 0.0
  %5341 = vmatprep.subr.mxu0 0.0
  %5342 = vmatpush1.msra.mxu0 0.0
  %5343 = vmatprep.subr.mxu0 0.0
  %5344 = vmatpush1.msra.mxu0 0.0
  %5345 = vmatprep.mubr.f32.mxu0 0.0
  %5346 = vmatmul.mubr.f32.gmra.mrb[0].mxu0 %v5045
  %v5347 = vpop.f32.mrb[0].mxu0
  %v5348 = vadd.f32 %v5271, %v5347
  %v5349 = vpop.f32.mrb[0].mxu0
  %v5350 = vadd.f32 %v5273, %v5349
  %5351 = vmatprep.mubr.f32.mxu0 0.0
  %5352 = vmatmul.mubr.f32.gmra.mrb[0].mxu0 %v5048
  %v5353 = vpop.f32.mrb[0].mxu0
  %v5354 = vadd.f32 %v5277, %v5353
  %v5355 = vpop.f32.mrb[0].mxu0
  %v5356 = vadd.f32 %v5279, %v5355
  %5357 = vdwg.mxu0
  %5358 = vmatprep.subr.mxu0 %v4821
  %5359 = vmatpush1.msra.mxu0 %v4820
  %5360 = vmatprep.subr.mxu0 %v4827
  %5361 = vmatpush1.msra.mxu0 %v4826
  %5362 = vmatprep.subr.mxu0 %v4833
  %5363 = vmatpush1.msra.mxu0 %v4832
  %5364 = vmatprep.subr.mxu0 %v4839
  %5365 = vmatpush1.msra.mxu0 %v4838
  %5366 = vmatprep.subr.mxu0 %v4845
  %5367 = vmatpush1.msra.mxu0 %v4844
  %5368 = vmatprep.subr.mxu0 %v4851
  %5369 = vmatpush1.msra.mxu0 %v4850
  %5370 = vmatprep.subr.mxu0 %v4857
  %5371 = vmatpush1.msra.mxu0 %v4856
  %5372 = vmatprep.subr.mxu0 %v4863
  %5373 = vmatpush1.msra.mxu0 %v4862
  %5374 = vmatprep.subr.mxu0 %v4869
  %5375 = vmatpush1.msra.mxu0 %v4868
  %5376 = vmatprep.subr.mxu0 %v4875
  %5377 = vmatpush1.msra.mxu0 %v4874
  %5378 = vmatprep.subr.mxu0 %v4881
  %5379 = vmatpush1.msra.mxu0 %v4880
  %5380 = vmatprep.subr.mxu0 %v4887
  %5381 = vmatpush1.msra.mxu0 %v4886
  %5382 = vmatprep.subr.mxu0 %v4893
  %5383 = vmatpush1.msra.mxu0 %v4892
  %5384 = vmatprep.subr.mxu0 %v4899
  %5385 = vmatpush1.msra.mxu0 %v4898
  %5386 = vmatprep.subr.mxu0 %v4905
  %5387 = vmatpush1.msra.mxu0 %v4904
  %5388 = vmatprep.subr.mxu0 %v4911
  %5389 = vmatpush1.msra.mxu0 %v4910
  %5390 = vmatprep.subr.mxu0 %v4917
  %5391 = vmatpush1.msra.mxu0 %v4916
  %5392 = vmatprep.subr.mxu0 %v4923
  %5393 = vmatpush1.msra.mxu0 %v4922
  %5394 = vmatprep.subr.mxu0 %v4929
  %5395 = vmatpush1.msra.mxu0 %v4928
  %5396 = vmatprep.subr.mxu0 %v4935
  %5397 = vmatpush1.msra.mxu0 %v4934
  %5398 = vmatprep.subr.mxu0 %v4941
  %5399 = vmatpush1.msra.mxu0 %v4940
  %5400 = vmatprep.subr.mxu0 %v4947
  %5401 = vmatpush1.msra.mxu0 %v4946
  %5402 = vmatprep.subr.mxu0 %v4953
  %5403 = vmatpush1.msra.mxu0 %v4952
  %5404 = vmatprep.subr.mxu0 %v4959
  %5405 = vmatpush1.msra.mxu0 %v4958
  %5406 = vmatprep.subr.mxu0 %v4965
  %5407 = vmatpush1.msra.mxu0 %v4964
  %5408 = vmatprep.subr.mxu0 %v4971
  %5409 = vmatpush1.msra.mxu0 %v4970
  %5410 = vmatprep.subr.mxu0 %v4977
  %5411 = vmatpush1.msra.mxu0 %v4976
  %5412 = vmatprep.subr.mxu0 %v4983
  %5413 = vmatpush1.msra.mxu0 %v4982
  %5414 = vmatprep.subr.mxu0 %v4989
  %5415 = vmatpush1.msra.mxu0 %v4988
  %5416 = vmatprep.subr.mxu0 %v4995
  %5417 = vmatpush1.msra.mxu0 %v4994
  %5418 = vmatprep.subr.mxu0 %v5001
  %5419 = vmatpush1.msra.mxu0 %v5000
  %5420 = vmatprep.subr.mxu0 %v5007
  %5421 = vmatpush1.msra.mxu0 %v5006
  %5422 = vmatprep.mubr.f32.mxu0 %v4811
  %5423 = vmatmul.mubr.f32.gmra.mrb[0].mxu0 %v4810
  %v5424 = vpop.f32.mrb[0].mxu0
  %v5425 = vadd.f32 %v5037, %v5424
  %v5426 = vpop.f32.mrb[0].mxu0
  %v5427 = vadd.f32 %v5037, %v5426
  %5428 = vmatprep.mubr.f32.mxu0 %v4814
  %5429 = vmatmul.mubr.f32.gmra.mrb[0].mxu0 %v4813
  %v5430 = vpop.f32.mrb[0].mxu0
  %v5431 = vadd.f32 %v5042, %v5430
  %v5432 = vpop.f32.mrb[0].mxu0
  %v5433 = vadd.f32 %v5042, %v5432
  %5434 = vdwg.mxu0
  %5435 = vmatprep.subr.mxu0 %v5013
  %5436 = vmatpush1.msra.mxu0 %v5012
  %5437 = vmatprep.subr.mxu0 %v5019
  %5438 = vmatpush1.msra.mxu0 %v5018
  %5439 = vmatprep.subr.mxu0 %v5025
  %5440 = vmatpush1.msra.mxu0 %v5024
  %5441 = vmatprep.subr.mxu0 %v5031
  %5442 = vmatpush1.msra.mxu0 %v5030
  %5443 = vmatprep.subr.mxu0 0.0
  %5444 = vmatpush1.msra.mxu0 0.0
  %5445 = vmatprep.subr.mxu0 0.0
  %5446 = vmatpush1.msra.mxu0 0.0
  %5447 = vmatprep.subr.mxu0 0.0
  %5448 = vmatpush1.msra.mxu0 0.0
  %5449 = vmatprep.subr.mxu0 0.0
  %5450 = vmatpush1.msra.mxu0 0.0
  %5451 = vmatprep.subr.mxu0 0.0
  %5452 = vmatpush1.msra.mxu0 0.0
  %5453 = vmatprep.subr.mxu0 0.0
  %5454 = vmatpush1.msra.mxu0 0.0
  %5455 = vmatprep.subr.mxu0 0.0
  %5456 = vmatpush1.msra.mxu0 0.0
  %5457 = vmatprep.subr.mxu0 0.0
  %5458 = vmatpush1.msra.mxu0 0.0
  %5459 = vmatprep.subr.mxu0 0.0
  %5460 = vmatpush1.msra.mxu0 0.0
  %5461 = vmatprep.subr.mxu0 0.0
  %5462 = vmatpush1.msra.mxu0 0.0
  %5463 = vmatprep.subr.mxu0 0.0
  %5464 = vmatpush1.msra.mxu0 0.0
  %5465 = vmatprep.subr.mxu0 0.0
  %5466 = vmatpush1.msra.mxu0 0.0
  %5467 = vmatprep.subr.mxu0 0.0
  %5468 = vmatpush1.msra.mxu0 0.0
  %5469 = vmatprep.subr.mxu0 0.0
  %5470 = vmatpush1.msra.mxu0 0.0
  %5471 = vmatprep.subr.mxu0 0.0
  %5472 = vmatpush1.msra.mxu0 0.0
  %5473 = vmatprep.subr.mxu0 0.0
  %5474 = vmatpush1.msra.mxu0 0.0
  %5475 = vmatprep.subr.mxu0 0.0
  %5476 = vmatpush1.msra.mxu0 0.0
  %5477 = vmatprep.subr.mxu0 0.0
  %5478 = vmatpush1.msra.mxu0 0.0
  %5479 = vmatprep.subr.mxu0 0.0
  %5480 = vmatpush1.msra.mxu0 0.0
  %5481 = vmatprep.subr.mxu0 0.0
  %5482 = vmatpush1.msra.mxu0 0.0
  %5483 = vmatprep.subr.mxu0 0.0
  %5484 = vmatpush1.msra.mxu0 0.0
  %5485 = vmatprep.subr.mxu0 0.0
  %5486 = vmatpush1.msra.mxu0 0.0
  %5487 = vmatprep.subr.mxu0 0.0
  %5488 = vmatpush1.msra.mxu0 0.0
  %5489 = vmatprep.subr.mxu0 0.0
  %5490 = vmatpush1.msra.mxu0 0.0
  %5491 = vmatprep.subr.mxu0 0.0
  %5492 = vmatpush1.msra.mxu0 0.0
  %5493 = vmatprep.subr.mxu0 0.0
  %5494 = vmatpush1.msra.mxu0 0.0
  %5495 = vmatprep.subr.mxu0 0.0
  %5496 = vmatpush1.msra.mxu0 0.0
  %5497 = vmatprep.subr.mxu0 0.0
  %5498 = vmatpush1.msra.mxu0 0.0
  %5499 = vmatprep.mubr.f32.mxu0 0.0
  %5500 = vmatmul.mubr.f32.gmra.mrb[0].mxu0 %v5045
  %v5501 = vpop.f32.mrb[0].mxu0
  %v5502 = vadd.f32 %v5425, %v5501
  %v5503 = vpop.f32.mrb[0].mxu0
  %v5504 = vadd.f32 %v5427, %v5503
  %5505 = vmatprep.mubr.f32.mxu0 0.0
  %5506 = vmatmul.mubr.f32.gmra.mrb[0].mxu0 %v5048
  %v5507 = vpop.f32.mrb[0].mxu0
  %v5508 = vadd.f32 %v5431, %v5507
  %v5509 = vpop.f32.mrb[0].mxu0
  %v5510 = vadd.f32 %v5433, %v5509
  %5511 = vdwg.mxu0
  %v5512 = vtanh.pop %v5194
  %v5513 = vtanh.pop %v5196
  %v5514 = vtanh.pop %v5348
  %v5515 = vtanh.pop %v5350
  %v5516 = vtanh.pop %v5502
  %v5517 = vtanh.pop %v5504
  %v5518 = vmul.f32 %v5512, %v816
  %v5519 = vmul.f32 %v5513, %v820
  %v5520 = vmul.f32 %v5514, %v824
  %v5521 = vmul.f32 %v5515, %v828
  %v5522 = vmul.f32 %v5516, %v832
  %v5523 = vmul.f32 %v5517, %v836
  %5524 = vst [vmem:[%s8] sm:$0xff] %v5518
  %5525 = vst [vmem:[%s8 + $0x8] sm:$0xff] %v5519
  %5526 = vst [vmem:[%s8 + $0x10] sm:$0xff] %v5520
  %5527 = vst [vmem:[%s8 + $0x18] sm:$0xff] %v5521
  %5528 = vst [vmem:[%s8 + $0x20] sm:$0xff] %v5522
  %5529 = vst [vmem:[%s8 + $0x28] sm:$0xff] %v5523
  %v5530 = vmul.f32 %v5200, %v816
  %v5531 = vmul.f32 %v5202, %v820
  %v5532 = vmul.f32 %v5354, %v824
  %v5533 = vmul.f32 %v5356, %v828
  %v5534 = vmul.f32 %v5508, %v832
  %v5535 = vmul.f32 %v5510, %v836
  %5536 = vst [vmem:[%s8 + $0x30] sm:$0xff] %v5530
  %5537 = vst [vmem:[%s8 + $0x38] sm:$0xff] %v5531
  %5538 = vst [vmem:[%s8 + $0x40] sm:$0xff] %v5532
  %5539 = vst [vmem:[%s8 + $0x48] sm:$0xff] %v5533
  %5540 = vst [vmem:[%s8 + $0x50] sm:$0xff] %v5534
  %5541 = vst [vmem:[%s8 + $0x58] sm:$0xff] %v5535
  // Predicated region
  $region34: #{trainer_forward.1} parent=0 // pred_check
    _
  $region35: #{trainer_forward.1} parent=0 // pred_check_branch
    %5543 = sbr.rel (0) target = $region37
  $region36: #{trainer_forward.1} parent=0 // pred_region
    _
  $region37: #{trainer_forward.1} parent=0 // pred_fallthru
    _
  // Predicated region
  $region38: #{trainer_forward.1} parent=0 // pred_check
    _
  $region39: #{trainer_forward.1} parent=0 // pred_check_branch
    %5545 = sbr.rel (0) target = $region41
  $region40: #{trainer_forward.1} parent=0 // pred_region
    _
  $region41: #{trainer_forward.1} parent=0 // pred_fallthru
    _

</llo_original>
